<compile_context>
chip_gen: v7x
topology: tpu7x:2x2x1
jax: 0.10.0
libtpu: 0.0.40
codegen_flags: <defaults>
</compile_context>

<pallas_src>
import jax
import jax.numpy as jnp
from jax import lax
from jax.experimental import pallas as pl
from jax.experimental.pallas import tpu as pltpu

EPS = 1e-5
VMEM_LIMIT = 32 * 1024 * 1024     # tiny tiles here; safe on v5e/v6e (128 MiB) and v7x (64 MiB)


def _pick_tm(m, min_tm=128):
    """Largest lane tile in {512, 256, 128} (>= min_tm) that still yields >= 4
    grid steps (>= 2 per TensorCore on v7x); otherwise the largest valid tile."""
    cands = [t for t in (512, 256, 128) if t >= min_tm]
    if not cands:
        cands = [pl.cdiv(min_tm, 128) * 128]
    for t in cands:
        if pl.cdiv(m, t) >= 4:
            return t
    return cands[0]


# ------------------------------ Pallas kernels -------------------------------

def _make_shift_conv_kernel(offsets, guard_left, tm, has_bias):
    """Shift-accumulated conv over a flat channel-major activation.

    The kernel sees two consecutive TM-wide blocks of the guard-padded input
    (a contiguous (C_in, 2*TM) window).  For each static tap offset it takes a
    lane-shifted (C_in, TM) slice and accumulates W_tap @ slice on the MXU
    (f32 accumulate), adds the optional bias, writes the output tile in bf16,
    and emits masked per-tile BN partial sums for the *next* BatchNorm."""

    def kernel(*refs):
        if has_bias:
            w0_ref, w1_ref, wt_ref, b_ref, m_ref, o_ref, sum_ref, ssq_ref = refs
        else:
            w0_ref, w1_ref, wt_ref, m_ref, o_ref, sum_ref, ssq_ref = refs

        window = jnp.concatenate([w0_ref[...], w1_ref[...]], axis=1)   # (Cin, 2*TM) bf16
        acc = None
        for t, off in enumerate(offsets):
            s = guard_left + off                                       # static lane offset
            part = jnp.dot(wt_ref[t], window[:, s:s + tm],
                           preferred_element_type=jnp.float32)
            acc = part if acc is None else acc + part
        if has_bias:
            acc = acc + b_ref[...]                                     # (Cout, TM) f32

        o_ref[...] = acc.astype(o_ref.dtype)                           # bf16 writeback

        # masked per-tile partial BN stats (mask excludes padded-grid / pad columns)
        m = m_ref[...]                                                 # (1, TM) in {0,1}
        masked = acc * m
        sum_ref[0] = jnp.sum(masked, axis=1, keepdims=True)            # (Cout, 1)
        ssq_ref[0] = jnp.sum(masked * acc, axis=1, keepdims=True)

    return kernel


def _bn_relu_kernel(x_ref, sc_ref, sh_ref, o_ref):
    # fused BatchNorm affine + ReLU over a lane-dense (C, TM) slab (bf16 in, f32 out)
    o_ref[...] = jnp.maximum(x_ref[...].astype(jnp.float32) * sc_ref[...] + sh_ref[...], 0.0)


# ------------------------------ Pallas wrappers -------------------------------

def shift_conv(x_flat, w_taps, offsets, bias, mask):
    """x_flat: (Cin, Mf) bf16 flat channel-major activation (padded-grid layout),
    w_taps: (T, Cout, Cin) bf16, offsets: T static column offsets,
    bias: (Cout, 1) f32 or None, mask: (1, Mf) f32 validity (for BN stats).
    Returns (y [Cout, nt*TM] bf16, sums [nt,Cout,1] f32, ssq [nt,Cout,1] f32, tm)."""
    Cin, Mf = x_flat.shape
    T, Cout, _ = w_taps.shape

    guard_left = max(0, -min(offsets))
    span = guard_left + max(offsets)
    tm = _pick_tm(Mf, min_tm=max(128, pl.cdiv(span, 128) * 128))
    assert span <= tm, (span, tm)
    nt = pl.cdiv(Mf, tm)

    # guard-pad the flat activation (left halo + round up so block i+1 exists)
    xg = jnp.pad(x_flat, ((0, 0), (guard_left, (nt + 1) * tm - guard_left - Mf)))
    mpad = jnp.pad(mask, ((0, 0), (0, nt * tm - Mf)))

    kernel = _make_shift_conv_kernel(tuple(offsets), guard_left, tm, bias is not None)

    in_specs = [
        pl.BlockSpec((Cin, tm), lambda i: (0, i)),          # window block i
        pl.BlockSpec((Cin, tm), lambda i: (0, i + 1)),      # window block i+1 (halo)
        pl.BlockSpec((T, Cout, Cin), lambda i: (0, 0, 0)),  # tap weights
    ]
    args = [xg, xg, w_taps]
    if bias is not None:
        in_specs.append(pl.BlockSpec((Cout, 1), lambda i: (0, 0)))
        args.append(bias)
    in_specs.append(pl.BlockSpec((1, tm), lambda i: (0, i)))
    args.append(mpad)

    y, sums, ssq = pl.pallas_call(
        kernel,
        out_shape=(
            jax.ShapeDtypeStruct((Cout, nt * tm), jnp.bfloat16),
            jax.ShapeDtypeStruct((nt, Cout, 1), jnp.float32),
            jax.ShapeDtypeStruct((nt, Cout, 1), jnp.float32),
        ),
        grid_spec=pltpu.PrefetchScalarGridSpec(
            num_scalar_prefetch=0,
            grid=(nt,),
            in_specs=in_specs,
            out_specs=[
                pl.BlockSpec((Cout, tm), lambda i: (0, i)),
                pl.BlockSpec((1, Cout, 1), lambda i: (i, 0, 0)),
                pl.BlockSpec((1, Cout, 1), lambda i: (i, 0, 0)),
            ],
        ),
        compiler_params=pltpu.CompilerParams(
            dimension_semantics=("parallel",),
            vmem_limit_bytes=VMEM_LIMIT,
        ),
    )(*args)
    return y, sums, ssq, tm


def bn_relu(y, scale_col, shift_col, tm):
    """y: [C, L] bf16, scale/shift: [C,1] f32 -> relu(y*scale + shift) f32."""
    Cout, L = y.shape
    nt = L // tm
    return pl.pallas_call(
        _bn_relu_kernel,
        out_shape=jax.ShapeDtypeStruct((Cout, L), jnp.float32),
        grid_spec=pltpu.PrefetchScalarGridSpec(
            num_scalar_prefetch=0,
            grid=(nt,),
            in_specs=[
                pl.BlockSpec((Cout, tm), lambda i: (0, i)),
                pl.BlockSpec((Cout, 1), lambda i: (0, 0)),
                pl.BlockSpec((Cout, 1), lambda i: (0, 0)),
            ],
            out_specs=pl.BlockSpec((Cout, tm), lambda i: (0, i)),
        ),
        compiler_params=pltpu.CompilerParams(
            dimension_semantics=("parallel",),
            vmem_limit_bytes=VMEM_LIMIT,
        ),
    )(y, scale_col, shift_col)


# --------------------------------- JAX glue -----------------------------------

def _polyphase_deconv_taps(w1):
    """ConvTranspose2d(k=4,s=2,p=0) weight (Cin, Cout, 4, 4) -> the 4 polyphase
    2x2-conv tap matrices over the 1-padded input, stacked as (4, 4*Cout, Cin):
      tap t = dy*2+dx ; output row = (py*2+px)*Cout + cout
      value = w1[cin, cout, 2*(1-dy)+py, 2*(1-dx)+px]."""
    cin, cout = w1.shape[0], w1.shape[1]
    w = w1.reshape(cin, cout, 2, 2, 2, 2)      # (ci, co, ky_hi, py, kx_hi, px)
    w = w[:, :, ::-1, :, ::-1, :]              # ky_hi -> dy, kx_hi -> dx
    w = w.transpose(2, 4, 3, 5, 1, 0)          # (dy, dx, py, px, co, ci)
    return w.reshape(4, 4 * cout, cin)


def _valid_mask(n, hg, wg, i_lo, i_hi, j_lo, j_hi):
    """(1, n*hg*wg) f32 mask over a padded-grid flat layout: 1 where the grid
    position is a valid conv output, 0 on boundary/garbage columns."""
    ii = jnp.arange(hg)
    jj = jnp.arange(wg)
    m2d = ((ii[:, None] >= i_lo) & (ii[:, None] < i_hi)
           & (jj[None, :] >= j_lo) & (jj[None, :] < j_hi)).astype(jnp.float32)
    return jnp.tile(m2d[None], (n, 1, 1)).reshape(1, n * hg * wg)


def _finish_stats(sums, ssqs, count, gamma, beta, n_phase=1):
    """Per-tile partial sums -> training-mode BN scale/shift (biased variance)."""
    s = jnp.sum(sums, axis=0)[:, 0]
    q = jnp.sum(ssqs, axis=0)[:, 0]
    c = s.shape[0] // n_phase
    s = s.reshape(n_phase, c).sum(axis=0)
    q = q.reshape(n_phase, c).sum(axis=0)
    mean = s / count
    var = q / count - mean * mean
    scale = gamma * lax.rsqrt(var + EPS)
    shift = beta - mean * scale
    return scale, shift


def basic_block_to_crop_forward(x, params):
    """x: [N, Cin, H, W] (NCHW) -> [N, Cout, 2H+2, 2W+2]."""
    N, Cin, H, W = x.shape
    w1, b1 = params["w1"], params["b1"]
    gamma1, beta1 = params["gamma1"], params["beta1"]
    w2 = params["w2"]
    gamma2, beta2 = params["gamma2"], params["beta2"]
    Cout = w1.shape[1]

    H1, W1 = H + 1, W + 1          # valid polyphase (2x2 conv) grid
    Hx, Wx = H + 2, W + 2          # 1-padded input grid (conv1 computed over all of it)
    Ho, Wo = 2 * H + 2, 2 * W + 2  # ConvTranspose output grid
    Hp, Wp = Ho + 2, Wo + 2        # 1-padded conv2 input grid
    M1, Mf1 = N * H1 * W1, N * Hx * Wx
    M2, Mf2 = N * Ho * Wo, N * Hp * Wp

    # ---- conv1: ConvTranspose2d(4, stride=2, pad=0) + bias, as 4-tap polyphase shift-conv ----
    xcm = jnp.pad(x.transpose(1, 0, 2, 3), ((0, 0), (0, 0), (1, 1), (1, 1)))
    xcm = xcm.reshape(Cin, Mf1).astype(jnp.bfloat16)                   # channel-major flat
    w1_taps = _polyphase_deconv_taps(w1).astype(jnp.bfloat16)          # (4, 4*Cout, Cin)
    b1col = jnp.tile(b1, 4).reshape(4 * Cout, 1).astype(jnp.float32)
    off1 = (0, 1, Wx, Wx + 1)
    mask1 = _valid_mask(N, Hx, Wx, 0, H1, 0, W1)
    y1p, sums1, ssqs1, _ = shift_conv(xcm, w1_taps, off1, b1col, mask1)

    # bn1 batch stats (per Cout channel, reduced over tiles + the 4 phases)
    scale1, shift1 = _finish_stats(sums1, ssqs1, 4.0 * M1, gamma1, beta1, n_phase=4)

    # phase interleave + bn1 affine + relu1 + zero pad (one fused XLA layout pass),
    # kept channel-major for the conv2 kernel
    t = y1p[:, :Mf1].reshape(2, 2, Cout, N, Hx, Wx)[:, :, :, :, :H1, :W1]
    t = t.transpose(2, 3, 4, 0, 5, 1).reshape(Cout, N, Ho, Wo)
    z1 = jnp.maximum(t.astype(jnp.float32) * scale1.reshape(-1, 1, 1, 1)
                     + shift1.reshape(-1, 1, 1, 1), 0.0)
    z1 = jnp.pad(z1, ((0, 0), (0, 0), (1, 1), (1, 1))).reshape(Cout, Mf2).astype(jnp.bfloat16)

    # ---- conv2: 3x3 / pad=1 / bias=False, as 9-tap shift-conv directly on z1 ----
    w2_taps = w2.transpose(2, 3, 0, 1).reshape(9, Cout, Cout).astype(jnp.bfloat16)
    off2 = tuple((dy - 1) * Wp + (dx - 1) for dy in range(3) for dx in range(3))
    mask2 = _valid_mask(N, Hp, Wp, 1, Ho + 1, 1, Wo + 1)
    y2p, sums2, ssqs2, tm2 = shift_conv(z1, w2_taps, off2, None, mask2)

    # ---- bn2 + relu2 (needs full-y2 stats, so one lane-dense elementwise pass) ----
    scale2, shift2 = _finish_stats(sums2, ssqs2, float(M2), gamma2, beta2, n_phase=1)
    z2p = bn_relu(y2p, scale2.reshape(Cout, 1), shift2.reshape(Cout, 1), tm2)

    # crop the padded-grid boundary garbage and go back to NCHW for the caller
    z2 = z2p[:, :Mf2].reshape(Cout, N, Hp, Wp)[:, :, 1:Ho + 1, 1:Wo + 1]
    return z2.transpose(1, 0, 2, 3)


# --------------------------- pure-JAX reference check --------------------------

def reference_forward(x, params):
    dn = ("NCHW", "OIHW", "NCHW")

    def bn_relu_ref(y, gamma, beta):
        mean = jnp.mean(y, axis=(0, 2, 3), keepdims=True)
        var = jnp.mean((y - mean) ** 2, axis=(0, 2, 3), keepdims=True)
        yn = (y - mean) / jnp.sqrt(var + EPS)
        return jnp.maximum(yn * gamma.reshape(1, -1, 1, 1) + beta.reshape(1, -1, 1, 1), 0.0)

    w1_conv = jnp.flip(params["w1"], axis=(2, 3)).transpose(1, 0, 2, 3)
    y1 = lax.conv_general_dilated(x, w1_conv, window_strides=(1, 1),
                                  padding=((3, 3), (3, 3)), lhs_dilation=(2, 2),
                                  dimension_numbers=dn)
    y1 = y1 + params["b1"].reshape(1, -1, 1, 1)
    z1 = bn_relu_ref(y1, params["gamma1"], params["beta1"])
    y2 = lax.conv_general_dilated(z1, params["w2"], window_strides=(1, 1),
                                  padding=((1, 1), (1, 1)), dimension_numbers=dn)
    return bn_relu_ref(y2, params["gamma2"], params["beta2"])


# ------------------------------------ main -------------------------------------

if __name__ == "__main__":
    N, Cin, Cout, H, W = 2, 4, 8, 16, 16
    key = jax.random.PRNGKey(0)
    k = jax.random.split(key, 7)

    params = {
        # ConvTranspose2d weight layout: (in_planes, out_planes, 4, 4), bias=True
        "w1": 0.1 * jax.random.normal(k[0], (Cin, Cout, 4, 4), jnp.float32),
        "b1": 0.1 * jax.random.normal(k[1], (Cout,), jnp.float32),
        "gamma1": 1.0 + 0.1 * jax.random.normal(k[2], (Cout,), jnp.float32),
        "beta1": 0.1 * jax.random.normal(k[3], (Cout,), jnp.float32),
        # Conv2d 3x3 weight layout: (out_planes, out_planes, 3, 3), bias=False
        "w2": 0.1 * jax.random.normal(k[4], (Cout, Cout, 3, 3), jnp.float32),
        "gamma2": 1.0 + 0.1 * jax.random.normal(k[5], (Cout,), jnp.float32),
        "beta2": 0.1 * jax.random.normal(k[6], (Cout,), jnp.float32),
    }
    x = jax.random.normal(key, (N, Cin, H, W), jnp.float32)

    fwd = jax.jit(basic_block_to_crop_forward)
    out = jax.block_until_ready(fwd(x, params))
    ref = jax.block_until_ready(reference_forward(x, params))

    assert out.shape == (N, Cout, 2 * H + 2, 2 * W + 2), out.shape
    # bf16 matmul operands / bf16 intermediates with f32 accumulation -> loosened tolerance
    assert jnp.allclose(out, ref, rtol=5e-2, atol=5e-2), float(jnp.max(jnp.abs(out - ref)))
    print("KERNEL_OK")
</pallas_src>

<mosaic_0001>
module attributes {stable_mosaic.version = 11 : i64} {
  func.func @kernel(%arg0: i32, %arg1: memref<4x128xbf16, #tpu.memory_space<vmem>>, %arg2: memref<4x128xbf16, #tpu.memory_space<vmem>>, %arg3: memref<4x32x4xbf16, #tpu.memory_space<vmem>>, %arg4: memref<32x1xf32, #tpu.memory_space<vmem>>, %arg5: memref<1x128xf32, #tpu.memory_space<vmem>>, %arg6: memref<32x128xbf16, #tpu.memory_space<vmem>>, %arg7: memref<1x32x1xf32, #tpu.memory_space<vmem>>, %arg8: memref<1x32x1xf32, #tpu.memory_space<vmem>>) attributes {dimension_semantics = [#tpu.dimension_semantics<parallel>], iteration_bounds = array<i64: 6>, scalar_prefetch = 0 : i64, scratch_operands = 0 : i64, tpu.core_type = #tpu.core_type<tc>, window_params = [{transform_indices = @transform_0, window_bounds = array<i64: 4, 128>}, {transform_indices = @transform_1, window_bounds = array<i64: 4, 128>}, {pipeline_mode = #tpu.pipeline_mode<synchronous>, transform_indices = @transform_2, window_bounds = array<i64: 4, 32, 4>}, {pipeline_mode = #tpu.pipeline_mode<synchronous>, transform_indices = @transform_3, window_bounds = array<i64: 32, 1>}, {transform_indices = @transform_4, window_bounds = array<i64: 1, 128>}, {transform_indices = @transform_5, window_bounds = array<i64: 32, 128>}, {transform_indices = @transform_6, window_bounds = array<i64: 1, 32, 1>}, {transform_indices = @transform_7, window_bounds = array<i64: 1, 32, 1>}]} {
    %c0 = arith.constant 0 : index
    %c0_0 = arith.constant 0 : index
    %0 = vector.load %arg1[%c0, %c0_0] : memref<4x128xbf16, #tpu.memory_space<vmem>>, vector<4x128xbf16>
    %c0_1 = arith.constant 0 : index
    %c0_2 = arith.constant 0 : index
    %1 = vector.load %arg2[%c0_1, %c0_2] : memref<4x128xbf16, #tpu.memory_space<vmem>>, vector<4x128xbf16>
    %2 = tpu.concatenate %0, %1 in 1 : vector<4x128xbf16>, vector<4x128xbf16> -> vector<4x256xbf16>
    %c0_3 = arith.constant 0 : index
    %c0_4 = arith.constant 0 : index
    %c0_5 = arith.constant 0 : index
    %3 = vector.load %arg3[%c0_3, %c0_4, %c0_5] : memref<4x32x4xbf16, #tpu.memory_space<vmem>>, vector<1x32x4xbf16>
    %4 = vector.shape_cast %3 : vector<1x32x4xbf16> to vector<32x4xbf16>
    %5 = vector.extract_strided_slice %2 {offsets = [0, 0], sizes = [4, 128], strides = [1, 1]} : vector<4x256xbf16> to vector<4x128xbf16>
    %cst = arith.constant dense<0.000000e+00> : vector<32x128xf32>
    %6 = tpu.matmul %4, %5, %cst {dimension_numbers = #tpu.dot_dimension_numbers<[1], [0], [0], [1], [0, 0, 1, 1], [], []>} : vector<32x4xbf16>, vector<4x128xbf16>, vector<32x128xf32> -> vector<32x128xf32>
    %c1 = arith.constant 1 : index
    %c0_6 = arith.constant 0 : index
    %c0_7 = arith.constant 0 : index
    %7 = vector.load %arg3[%c1, %c0_6, %c0_7] : memref<4x32x4xbf16, #tpu.memory_space<vmem>>, vector<1x32x4xbf16>
    %8 = vector.shape_cast %7 : vector<1x32x4xbf16> to vector<32x4xbf16>
    %9 = vector.extract_strided_slice %2 {offsets = [0, 1], sizes = [4, 128], strides = [1, 1]} : vector<4x256xbf16> to vector<4x128xbf16>
    %cst_8 = arith.constant dense<0.000000e+00> : vector<32x128xf32>
    %10 = tpu.matmul %8, %9, %cst_8 {dimension_numbers = #tpu.dot_dimension_numbers<[1], [0], [0], [1], [0, 0, 1, 1], [], []>} : vector<32x4xbf16>, vector<4x128xbf16>, vector<32x128xf32> -> vector<32x128xf32>
    %11 = arith.addf %6, %10 : vector<32x128xf32>
    %c2 = arith.constant 2 : index
    %c0_9 = arith.constant 0 : index
    %c0_10 = arith.constant 0 : index
    %12 = vector.load %arg3[%c2, %c0_9, %c0_10] : memref<4x32x4xbf16, #tpu.memory_space<vmem>>, vector<1x32x4xbf16>
    %13 = vector.shape_cast %12 : vector<1x32x4xbf16> to vector<32x4xbf16>
    %14 = vector.extract_strided_slice %2 {offsets = [0, 18], sizes = [4, 128], strides = [1, 1]} : vector<4x256xbf16> to vector<4x128xbf16>
    %cst_11 = arith.constant dense<0.000000e+00> : vector<32x128xf32>
    %15 = tpu.matmul %13, %14, %cst_11 {dimension_numbers = #tpu.dot_dimension_numbers<[1], [0], [0], [1], [0, 0, 1, 1], [], []>} : vector<32x4xbf16>, vector<4x128xbf16>, vector<32x128xf32> -> vector<32x128xf32>
    %16 = arith.addf %11, %15 : vector<32x128xf32>
    %c3 = arith.constant 3 : index
    %c0_12 = arith.constant 0 : index
    %c0_13 = arith.constant 0 : index
    %17 = vector.load %arg3[%c3, %c0_12, %c0_13] : memref<4x32x4xbf16, #tpu.memory_space<vmem>>, vector<1x32x4xbf16>
    %18 = vector.shape_cast %17 : vector<1x32x4xbf16> to vector<32x4xbf16>
    %19 = vector.extract_strided_slice %2 {offsets = [0, 19], sizes = [4, 128], strides = [1, 1]} : vector<4x256xbf16> to vector<4x128xbf16>
    %cst_14 = arith.constant dense<0.000000e+00> : vector<32x128xf32>
    %20 = tpu.matmul %18, %19, %cst_14 {dimension_numbers = #tpu.dot_dimension_numbers<[1], [0], [0], [1], [0, 0, 1, 1], [], []>} : vector<32x4xbf16>, vector<4x128xbf16>, vector<32x128xf32> -> vector<32x128xf32>
    %21 = arith.addf %16, %20 : vector<32x128xf32>
    %c0_15 = arith.constant 0 : index
    %c0_16 = arith.constant 0 : index
    %22 = vector.load %arg4[%c0_15, %c0_16] : memref<32x1xf32, #tpu.memory_space<vmem>>, vector<32x1xf32>
    %23 = vector.broadcast %22 : vector<32x1xf32> to vector<32x128xf32>
    %24 = arith.addf %21, %23 : vector<32x128xf32>
    %25 = arith.truncf %24 : vector<32x128xf32> to vector<32x128xbf16>
    %c0_17 = arith.constant 0 : index
    %c0_18 = arith.constant 0 : index
    %26 = vector.load %arg6[%c0_17, %c0_18] : memref<32x128xbf16, #tpu.memory_space<vmem>>, vector<32x128xbf16>
    tpu.vector_store %arg6[%c0_17, %c0_18], %25 {strides = array<i32>} : memref<32x128xbf16, #tpu.memory_space<vmem>>, vector<32x128xbf16>,
    %c0_19 = arith.constant 0 : index
    %c0_20 = arith.constant 0 : index
    %27 = vector.load %arg5[%c0_19, %c0_20] : memref<1x128xf32, #tpu.memory_space<vmem>>, vector<1x128xf32>
    %28 = vector.broadcast %27 : vector<1x128xf32> to vector<32x128xf32>
    %29 = arith.mulf %24, %28 : vector<32x128xf32>
    %cst_21 = arith.constant dense<0.000000e+00> : vector<32xf32>
    %30 = vector.multi_reduction <add>, %29, %cst_21 [1] : vector<32x128xf32> to vector<32xf32>
    %31 = vector.shape_cast %30 : vector<32xf32> to vector<32x1xf32>
    %c0_22 = arith.constant 0 : index
    %c0_23 = arith.constant 0 : index
    %c0_24 = arith.constant 0 : index
    %32 = vector.load %arg7[%c0_22, %c0_23, %c0_24] : memref<1x32x1xf32, #tpu.memory_space<vmem>>, vector<1x32x1xf32>
    %33 = vector.shape_cast %32 : vector<1x32x1xf32> to vector<32x1xf32>
    %34 = vector.shape_cast %31 : vector<32x1xf32> to vector<1x32x1xf32>
    tpu.vector_store %arg7[%c0_22, %c0_23, %c0_24], %34 {strides = array<i32>} : memref<1x32x1xf32, #tpu.memory_space<vmem>>, vector<1x32x1xf32>,
    %35 = arith.mulf %29, %24 : vector<32x128xf32>
    %cst_25 = arith.constant dense<0.000000e+00> : vector<32xf32>
    %36 = vector.multi_reduction <add>, %35, %cst_25 [1] : vector<32x128xf32> to vector<32xf32>
    %37 = vector.shape_cast %36 : vector<32xf32> to vector<32x1xf32>
    %c0_26 = arith.constant 0 : index
    %c0_27 = arith.constant 0 : index
    %c0_28 = arith.constant 0 : index
    %38 = vector.load %arg8[%c0_26, %c0_27, %c0_28] : memref<1x32x1xf32, #tpu.memory_space<vmem>>, vector<1x32x1xf32>
    %39 = vector.shape_cast %38 : vector<1x32x1xf32> to vector<32x1xf32>
    %40 = vector.shape_cast %37 : vector<32x1xf32> to vector<1x32x1xf32>
    tpu.vector_store %arg8[%c0_26, %c0_27, %c0_28], %40 {strides = array<i32>} : memref<1x32x1xf32, #tpu.memory_space<vmem>>, vector<1x32x1xf32>,
    return
  }
  func.func @transform_0(%arg0: i32) -> (i32, i32) {
    %c0_i32 = arith.constant 0 : i32
    %c0_i32_0 = arith.constant 0 : i32
    return %c0_i32, %arg0 : i32, i32
  }
  func.func @transform_1(%arg0: i32) -> (i32, i32) {
    %c1_i32 = arith.constant 1 : i32
    %0 = arith.addi %arg0, %c1_i32 : i32
    %c0_i32 = arith.constant 0 : i32
    %c0_i32_0 = arith.constant 0 : i32
    return %c0_i32, %0 : i32, i32
  }
  func.func @transform_2(%arg0: i32) -> (i32, i32, i32) {
    %c0_i32 = arith.constant 0 : i32
    %c0_i32_0 = arith.constant 0 : i32
    %c0_i32_1 = arith.constant 0 : i32
    %c0_i32_2 = arith.constant 0 : i32
    return %c0_i32, %c0_i32_0, %c0_i32_1 : i32, i32, i32
  }
  func.func @transform_3(%arg0: i32) -> (i32, i32) {
    %c0_i32 = arith.constant 0 : i32
    %c0_i32_0 = arith.constant 0 : i32
    %c0_i32_1 = arith.constant 0 : i32
    return %c0_i32, %c0_i32_0 : i32, i32
  }
  func.func @transform_4(%arg0: i32) -> (i32, i32) {
    %c0_i32 = arith.constant 0 : i32
    %c0_i32_0 = arith.constant 0 : i32
    return %c0_i32, %arg0 : i32, i32
  }
  func.func @transform_5(%arg0: i32) -> (i32, i32) {
    %c0_i32 = arith.constant 0 : i32
    %c0_i32_0 = arith.constant 0 : i32
    return %c0_i32, %arg0 : i32, i32
  }
  func.func @transform_6(%arg0: i32) -> (i32, i32, i32) {
    %c0_i32 = arith.constant 0 : i32
    %c0_i32_0 = arith.constant 0 : i32
    %c0_i32_1 = arith.constant 0 : i32
    return %arg0, %c0_i32, %c0_i32_0 : i32, i32, i32
  }
  func.func @transform_7(%arg0: i32) -> (i32, i32, i32) {
    %c0_i32 = arith.constant 0 : i32
    %c0_i32_0 = arith.constant 0 : i32
    %c0_i32_1 = arith.constant 0 : i32
    return %arg0, %c0_i32, %c0_i32_0 : i32, i32, i32
  }
}

module attributes {stable_mosaic.version = 11 : i64} {
  func.func @kernel(%arg0: i32, %arg1: memref<8x512xbf16, #tpu.memory_space<vmem>>, %arg2: memref<8x512xbf16, #tpu.memory_space<vmem>>, %arg3: memref<9x8x8xbf16, #tpu.memory_space<vmem>>, %arg4: memref<1x512xf32, #tpu.memory_space<vmem>>, %arg5: memref<8x512xbf16, #tpu.memory_space<vmem>>, %arg6: memref<1x8x1xf32, #tpu.memory_space<vmem>>, %arg7: memref<1x8x1xf32, #tpu.memory_space<vmem>>) attributes {dimension_semantics = [#tpu.dimension_semantics<parallel>], iteration_bounds = array<i64: 6>, scalar_prefetch = 0 : i64, scratch_operands = 0 : i64, tpu.core_type = #tpu.core_type<tc>, window_params = [{transform_indices = @transform_0, window_bounds = array<i64: 8, 512>}, {transform_indices = @transform_1, window_bounds = array<i64: 8, 512>}, {pipeline_mode = #tpu.pipeline_mode<synchronous>, transform_indices = @transform_2, window_bounds = array<i64: 9, 8, 8>}, {transform_indices = @transform_3, window_bounds = array<i64: 1, 512>}, {transform_indices = @transform_4, window_bounds = array<i64: 8, 512>}, {transform_indices = @transform_5, window_bounds = array<i64: 1, 8, 1>}, {transform_indices = @transform_6, window_bounds = array<i64: 1, 8, 1>}]} {
    %c0 = arith.constant 0 : index
    %c0_0 = arith.constant 0 : index
    %0 = vector.load %arg1[%c0, %c0_0] : memref<8x512xbf16, #tpu.memory_space<vmem>>, vector<8x512xbf16>
    %c0_1 = arith.constant 0 : index
    %c0_2 = arith.constant 0 : index
    %1 = vector.load %arg2[%c0_1, %c0_2] : memref<8x512xbf16, #tpu.memory_space<vmem>>, vector<8x512xbf16>
    %2 = tpu.concatenate %0, %1 in 1 : vector<8x512xbf16>, vector<8x512xbf16> -> vector<8x1024xbf16>
    %c0_3 = arith.constant 0 : index
    %c0_4 = arith.constant 0 : index
    %c0_5 = arith.constant 0 : index
    %3 = vector.load %arg3[%c0_3, %c0_4, %c0_5] : memref<9x8x8xbf16, #tpu.memory_space<vmem>>, vector<1x8x8xbf16>
    %4 = vector.shape_cast %3 : vector<1x8x8xbf16> to vector<8x8xbf16>
    %5 = vector.extract_strided_slice %2 {offsets = [0, 0], sizes = [8, 512], strides = [1, 1]} : vector<8x1024xbf16> to vector<8x512xbf16>
    %cst = arith.constant dense<0.000000e+00> : vector<8x512xf32>
    %6 = tpu.matmul %4, %5, %cst {dimension_numbers = #tpu.dot_dimension_numbers<[1], [0], [0], [1], [0, 0, 1, 1], [], []>} : vector<8x8xbf16>, vector<8x512xbf16>, vector<8x512xf32> -> vector<8x512xf32>
    %c1 = arith.constant 1 : index
    %c0_6 = arith.constant 0 : index
    %c0_7 = arith.constant 0 : index
    %7 = vector.load %arg3[%c1, %c0_6, %c0_7] : memref<9x8x8xbf16, #tpu.memory_space<vmem>>, vector<1x8x8xbf16>
    %8 = vector.shape_cast %7 : vector<1x8x8xbf16> to vector<8x8xbf16>
    %9 = vector.extract_strided_slice %2 {offsets = [0, 1], sizes = [8, 512], strides = [1, 1]} : vector<8x1024xbf16> to vector<8x512xbf16>
    %cst_8 = arith.constant dense<0.000000e+00> : vector<8x512xf32>
    %10 = tpu.matmul %8, %9, %cst_8 {dimension_numbers = #tpu.dot_dimension_numbers<[1], [0], [0], [1], [0, 0, 1, 1], [], []>} : vector<8x8xbf16>, vector<8x512xbf16>, vector<8x512xf32> -> vector<8x512xf32>
    %11 = arith.addf %6, %10 : vector<8x512xf32>
    %c2 = arith.constant 2 : index
    %c0_9 = arith.constant 0 : index
    %c0_10 = arith.constant 0 : index
    %12 = vector.load %arg3[%c2, %c0_9, %c0_10] : memref<9x8x8xbf16, #tpu.memory_space<vmem>>, vector<1x8x8xbf16>
    %13 = vector.shape_cast %12 : vector<1x8x8xbf16> to vector<8x8xbf16>
    %14 = vector.extract_strided_slice %2 {offsets = [0, 2], sizes = [8, 512], strides = [1, 1]} : vector<8x1024xbf16> to vector<8x512xbf16>
    %cst_11 = arith.constant dense<0.000000e+00> : vector<8x512xf32>
    %15 = tpu.matmul %13, %14, %cst_11 {dimension_numbers = #tpu.dot_dimension_numbers<[1], [0], [0], [1], [0, 0, 1, 1], [], []>} : vector<8x8xbf16>, vector<8x512xbf16>, vector<8x512xf32> -> vector<8x512xf32>
    %16 = arith.addf %11, %15 : vector<8x512xf32>
    %c3 = arith.constant 3 : index
    %c0_12 = arith.constant 0 : index
    %c0_13 = arith.constant 0 : index
    %17 = vector.load %arg3[%c3, %c0_12, %c0_13] : memref<9x8x8xbf16, #tpu.memory_space<vmem>>, vector<1x8x8xbf16>
    %18 = vector.shape_cast %17 : vector<1x8x8xbf16> to vector<8x8xbf16>
    %19 = vector.extract_strided_slice %2 {offsets = [0, 36], sizes = [8, 512], strides = [1, 1]} : vector<8x1024xbf16> to vector<8x512xbf16>
    %cst_14 = arith.constant dense<0.000000e+00> : vector<8x512xf32>
    %20 = tpu.matmul %18, %19, %cst_14 {dimension_numbers = #tpu.dot_dimension_numbers<[1], [0], [0], [1], [0, 0, 1, 1], [], []>} : vector<8x8xbf16>, vector<8x512xbf16>, vector<8x512xf32> -> vector<8x512xf32>
    %21 = arith.addf %16, %20 : vector<8x512xf32>
    %c4 = arith.constant 4 : index
    %c0_15 = arith.constant 0 : index
    %c0_16 = arith.constant 0 : index
    %22 = vector.load %arg3[%c4, %c0_15, %c0_16] : memref<9x8x8xbf16, #tpu.memory_space<vmem>>, vector<1x8x8xbf16>
    %23 = vector.shape_cast %22 : vector<1x8x8xbf16> to vector<8x8xbf16>
    %24 = vector.extract_strided_slice %2 {offsets = [0, 37], sizes = [8, 512], strides = [1, 1]} : vector<8x1024xbf16> to vector<8x512xbf16>
    %cst_17 = arith.constant dense<0.000000e+00> : vector<8x512xf32>
    %25 = tpu.matmul %23, %24, %cst_17 {dimension_numbers = #tpu.dot_dimension_numbers<[1], [0], [0], [1], [0, 0, 1, 1], [], []>} : vector<8x8xbf16>, vector<8x512xbf16>, vector<8x512xf32> -> vector<8x512xf32>
    %26 = arith.addf %21, %25 : vector<8x512xf32>
    %c5 = arith.constant 5 : index
    %c0_18 = arith.constant 0 : index
    %c0_19 = arith.constant 0 : index
    %27 = vector.load %arg3[%c5, %c0_18, %c0_19] : memref<9x8x8xbf16, #tpu.memory_space<vmem>>, vector<1x8x8xbf16>
    %28 = vector.shape_cast %27 : vector<1x8x8xbf16> to vector<8x8xbf16>
    %29 = vector.extract_strided_slice %2 {offsets = [0, 38], sizes = [8, 512], strides = [1, 1]} : vector<8x1024xbf16> to vector<8x512xbf16>
    %cst_20 = arith.constant dense<0.000000e+00> : vector<8x512xf32>
    %30 = tpu.matmul %28, %29, %cst_20 {dimension_numbers = #tpu.dot_dimension_numbers<[1], [0], [0], [1], [0, 0, 1, 1], [], []>} : vector<8x8xbf16>, vector<8x512xbf16>, vector<8x512xf32> -> vector<8x512xf32>
    %31 = arith.addf %26, %30 : vector<8x512xf32>
    %c6 = arith.constant 6 : index
    %c0_21 = arith.constant 0 : index
    %c0_22 = arith.constant 0 : index
    %32 = vector.load %arg3[%c6, %c0_21, %c0_22] : memref<9x8x8xbf16, #tpu.memory_space<vmem>>, vector<1x8x8xbf16>
    %33 = vector.shape_cast %32 : vector<1x8x8xbf16> to vector<8x8xbf16>
    %34 = vector.extract_strided_slice %2 {offsets = [0, 72], sizes = [8, 512], strides = [1, 1]} : vector<8x1024xbf16> to vector<8x512xbf16>
    %cst_23 = arith.constant dense<0.000000e+00> : vector<8x512xf32>
    %35 = tpu.matmul %33, %34, %cst_23 {dimension_numbers = #tpu.dot_dimension_numbers<[1], [0], [0], [1], [0, 0, 1, 1], [], []>} : vector<8x8xbf16>, vector<8x512xbf16>, vector<8x512xf32> -> vector<8x512xf32>
    %36 = arith.addf %31, %35 : vector<8x512xf32>
    %c7 = arith.constant 7 : index
    %c0_24 = arith.constant 0 : index
    %c0_25 = arith.constant 0 : index
    %37 = vector.load %arg3[%c7, %c0_24, %c0_25] : memref<9x8x8xbf16, #tpu.memory_space<vmem>>, vector<1x8x8xbf16>
    %38 = vector.shape_cast %37 : vector<1x8x8xbf16> to vector<8x8xbf16>
    %39 = vector.extract_strided_slice %2 {offsets = [0, 73], sizes = [8, 512], strides = [1, 1]} : vector<8x1024xbf16> to vector<8x512xbf16>
    %cst_26 = arith.constant dense<0.000000e+00> : vector<8x512xf32>
    %40 = tpu.matmul %38, %39, %cst_26 {dimension_numbers = #tpu.dot_dimension_numbers<[1], [0], [0], [1], [0, 0, 1, 1], [], []>} : vector<8x8xbf16>, vector<8x512xbf16>, vector<8x512xf32> -> vector<8x512xf32>
    %41 = arith.addf %36, %40 : vector<8x512xf32>
    %c8 = arith.constant 8 : index
    %c0_27 = arith.constant 0 : index
    %c0_28 = arith.constant 0 : index
    %42 = vector.load %arg3[%c8, %c0_27, %c0_28] : memref<9x8x8xbf16, #tpu.memory_space<vmem>>, vector<1x8x8xbf16>
    %43 = vector.shape_cast %42 : vector<1x8x8xbf16> to vector<8x8xbf16>
    %44 = vector.extract_strided_slice %2 {offsets = [0, 74], sizes = [8, 512], strides = [1, 1]} : vector<8x1024xbf16> to vector<8x512xbf16>
    %cst_29 = arith.constant dense<0.000000e+00> : vector<8x512xf32>
    %45 = tpu.matmul %43, %44, %cst_29 {dimension_numbers = #tpu.dot_dimension_numbers<[1], [0], [0], [1], [0, 0, 1, 1], [], []>} : vector<8x8xbf16>, vector<8x512xbf16>, vector<8x512xf32> -> vector<8x512xf32>
    %46 = arith.addf %41, %45 : vector<8x512xf32>
    %47 = arith.truncf %46 : vector<8x512xf32> to vector<8x512xbf16>
    %c0_30 = arith.constant 0 : index
    %c0_31 = arith.constant 0 : index
    %48 = vector.load %arg5[%c0_30, %c0_31] : memref<8x512xbf16, #tpu.memory_space<vmem>>, vector<8x512xbf16>
    tpu.vector_store %arg5[%c0_30, %c0_31], %47 {strides = array<i32>} : memref<8x512xbf16, #tpu.memory_space<vmem>>, vector<8x512xbf16>,
    %c0_32 = arith.constant 0 : index
    %c0_33 = arith.constant 0 : index
    %49 = vector.load %arg4[%c0_32, %c0_33] : memref<1x512xf32, #tpu.memory_space<vmem>>, vector<1x512xf32>
    %50 = vector.broadcast %49 : vector<1x512xf32> to vector<8x512xf32>
    %51 = arith.mulf %46, %50 : vector<8x512xf32>
    %cst_34 = arith.constant dense<0.000000e+00> : vector<8xf32>
    %52 = vector.multi_reduction <add>, %51, %cst_34 [1] : vector<8x512xf32> to vector<8xf32>
    %53 = vector.shape_cast %52 : vector<8xf32> to vector<8x1xf32>
    %c0_35 = arith.constant 0 : index
    %c0_36 = arith.constant 0 : index
    %c0_37 = arith.constant 0 : index
    %54 = vector.load %arg6[%c0_35, %c0_36, %c0_37] : memref<1x8x1xf32, #tpu.memory_space<vmem>>, vector<1x8x1xf32>
    %55 = vector.shape_cast %54 : vector<1x8x1xf32> to vector<8x1xf32>
    %56 = vector.shape_cast %53 : vector<8x1xf32> to vector<1x8x1xf32>
    tpu.vector_store %arg6[%c0_35, %c0_36, %c0_37], %56 {strides = array<i32>} : memref<1x8x1xf32, #tpu.memory_space<vmem>>, vector<1x8x1xf32>,
    %57 = arith.mulf %51, %46 : vector<8x512xf32>
    %cst_38 = arith.constant dense<0.000000e+00> : vector<8xf32>
    %58 = vector.multi_reduction <add>, %57, %cst_38 [1] : vector<8x512xf32> to vector<8xf32>
    %59 = vector.shape_cast %58 : vector<8xf32> to vector<8x1xf32>
    %c0_39 = arith.constant 0 : index
    %c0_40 = arith.constant 0 : index
    %c0_41 = arith.constant 0 : index
    %60 = vector.load %arg7[%c0_39, %c0_40, %c0_41] : memref<1x8x1xf32, #tpu.memory_space<vmem>>, vector<1x8x1xf32>
    %61 = vector.shape_cast %60 : vector<1x8x1xf32> to vector<8x1xf32>
    %62 = vector.shape_cast %59 : vector<8x1xf32> to vector<1x8x1xf32>
    tpu.vector_store %arg7[%c0_39, %c0_40, %c0_41], %62 {strides = array<i32>} : memref<1x8x1xf32, #tpu.memory_space<vmem>>, vector<1x8x1xf32>,
    return
  }
  func.func @transform_0(%arg0: i32) -> (i32, i32) {
    %c0_i32 = arith.constant 0 : i32
    %c0_i32_0 = arith.constant 0 : i32
    return %c0_i32, %arg0 : i32, i32
  }
  func.func @transform_1(%arg0: i32) -> (i32, i32) {
    %c1_i32 = arith.constant 1 : i32
    %0 = arith.addi %arg0, %c1_i32 : i32
    %c0_i32 = arith.constant 0 : i32
    %c0_i32_0 = arith.constant 0 : i32
    return %c0_i32, %0 : i32, i32
  }
  func.func @transform_2(%arg0: i32) -> (i32, i32, i32) {
    %c0_i32 = arith.constant 0 : i32
    %c0_i32_0 = arith.constant 0 : i32
    %c0_i32_1 = arith.constant 0 : i32
    %c0_i32_2 = arith.constant 0 : i32
    return %c0_i32, %c0_i32_0, %c0_i32_1 : i32, i32, i32
  }
  func.func @transform_3(%arg0: i32) -> (i32, i32) {
    %c0_i32 = arith.constant 0 : i32
    %c0_i32_0 = arith.constant 0 : i32
    return %c0_i32, %arg0 : i32, i32
  }
  func.func @transform_4(%arg0: i32) -> (i32, i32) {
    %c0_i32 = arith.constant 0 : i32
    %c0_i32_0 = arith.constant 0 : i32
    return %c0_i32, %arg0 : i32, i32
  }
  func.func @transform_5(%arg0: i32) -> (i32, i32, i32) {
    %c0_i32 = arith.constant 0 : i32
    %c0_i32_0 = arith.constant 0 : i32
    %c0_i32_1 = arith.constant 0 : i32
    return %arg0, %c0_i32, %c0_i32_0 : i32, i32, i32
  }
  func.func @transform_6(%arg0: i32) -> (i32, i32, i32) {
    %c0_i32 = arith.constant 0 : i32
    %c0_i32_0 = arith.constant 0 : i32
    %c0_i32_1 = arith.constant 0 : i32
    return %arg0, %c0_i32, %c0_i32_0 : i32, i32, i32
  }
}

module attributes {stable_mosaic.version = 11 : i64} {
  func.func @_bn_relu_kernel(%arg0: i32, %arg1: memref<8x512xbf16, #tpu.memory_space<vmem>>, %arg2: memref<8x1xf32, #tpu.memory_space<vmem>>, %arg3: memref<8x1xf32, #tpu.memory_space<vmem>>, %arg4: memref<8x512xf32, #tpu.memory_space<vmem>>) attributes {dimension_semantics = [#tpu.dimension_semantics<parallel>], iteration_bounds = array<i64: 6>, scalar_prefetch = 0 : i64, scratch_operands = 0 : i64, tpu.core_type = #tpu.core_type<tc>, window_params = [{transform_indices = @transform_0, window_bounds = array<i64: 8, 512>}, {pipeline_mode = #tpu.pipeline_mode<synchronous>, transform_indices = @transform_1, window_bounds = array<i64: 8, 1>}, {pipeline_mode = #tpu.pipeline_mode<synchronous>, transform_indices = @transform_2, window_bounds = array<i64: 8, 1>}, {transform_indices = @transform_3, window_bounds = array<i64: 8, 512>}]} {
    %c0 = arith.constant 0 : index
    %c0_0 = arith.constant 0 : index
    %0 = vector.load %arg1[%c0, %c0_0] : memref<8x512xbf16, #tpu.memory_space<vmem>>, vector<8x512xbf16>
    %1 = arith.extf %0 : vector<8x512xbf16> to vector<8x512xf32>
    %c0_1 = arith.constant 0 : index
    %c0_2 = arith.constant 0 : index
    %2 = vector.load %arg2[%c0_1, %c0_2] : memref<8x1xf32, #tpu.memory_space<vmem>>, vector<8x1xf32>
    %3 = vector.broadcast %2 : vector<8x1xf32> to vector<8x512xf32>
    %4 = arith.mulf %1, %3 : vector<8x512xf32>
    %c0_3 = arith.constant 0 : index
    %c0_4 = arith.constant 0 : index
    %5 = vector.load %arg3[%c0_3, %c0_4] : memref<8x1xf32, #tpu.memory_space<vmem>>, vector<8x1xf32>
    %6 = vector.broadcast %5 : vector<8x1xf32> to vector<8x512xf32>
    %7 = arith.addf %4, %6 : vector<8x512xf32>
    %cst = arith.constant 0.000000e+00 : f32
    %8 = vector.broadcast %cst : f32 to vector<8x512xf32>
    %9 = arith.maximumf %7, %8 : vector<8x512xf32>
    %c0_5 = arith.constant 0 : index
    %c0_6 = arith.constant 0 : index
    %10 = vector.load %arg4[%c0_5, %c0_6] : memref<8x512xf32, #tpu.memory_space<vmem>>, vector<8x512xf32>
    tpu.vector_store %arg4[%c0_5, %c0_6], %9 {strides = array<i32>} : memref<8x512xf32, #tpu.memory_space<vmem>>, vector<8x512xf32>,
    return
  }
  func.func @transform_0(%arg0: i32) -> (i32, i32) {
    %c0_i32 = arith.constant 0 : i32
    %c0_i32_0 = arith.constant 0 : i32
    return %c0_i32, %arg0 : i32, i32
  }
  func.func @transform_1(%arg0: i32) -> (i32, i32) {
    %c0_i32 = arith.constant 0 : i32
    %c0_i32_0 = arith.constant 0 : i32
    %c0_i32_1 = arith.constant 0 : i32
    return %c0_i32, %c0_i32_0 : i32, i32
  }
  func.func @transform_2(%arg0: i32) -> (i32, i32) {
    %c0_i32 = arith.constant 0 : i32
    %c0_i32_0 = arith.constant 0 : i32
    %c0_i32_1 = arith.constant 0 : i32
    return %c0_i32, %c0_i32_0 : i32, i32
  }
  func.func @transform_3(%arg0: i32) -> (i32, i32) {
    %c0_i32 = arith.constant 0 : i32
    %c0_i32_0 = arith.constant 0 : i32
    return %c0_i32, %arg0 : i32, i32
  }
}

</mosaic_0001>

<llo_original>
// kernel: tile.20
$region0: #{tile.20}
  #allocation0 [shape = 's32[1]{0}', space=sflag, size = 0x4, scoped, tag = 'scoped memory for tile.20']
  %s0 = inlined_call_operand.vmem [shape: f32[18,18], index: 0, kind: input, shape index: {}]
  %s1 = inlined_call_operand.vmem [shape: f32[2,1,1,18,1,18], index: 1, kind: output, shape index: {}]
  // Predicated region
  $region2: #{tile.20} parent=0 // pred_check
    _
  $region3: #{tile.20} parent=0 // pred_check_branch
    %3 = sbr.rel (0) target = $region5
  $region4: #{tile.20} parent=0 // pred_region
    _
  $region5: #{tile.20} parent=0 // pred_fallthru
    _
  %v4 = vld [vmem:[%s0] sm:$0xff]
  %5 = vst [vmem:[%s1] sm:$0xff] %v4
  %s6 = scalar_lea.vmem %s1, 24
  %7 = vst [vmem:[%s6] sm:$0xff] %v4
  %s8 = scalar_lea.vmem %s0, 8
  %v9 = vld [vmem:[%s8] sm:$0xff]
  %s10 = scalar_lea.vmem %s1, 8
  %11 = vst [vmem:[%s10] sm:$0xff] %v9
  %s12 = scalar_lea.vmem %s1, 32
  %13 = vst [vmem:[%s12] sm:$0xff] %v9
  %s14 = scalar_lea.vmem %s0, 16
  %v15 = vld [vmem:[%s14] sm:$0xff]
  %s16 = scalar_lea.vmem %s1, 16
  %17 = vst [vmem:[%s16] sm:$0xff] %v15
  %s18 = scalar_lea.vmem %s1, 40
  %19 = vst [vmem:[%s18] sm:$0xff] %v15

// kernel: tile.21
$region0: #{tile.21}
  %s0 = inlined_call_operand.vmem [shape: f32[2,1,1,18,1,18], index: 0, kind: input, shape index: {}]
  %s1 = inlined_call_operand.vmem [shape: f32[1,648], index: 1, kind: output, shape index: {}]
  $region1: #{tile.21} parent=0
    #allocation0 [shape = 'u8[24576]{0}', space=vmem, size = 0x6000, scoped, tag = 'scoped mem for output reshape']
    %v2 = vld [vmem:[%s0] sm:$0x1]
    %vm3 = vcmask 146432
    %4 = vst.msk [vmem:[#allocation0] sm:$0x1] %vm3, %v2
    %s5 = scalar_lea.vmem %s0, 7
    %v6 = vld [vmem:[%s5] sm:$0x1]
    %s7 = scalar_lea.vmem %s0, 7
    %v8 = vld [vmem:[%s7] sm:$0x1]
    %vm9 = vcmask 15360
    %v10 = vsel %vm9, %v8, %v6
    %11 = vrot.lane.b32.xlu0 %v10, 126
    %v12 = vpop.permute.xlu0 %11
    %vm13 = vcmask 130048
    %s14 = scalar_lea.vmem [#allocation0], 8
    %15 = vst.msk [vmem:[%s14] sm:$0x1] %vm13, %v12
    %vm16 = vcmask 1048560
    %17 = vst.msk [vmem:[#allocation0] sm:$0x1] %vm16, %v12
    %s18 = scalar_lea.vmem %s0, 14
    %v19 = vld [vmem:[%s18] sm:$0x1]
    %s20 = scalar_lea.vmem %s0, 14
    %v21 = vld [vmem:[%s20] sm:$0x1]
    %vm22 = vcmask 31744
    %v23 = vsel %vm22, %v21, %v19
    %24 = vrot.lane.b32.xlu0 %v23, 124
    %v25 = vpop.permute.xlu0 %24
    %vm26 = vcmask 113664
    %s27 = scalar_lea.vmem [#allocation0], 16
    %28 = vst.msk [vmem:[%s27] sm:$0x1] %vm26, %v25
    %vm29 = vcmask 1048544
    %s30 = scalar_lea.vmem [#allocation0], 8
    %31 = vst.msk [vmem:[%s30] sm:$0x1] %vm29, %v25
    %s32 = scalar_lea.vmem %s0, 27
    %v33 = vld [vmem:[%s32] sm:$0x1]
    %s34 = scalar_lea.vmem %s0, 27
    %v35 = vld [vmem:[%s34] sm:$0x1]
    %vm36 = vcmask 48128
    %v37 = vsel %vm36, %v35, %v33
    %38 = vrot.lane.b32.xlu0 %v37, 122
    %v39 = vpop.permute.xlu0 %38
    %vm40 = vcmask 97280
    %s41 = scalar_lea.vmem [#allocation0], 24
    %42 = vst.msk [vmem:[%s41] sm:$0x1] %vm40, %v39
    %vm43 = vcmask 1048528
    %s44 = scalar_lea.vmem [#allocation0], 16
    %45 = vst.msk [vmem:[%s44] sm:$0x1] %vm43, %v39
    %s46 = scalar_lea.vmem %s0, 34
    %v47 = vld [vmem:[%s46] sm:$0x1]
    %s48 = scalar_lea.vmem %s0, 34
    %v49 = vld [vmem:[%s48] sm:$0x1]
    %vm50 = vcmask 64512
    %v51 = vsel %vm50, %v49, %v47
    %52 = vrot.lane.b32.xlu0 %v51, 120
    %v53 = vpop.permute.xlu0 %52
    %vm54 = vcmask 80896
    %s55 = scalar_lea.vmem [#allocation0], 32
    %56 = vst.msk [vmem:[%s55] sm:$0x1] %vm54, %v53
    %vm57 = vcmask 1048512
    %s58 = scalar_lea.vmem [#allocation0], 24
    %59 = vst.msk [vmem:[%s58] sm:$0x1] %vm57, %v53
    %s60 = scalar_lea.vmem %s0, 41
    %v61 = vld [vmem:[%s60] sm:$0x1]
    %s62 = scalar_lea.vmem %s0, 41
    %v63 = vld [vmem:[%s62] sm:$0x1]
    %vm64 = vcmask 80896
    %v65 = vsel %vm64, %v63, %v61
    %66 = vrot.lane.b32.xlu0 %v65, 118
    %v67 = vpop.permute.xlu0 %66
    %vm68 = vcmask 64512
    %s69 = scalar_lea.vmem [#allocation0], 40
    %70 = vst.msk [vmem:[%s69] sm:$0x1] %vm68, %v67
    %vm71 = vcmask 1048496
    %s72 = scalar_lea.vmem [#allocation0], 32
    %73 = vst.msk [vmem:[%s72] sm:$0x1] %vm71, %v67
    %s74 = scalar_lea.vmem %s0, 6
    %v75 = vld [vmem:[%s74] sm:$0x1]
    %76 = vrot.lane.b32.xlu0 %v75, 108
    %v77 = vpop.permute.xlu0 %76
    %vm78 = vcmask 1032032
    %79 = vst.msk [vmem:[#allocation0] sm:$0x1] %vm78, %v77
    %s80 = scalar_lea.vmem %s0, 13
    %v81 = vld [vmem:[%s80] sm:$0x1]
    %82 = vrot.lane.b32.xlu0 %v81, 106
    %v83 = vpop.permute.xlu0 %82
    %vm84 = vcmask 1015632
    %s85 = scalar_lea.vmem [#allocation0], 8
    %86 = vst.msk [vmem:[%s85] sm:$0x1] %vm84, %v83
    %s87 = scalar_lea.vmem %s0, 26
    %v88 = vld [vmem:[%s87] sm:$0x1]
    %89 = vrot.lane.b32.xlu0 %v88, 104
    %v90 = vpop.permute.xlu0 %89
    %vm91 = vcmask 999232
    %s92 = scalar_lea.vmem [#allocation0], 16
    %93 = vst.msk [vmem:[%s92] sm:$0x1] %vm91, %v90
    %s94 = scalar_lea.vmem %s0, 33
    %v95 = vld [vmem:[%s94] sm:$0x1]
    %96 = vrot.lane.b32.xlu0 %v95, 102
    %v97 = vpop.permute.xlu0 %96
    %vm98 = vcmask 982832
    %s99 = scalar_lea.vmem [#allocation0], 24
    %100 = vst.msk [vmem:[%s99] sm:$0x1] %vm98, %v97
    %s101 = scalar_lea.vmem %s0, 40
    %v102 = vld [vmem:[%s101] sm:$0x1]
    %103 = vrot.lane.b32.xlu0 %v102, 100
    %v104 = vpop.permute.xlu0 %103
    %vm105 = vcmask 966432
    %s106 = scalar_lea.vmem [#allocation0], 32
    %107 = vst.msk [vmem:[%s106] sm:$0x1] %vm105, %v104
    %s108 = scalar_lea.vmem %s0, 5
    %v109 = vld [vmem:[%s108] sm:$0x1]
    %110 = vrot.lane.b32.xlu0 %v109, 90
    %v111 = vpop.permute.xlu0 %110
    %vm112 = vcmask 884432
    %113 = vst.msk [vmem:[#allocation0] sm:$0x1] %vm112, %v111
    %s114 = scalar_lea.vmem %s0, 12
    %v115 = vld [vmem:[%s114] sm:$0x1]
    %116 = vrot.lane.b32.xlu0 %v115, 88
    %v117 = vpop.permute.xlu0 %116
    %vm118 = vcmask 868032
    %s119 = scalar_lea.vmem [#allocation0], 8
    %120 = vst.msk [vmem:[%s119] sm:$0x1] %vm118, %v117
    %s121 = scalar_lea.vmem %s0, 25
    %v122 = vld [vmem:[%s121] sm:$0x1]
    %123 = vrot.lane.b32.xlu0 %v122, 86
    %v124 = vpop.permute.xlu0 %123
    %vm125 = vcmask 851632
    %s126 = scalar_lea.vmem [#allocation0], 16
    %127 = vst.msk [vmem:[%s126] sm:$0x1] %vm125, %v124
    %s128 = scalar_lea.vmem %s0, 32
    %v129 = vld [vmem:[%s128] sm:$0x1]
    %130 = vrot.lane.b32.xlu0 %v129, 84
    %v131 = vpop.permute.xlu0 %130
    %vm132 = vcmask 835232
    %s133 = scalar_lea.vmem [#allocation0], 24
    %134 = vst.msk [vmem:[%s133] sm:$0x1] %vm132, %v131
    %s135 = scalar_lea.vmem %s0, 39
    %v136 = vld [vmem:[%s135] sm:$0x1]
    %137 = vrot.lane.b32.xlu0 %v136, 82
    %v138 = vpop.permute.xlu0 %137
    %vm139 = vcmask 818832
    %s140 = scalar_lea.vmem [#allocation0], 32
    %141 = vst.msk [vmem:[%s140] sm:$0x1] %vm139, %v138
    %s142 = scalar_lea.vmem %s0, 4
    %v143 = vld [vmem:[%s142] sm:$0x1]
    %144 = vrot.lane.b32.xlu0 %v143, 72
    %v145 = vpop.permute.xlu0 %144
    %vm146 = vcmask 736832
    %147 = vst.msk [vmem:[#allocation0] sm:$0x1] %vm146, %v145
    %s148 = scalar_lea.vmem %s0, 11
    %v149 = vld [vmem:[%s148] sm:$0x1]
    %150 = vrot.lane.b32.xlu0 %v149, 70
    %v151 = vpop.permute.xlu0 %150
    %vm152 = vcmask 720432
    %s153 = scalar_lea.vmem [#allocation0], 8
    %154 = vst.msk [vmem:[%s153] sm:$0x1] %vm152, %v151
    %s155 = scalar_lea.vmem %s0, 24
    %v156 = vld [vmem:[%s155] sm:$0x1]
    %157 = vrot.lane.b32.xlu0 %v156, 68
    %v158 = vpop.permute.xlu0 %157
    %vm159 = vcmask 704032
    %s160 = scalar_lea.vmem [#allocation0], 16
    %161 = vst.msk [vmem:[%s160] sm:$0x1] %vm159, %v158
    %s162 = scalar_lea.vmem %s0, 31
    %v163 = vld [vmem:[%s162] sm:$0x1]
    %164 = vrot.lane.b32.xlu0 %v163, 66
    %v165 = vpop.permute.xlu0 %164
    %vm166 = vcmask 687632
    %s167 = scalar_lea.vmem [#allocation0], 24
    %168 = vst.msk [vmem:[%s167] sm:$0x1] %vm166, %v165
    %s169 = scalar_lea.vmem %s0, 38
    %v170 = vld [vmem:[%s169] sm:$0x1]
    %171 = vrot.lane.b32.xlu0 %v170, 64
    %v172 = vpop.permute.xlu0 %171
    %vm173 = vcmask 671232
    %s174 = scalar_lea.vmem [#allocation0], 32
    %175 = vst.msk [vmem:[%s174] sm:$0x1] %vm173, %v172
    %s176 = scalar_lea.vmem %s0, 3
    %v177 = vld [vmem:[%s176] sm:$0x1]
    %178 = vrot.lane.b32.xlu0 %v177, 54
    %v179 = vpop.permute.xlu0 %178
    %vm180 = vcmask 589232
    %181 = vst.msk [vmem:[#allocation0] sm:$0x1] %vm180, %v179
    %s182 = scalar_lea.vmem %s0, 10
    %v183 = vld [vmem:[%s182] sm:$0x1]
    %184 = vrot.lane.b32.xlu0 %v183, 52
    %v185 = vpop.permute.xlu0 %184
    %vm186 = vcmask 572832
    %s187 = scalar_lea.vmem [#allocation0], 8
    %188 = vst.msk [vmem:[%s187] sm:$0x1] %vm186, %v185
    %s189 = scalar_lea.vmem %s0, 17
    %v190 = vld [vmem:[%s189] sm:$0x1]
    %191 = vrot.lane.b32.xlu0 %v190, 50
    %v192 = vpop.permute.xlu0 %191
    %vm193 = vcmask 556432
    %s194 = scalar_lea.vmem [#allocation0], 16
    %195 = vst.msk [vmem:[%s194] sm:$0x1] %vm193, %v192
    %s196 = scalar_lea.vmem %s0, 30
    %v197 = vld [vmem:[%s196] sm:$0x1]
    %198 = vrot.lane.b32.xlu0 %v197, 48
    %v199 = vpop.permute.xlu0 %198
    %vm200 = vcmask 540032
    %s201 = scalar_lea.vmem [#allocation0], 24
    %202 = vst.msk [vmem:[%s201] sm:$0x1] %vm200, %v199
    %s203 = scalar_lea.vmem %s0, 37
    %v204 = vld [vmem:[%s203] sm:$0x1]
    %205 = vrot.lane.b32.xlu0 %v204, 46
    %v206 = vpop.permute.xlu0 %205
    %vm207 = vcmask 523632
    %s208 = scalar_lea.vmem [#allocation0], 32
    %209 = vst.msk [vmem:[%s208] sm:$0x1] %vm207, %v206
    %s210 = scalar_lea.vmem %s0, 2
    %v211 = vld [vmem:[%s210] sm:$0x1]
    %212 = vrot.lane.b32.xlu0 %v211, 36
    %v213 = vpop.permute.xlu0 %212
    %vm214 = vcmask 441632
    %215 = vst.msk [vmem:[#allocation0] sm:$0x1] %vm214, %v213
    %s216 = scalar_lea.vmem %s0, 9
    %v217 = vld [vmem:[%s216] sm:$0x1]
    %218 = vrot.lane.b32.xlu0 %v217, 34
    %v219 = vpop.permute.xlu0 %218
    %vm220 = vcmask 425232
    %s221 = scalar_lea.vmem [#allocation0], 8
    %222 = vst.msk [vmem:[%s221] sm:$0x1] %vm220, %v219
    %s223 = scalar_lea.vmem %s0, 16
    %v224 = vld [vmem:[%s223] sm:$0x1]
    %225 = vrot.lane.b32.xlu0 %v224, 32
    %v226 = vpop.permute.xlu0 %225
    %vm227 = vcmask 408832
    %s228 = scalar_lea.vmem [#allocation0], 16
    %229 = vst.msk [vmem:[%s228] sm:$0x1] %vm227, %v226
    %s230 = scalar_lea.vmem %s0, 29
    %v231 = vld [vmem:[%s230] sm:$0x1]
    %232 = vrot.lane.b32.xlu0 %v231, 30
    %v233 = vpop.permute.xlu0 %232
    %vm234 = vcmask 392432
    %s235 = scalar_lea.vmem [#allocation0], 24
    %236 = vst.msk [vmem:[%s235] sm:$0x1] %vm234, %v233
    %s237 = scalar_lea.vmem %s0, 36
    %v238 = vld [vmem:[%s237] sm:$0x1]
    %239 = vrot.lane.b32.xlu0 %v238, 28
    %v240 = vpop.permute.xlu0 %239
    %vm241 = vcmask 376032
    %s242 = scalar_lea.vmem [#allocation0], 32
    %243 = vst.msk [vmem:[%s242] sm:$0x1] %vm241, %v240
    %s244 = scalar_lea.vmem %s0, 1
    %v245 = vld [vmem:[%s244] sm:$0x1]
    %246 = vrot.lane.b32.xlu0 %v245, 18
    %v247 = vpop.permute.xlu0 %246
    %vm248 = vcmask 294032
    %249 = vst.msk [vmem:[#allocation0] sm:$0x1] %vm248, %v247
    %s250 = scalar_lea.vmem %s0, 8
    %v251 = vld [vmem:[%s250] sm:$0x1]
    %252 = vrot.lane.b32.xlu0 %v251, 16
    %v253 = vpop.permute.xlu0 %252
    %vm254 = vcmask 277632
    %s255 = scalar_lea.vmem [#allocation0], 8
    %256 = vst.msk [vmem:[%s255] sm:$0x1] %vm254, %v253
    %s257 = scalar_lea.vmem %s0, 15
    %v258 = vld [vmem:[%s257] sm:$0x1]
    %259 = vrot.lane.b32.xlu0 %v258, 14
    %v260 = vpop.permute.xlu0 %259
    %vm261 = vcmask 261232
    %s262 = scalar_lea.vmem [#allocation0], 16
    %263 = vst.msk [vmem:[%s262] sm:$0x1] %vm261, %v260
    %s264 = scalar_lea.vmem %s0, 28
    %v265 = vld [vmem:[%s264] sm:$0x1]
    %266 = vrot.lane.b32.xlu0 %v265, 12
    %v267 = vpop.permute.xlu0 %266
    %vm268 = vcmask 244832
    %s269 = scalar_lea.vmem [#allocation0], 24
    %270 = vst.msk [vmem:[%s269] sm:$0x1] %vm268, %v267
    %s271 = scalar_lea.vmem %s0, 35
    %v272 = vld [vmem:[%s271] sm:$0x1]
    %273 = vrot.lane.b32.xlu0 %v272, 10
    %v274 = vpop.permute.xlu0 %273
    %vm275 = vcmask 228432
    %s276 = scalar_lea.vmem [#allocation0], 32
    %277 = vst.msk [vmem:[%s276] sm:$0x1] %vm275, %v274
    %s279 = sshllo.u32 0, 1
    %v281 = vld [vmem:[#allocation0] sm:%s279]
    %s282 = sshllo.u32 0, 1
    %283 = vst [vmem:[%s1] sm:%s282] %v281
    %s284 = scalar_lea.vmem [#allocation0], 8
    %v285 = vld [vmem:[%s284] sm:%s279]
    %s286 = sshllo.u32 0, 1
    %s287 = scalar_lea.vmem %s1, 1
    %288 = vst [vmem:[%s287] sm:%s286] %v285
    %s289 = scalar_lea.vmem [#allocation0], 16
    %v290 = vld [vmem:[%s289] sm:%s279]
    %s291 = sshllo.u32 0, 1
    %s292 = smul.addr 1, 2
    %s293 = scalar_lea.vmem %s1, %s292
    %294 = vst [vmem:[%s293] sm:%s291] %v290
    %s295 = scalar_lea.vmem [#allocation0], 24
    %v296 = vld [vmem:[%s295] sm:%s279]
    %s297 = sshllo.u32 0, 1
    %s298 = smul.addr 1, 3
    %s299 = scalar_lea.vmem %s1, %s298
    %300 = vst [vmem:[%s299] sm:%s297] %v296
    %s301 = scalar_lea.vmem [#allocation0], 32
    %v302 = vld [vmem:[%s301] sm:%s279]
    %s303 = sshllo.u32 0, 1
    %s304 = smul.addr 1, 4
    %s305 = scalar_lea.vmem %s1, %s304
    %306 = vst [vmem:[%s305] sm:%s303] %v302
    %s307 = scalar_lea.vmem [#allocation0], 40
    %v308 = vld [vmem:[%s307] sm:%s279]
    %s309 = sshllo.u32 0, 1
    %s310 = smul.addr 1, 5
    %s311 = scalar_lea.vmem %s1, %s310
    %312 = vst [vmem:[%s311] sm:%s309] %v308

// kernel: tile.16
$region0: #{tile.16}
  #allocation2 [shape = 's32[1]{0}', space=sflag, size = 0x4, scoped, tag = 'scoped memory for tile.16']
  %s0 = inlined_call_operand.hbm [shape: f32[8], index: 0, kind: input, shape index: {}]
  %s1 = inlined_call_operand.vmem [shape: f32[4,8], index: 1, kind: output, shape index: {}]
  $region1: #{tile.16} parent=0
    #allocation0 [shape = 'u8[512]{0}', space=vmem, size = 0x400, scoped, tag = 'operand span for operand 0']
    #allocation1 [shape = 's32[1]{0}', space=sflag, size = 0x4, scoped, tag = 'scoped memory for tile.16']
    %2 = vsyncpa [#allocation1], 0
    // Predicated region
    $region2: #{tile.16} parent=1 // pred_check
      _
    $region3: #{tile.16} parent=1 // pred_check_branch
      %4 = sbr.rel (0) target = $region5
    $region4: #{tile.16} parent=1 // pred_region
      %s6 = ssub.s32 16, 16
      %7 = vsyncadd [#allocation1], %s6
      %s9 = sshll.u32 [#allocation0], 4
      %s10 = int_to_ptr.vmem [resolvable:$true] %s9
      %12 = dma.hbm_to_vmem [thread:$0]  %s0, 16, %s10, [#allocation1]
    $region5: #{tile.16} parent=1 // pred_fallthru
      _
    // Predicated region
    $region6: #{tile.16} parent=1 // pred_check
      _
    $region7: #{tile.16} parent=1 // pred_check_branch
      %14 = sbr.rel (0) target = $region9
    $region8: #{tile.16} parent=1 // pred_region
      %15 = dma.done [#allocation1], 16
    $region9: #{tile.16} parent=1 // pred_fallthru
      _
    %v16 = vld [vmem:[#allocation0] ss:$0 sm:$0xff]
    %17 = vst [vmem:[%s1] sm:$0xf] %v16
    %18 = vsyncpa [#allocation1], 1

// kernel: tile.0
$region0: #{tile.0}
  %s0 = inlined_call_operand.vmem [shape: f32[4,8], index: 0, kind: input, shape index: {}]
  %s1 = inlined_call_operand.vmem [shape: f32[32,1], index: 1, kind: output, shape index: {}]
  $region1: #{tile.0} parent=0
    #allocation0 [shape = 'u8[4096]{0}', space=vmem, size = 0x1000, scoped, tag = 'scoped mem for input reshape']
    %s3 = sshllo.u32 0, 4
    %v4 = vld [vmem:[%s0] sm:%s3]
    %5 = vst [vmem:[#allocation0] sm:%s3] %v4
    %v6 = vld [vmem:[#allocation0] sm:$0xf]
    %vm7 = vcmask 7168
    %8 = vst.msk [vmem:[%s1] ss:$8 sm:$0xf] %vm7, %v6
    %v9 = vld [vmem:[#allocation0] sm:$0xf]
    %10 = vrot.lane.b32.xlu0 %v9, 127
    %v11 = vpop.permute.xlu0 %10
    %vm12 = vcmask 7168
    %s13 = scalar_lea.vmem %s1, 1
    %14 = vst.msk [vmem:[%s13] ss:$8 sm:$0xf] %vm12, %v11
    %v15 = vld [vmem:[#allocation0] sm:$0xf]
    %16 = vrot.lane.b32.xlu0 %v15, 126
    %v17 = vpop.permute.xlu0 %16
    %vm18 = vcmask 7168
    %s19 = scalar_lea.vmem %s1, 2
    %20 = vst.msk [vmem:[%s19] ss:$8 sm:$0xf] %vm18, %v17
    %v21 = vld [vmem:[#allocation0] sm:$0xf]
    %22 = vrot.lane.b32.xlu0 %v21, 125
    %v23 = vpop.permute.xlu0 %22
    %vm24 = vcmask 7168
    %s25 = scalar_lea.vmem %s1, 3
    %26 = vst.msk [vmem:[%s25] ss:$8 sm:$0xf] %vm24, %v23
    %v27 = vld [vmem:[#allocation0] sm:$0xf]
    %28 = vrot.lane.b32.xlu0 %v27, 124
    %v29 = vpop.permute.xlu0 %28
    %vm30 = vcmask 7168
    %s31 = scalar_lea.vmem %s1, 4
    %32 = vst.msk [vmem:[%s31] ss:$8 sm:$0xf] %vm30, %v29
    %v33 = vld [vmem:[#allocation0] sm:$0xf]
    %34 = vrot.lane.b32.xlu0 %v33, 123
    %v35 = vpop.permute.xlu0 %34
    %vm36 = vcmask 7168
    %s37 = scalar_lea.vmem %s1, 5
    %38 = vst.msk [vmem:[%s37] ss:$8 sm:$0xf] %vm36, %v35
    %v39 = vld [vmem:[#allocation0] sm:$0xf]
    %40 = vrot.lane.b32.xlu0 %v39, 122
    %v41 = vpop.permute.xlu0 %40
    %vm42 = vcmask 7168
    %s43 = scalar_lea.vmem %s1, 6
    %44 = vst.msk [vmem:[%s43] ss:$8 sm:$0xf] %vm42, %v41
    %v45 = vld [vmem:[#allocation0] sm:$0xf]
    %46 = vrot.lane.b32.xlu0 %v45, 121
    %v47 = vpop.permute.xlu0 %46
    %vm48 = vcmask 7168
    %s49 = scalar_lea.vmem %s1, 7
    %50 = vst.msk [vmem:[%s49] ss:$8 sm:$0xf] %vm48, %v47

// kernel: squeeze.4
$region0: #{squeeze.4}
  %s0 = inlined_call_operand.vmem [shape: f32[32], index: 0, kind: input, shape index: {}]
  %s1 = inlined_call_operand.vmem [shape: f32[4,8], index: 1, kind: output, shape index: {}]
  $region1: #{squeeze.4} parent=0
    #allocation0 [shape = 'u8[4096]{0}', space=vmem, size = 0x1000, scoped, tag = 'scoped mem for output reshape']
    #allocation1 [shape = 'u8[4096]{0}', space=vmem, size = 0x1000, scoped, tag = 'scoped mem for input reshape']
    %s3 = sshllo.u32 0, 1
    %v4 = vld [vmem:[%s0] sm:%s3]
    %5 = vst [vmem:[#allocation1] sm:%s3] %v4
    %v6 = vld [vmem:[#allocation1] sm:$0x1]
    %vm7 = vcmask 64512
    %8 = vst.msk [vmem:[#allocation0] sm:$0x1] %vm7, %v6
    %v9 = vld [vmem:[#allocation1] sm:$0x1]
    %10 = vrot.lane.b32.xlu0 %v9, 120
    %v11 = vpop.permute.xlu0 %10
    %vm12 = vcmask 64512
    %s13 = scalar_lea.vmem [#allocation0], 1
    %14 = vst.msk [vmem:[%s13] sm:$0x1] %vm12, %v11
    %v15 = vld [vmem:[#allocation1] sm:$0x1]
    %16 = vrot.lane.b32.xlu0 %v15, 112
    %v17 = vpop.permute.xlu0 %16
    %vm18 = vcmask 64512
    %s19 = scalar_lea.vmem [#allocation0], 2
    %20 = vst.msk [vmem:[%s19] sm:$0x1] %vm18, %v17
    %v21 = vld [vmem:[#allocation1] sm:$0x1]
    %22 = vrot.lane.b32.xlu0 %v21, 104
    %v23 = vpop.permute.xlu0 %22
    %vm24 = vcmask 64512
    %s25 = scalar_lea.vmem [#allocation0], 3
    %26 = vst.msk [vmem:[%s25] sm:$0x1] %vm24, %v23
    %s28 = sshllo.u32 0, 4
    %v30 = vld [vmem:[#allocation0] sm:%s28]
    %s31 = sshllo.u32 0, 4
    %32 = vst [vmem:[%s1] sm:%s31] %v30

// kernel: basic_block_to_crop_forward.3
$region0: #{basic_block_to_crop_forward.3}
  #allocation0 [shape = 'u32[]', space=smem, size = 0x4, offset = 0x4, fixed_abs, tag = 'smem constant byte address 0x4 - core index']
  #allocation1 [shape = 'u32[144,128]{1,0:T(1,128)}', space=vmem, size = 0x12000, scoped, tag = 'internal scratch']
  %s0 = inlined_call_operand.vmem [shape: bf16[4,896], index: 0, kind: input, shape index: {}, may-alias: {0,1}]
  %s1 = inlined_call_operand.vmem [shape: bf16[4,896], index: 1, kind: input, shape index: {}, may-alias: {0,1}]
  %s2 = inlined_call_operand.vmem [shape: bf16[4,32,4], index: 2, kind: input, shape index: {}]
  %s3 = inlined_call_operand.vmem [shape: f32[32,1], index: 3, kind: input, shape index: {}]
  %s4 = inlined_call_operand.vmem [shape: f32[1,768], index: 4, kind: input, shape index: {}]
  %s5 = inlined_call_operand.vmem [shape: bf16[32,768], index: 5, kind: output, shape index: {0}]
  %s6 = inlined_call_operand.vmem [shape: f32[6,32,1], index: 6, kind: output, shape index: {1}]
  %s7 = inlined_call_operand.vmem [shape: f32[6,32,1], index: 7, kind: output, shape index: {2}]
  %8 = xla_tuple %s5, %s6, %s7
  %s9 = sld [smem:[#allocation0]]
  $region106: #{basic_block_to_crop_forward.3} parent=0
    _
  %s11 = ssub.s32 1, %s9
  %s12 = scalar_select 0, %s11, %s9
  $region1: #{basic_block_to_crop_forward.3} parent=0
    #allocation2 [shape = 'u8[16384]{0}', space=vmem, size = 0x4000, scoped, tag = 'output window, operand 0']
    loop: start=0, step=1, limit=8
    $region2: #{basic_block_to_crop_forward.3} parent=1 // loop_pre_header
      _
    $region3: #{basic_block_to_crop_forward.3} parent=1 // loop_header
      %s14 = sphi 0, %s18
      %p15 = scmp.ge.s32.totalorder %s14, 8
      %s24 = sphi 0, %s26
      %s27 = sphi 0, %s24
      %s28 = sphi 0, %s27
      %s44 = sphi 0, %s28
      %s52 = sphi 0, %s54
      %s55 = sphi 0, %s52
      %s56 = sphi 0, %s55
      %s72 = sphi 0, %s56
      %s76 = sphi 0, %s76
      %s78 = sphi 0, %s76
      %s79 = sphi 0, %s78
      %s93 = sphi 0, %s79
      %s97 = sphi 0, %s97
      %s99 = sphi 0, %s97
      %s100 = sphi 0, %s99
      %s114 = sphi 0, %s100
      %s120 = sphi 0, %s122
      %s123 = sphi 0, %s120
      %s124 = sphi 0, %s123
      %s140 = sphi 0, %s124
      %s146 = sphi 0, %s148
      %s149 = sphi 0, %s146
      %s150 = sphi 0, %s149
      %s166 = sphi 0, %s150
      %s172 = sphi 0, %s174
      %s175 = sphi 0, %s172
      %s176 = sphi 0, %s175
      %s192 = sphi 0, %s176
      %s198 = sphi 0, %s200
      %s201 = sphi 0, %s198
      %s202 = sphi 0, %s201
      %s218 = sphi 0, %s202
    $region4: #{basic_block_to_crop_forward.3} parent=1 // loop_header_branch
      %17 = sbr.rel (%p15) target = $region8
    $region5: #{basic_block_to_crop_forward.3} parent=1 // loop_body
      %s19 = ssub.s32 %s14, 1
      %s20 = ssub.s32 %s14, 2
      %s21 = sadd.s32 %s14, 1
      %s22 = ssub.s32 %s14, %s21
      %p23 = scmp.eq.s32.totalorder %s22, 0
      %s25 = sadd.s32 %s24, 1
      %s26 = scalar_select %p23, %s24, %s25
      %p29 = pneg %p23
      %p30 = scmp.eq.s32.totalorder %s14, 5
      %p31 = por %p29, %p30
      %p32 = scmp.ne.s32.totalorder %s24, %s27
      %p33 = scmp.eq.s32.totalorder %s14, 0
      %p34 = por %p32, %p33
      %p35 = scmp.ne.s32.totalorder %s24, %s27
      %p36 = scmp.eq.s32.totalorder %s19, 5
      %p37 = por %p35, %p36
      %p38 = scmp.ne.s32.totalorder %s27, %s28
      %p39 = scmp.eq.s32.totalorder %s19, 0
      %p40 = por %p38, %p39
      %p41 = scmp.ne.s32.totalorder %s27, %s28
      %p42 = scmp.eq.s32.totalorder %s20, 5
      %p43 = por %p41, %p42
      %p45 = scmp.ne.s32.totalorder %s28, %s44
      %p46 = scmp.eq.s32.totalorder %s20, 0
      %p47 = por %p45, %p46
      %s48 = sadd.s32 %s14, 1
      %s49 = sadd.s32 %s21, 1
      %s50 = ssub.s32 %s48, %s49
      %p51 = scmp.eq.s32.totalorder %s50, 0
      %s53 = sadd.s32 %s52, 1
      %s54 = scalar_select %p51, %s52, %s53
      %p57 = pneg %p51
      %p58 = scmp.eq.s32.totalorder %s14, 5
      %p59 = por %p57, %p58
      %p60 = scmp.ne.s32.totalorder %s52, %s55
      %p61 = scmp.eq.s32.totalorder %s14, 0
      %p62 = por %p60, %p61
      %p63 = scmp.ne.s32.totalorder %s52, %s55
      %p64 = scmp.eq.s32.totalorder %s19, 5
      %p65 = por %p63, %p64
      %p66 = scmp.ne.s32.totalorder %s55, %s56
      %p67 = scmp.eq.s32.totalorder %s19, 0
      %p68 = por %p66, %p67
      %p69 = scmp.ne.s32.totalorder %s55, %s56
      %p70 = scmp.eq.s32.totalorder %s20, 5
      %p71 = por %p69, %p70
      %p73 = scmp.ne.s32.totalorder %s56, %s72
      %p74 = scmp.eq.s32.totalorder %s20, 0
      %p75 = por %p73, %p74
      %s77 = sadd.s32 %s76, 1
      %p80 = scmp.eq.s32.totalorder %s14, 5
      %p81 = scmp.ne.s32.totalorder %s76, %s78
      %p82 = scmp.eq.s32.totalorder %s14, 0
      %p83 = por %p81, %p82
      %p84 = scmp.ne.s32.totalorder %s76, %s78
      %p85 = scmp.eq.s32.totalorder %s19, 5
      %p86 = por %p84, %p85
      %p87 = scmp.ne.s32.totalorder %s78, %s79
      %p88 = scmp.eq.s32.totalorder %s19, 0
      %p89 = por %p87, %p88
      %p90 = scmp.ne.s32.totalorder %s78, %s79
      %p91 = scmp.eq.s32.totalorder %s20, 5
      %p92 = por %p90, %p91
      %p94 = scmp.ne.s32.totalorder %s79, %s93
      %p95 = scmp.eq.s32.totalorder %s20, 0
      %p96 = por %p94, %p95
      %s98 = sadd.s32 %s97, 1
      %p101 = scmp.eq.s32.totalorder %s14, 5
      %p102 = scmp.ne.s32.totalorder %s97, %s99
      %p103 = scmp.eq.s32.totalorder %s14, 0
      %p104 = por %p102, %p103
      %p105 = scmp.ne.s32.totalorder %s97, %s99
      %p106 = scmp.eq.s32.totalorder %s19, 5
      %p107 = por %p105, %p106
      %p108 = scmp.ne.s32.totalorder %s99, %s100
      %p109 = scmp.eq.s32.totalorder %s19, 0
      %p110 = por %p108, %p109
      %p111 = scmp.ne.s32.totalorder %s99, %s100
      %p112 = scmp.eq.s32.totalorder %s20, 5
      %p113 = por %p111, %p112
      %p115 = scmp.ne.s32.totalorder %s100, %s114
      %p116 = scmp.eq.s32.totalorder %s20, 0
      %p117 = por %p115, %p116
      %s118 = ssub.s32 %s14, %s21
      %p119 = scmp.eq.s32.totalorder %s118, 0
      %s121 = sadd.s32 %s120, 1
      %s122 = scalar_select %p119, %s120, %s121
      %p125 = pneg %p119
      %p126 = scmp.eq.s32.totalorder %s14, 5
      %p127 = por %p125, %p126
      %p128 = scmp.ne.s32.totalorder %s120, %s123
      %p129 = scmp.eq.s32.totalorder %s14, 0
      %p130 = por %p128, %p129
      %p131 = scmp.ne.s32.totalorder %s120, %s123
      %p132 = scmp.eq.s32.totalorder %s19, 5
      %p133 = por %p131, %p132
      %p134 = scmp.ne.s32.totalorder %s123, %s124
      %p135 = scmp.eq.s32.totalorder %s19, 0
      %p136 = por %p134, %p135
      %p137 = scmp.ne.s32.totalorder %s123, %s124
      %p138 = scmp.eq.s32.totalorder %s20, 5
      %p139 = por %p137, %p138
      %p141 = scmp.ne.s32.totalorder %s124, %s140
      %p142 = scmp.eq.s32.totalorder %s20, 0
      %p143 = por %p141, %p142
      %s144 = ssub.s32 %s14, %s21
      %p145 = scmp.eq.s32.totalorder %s144, 0
      %s147 = sadd.s32 %s146, 1
      %s148 = scalar_select %p145, %s146, %s147
      %p151 = pneg %p145
      %p152 = scmp.eq.s32.totalorder %s14, 5
      %p153 = por %p151, %p152
      %p154 = scmp.ne.s32.totalorder %s146, %s149
      %p155 = scmp.eq.s32.totalorder %s14, 0
      %p156 = por %p154, %p155
      %p157 = scmp.ne.s32.totalorder %s146, %s149
      %p158 = scmp.eq.s32.totalorder %s19, 5
      %p159 = por %p157, %p158
      %p160 = scmp.ne.s32.totalorder %s149, %s150
      %p161 = scmp.eq.s32.totalorder %s19, 0
      %p162 = por %p160, %p161
      %p163 = scmp.ne.s32.totalorder %s149, %s150
      %p164 = scmp.eq.s32.totalorder %s20, 5
      %p165 = por %p163, %p164
      %p167 = scmp.ne.s32.totalorder %s150, %s166
      %p168 = scmp.eq.s32.totalorder %s20, 0
      %p169 = por %p167, %p168
      %s170 = ssub.s32 %s14, %s21
      %p171 = scmp.eq.s32.totalorder %s170, 0
      %s173 = sadd.s32 %s172, 1
      %s174 = scalar_select %p171, %s172, %s173
      %p177 = pneg %p171
      %p178 = scmp.eq.s32.totalorder %s14, 5
      %p179 = por %p177, %p178
      %p180 = scmp.ne.s32.totalorder %s172, %s175
      %p181 = scmp.eq.s32.totalorder %s14, 0
      %p182 = por %p180, %p181
      %p183 = scmp.ne.s32.totalorder %s172, %s175
      %p184 = scmp.eq.s32.totalorder %s19, 5
      %p185 = por %p183, %p184
      %p186 = scmp.ne.s32.totalorder %s175, %s176
      %p187 = scmp.eq.s32.totalorder %s19, 0
      %p188 = por %p186, %p187
      %p189 = scmp.ne.s32.totalorder %s175, %s176
      %p190 = scmp.eq.s32.totalorder %s20, 5
      %p191 = por %p189, %p190
      %p193 = scmp.ne.s32.totalorder %s176, %s192
      %p194 = scmp.eq.s32.totalorder %s20, 0
      %p195 = por %p193, %p194
      %s196 = ssub.s32 %s14, %s21
      %p197 = scmp.eq.s32.totalorder %s196, 0
      %s199 = sadd.s32 %s198, 1
      %s200 = scalar_select %p197, %s198, %s199
      %p203 = pneg %p197
      %p204 = scmp.eq.s32.totalorder %s14, 5
      %p205 = por %p203, %p204
      %p206 = scmp.ne.s32.totalorder %s198, %s201
      %p207 = scmp.eq.s32.totalorder %s14, 0
      %p208 = por %p206, %p207
      %p209 = scmp.ne.s32.totalorder %s198, %s201
      %p210 = scmp.eq.s32.totalorder %s19, 5
      %p211 = por %p209, %p210
      %p212 = scmp.ne.s32.totalorder %s201, %s202
      %p213 = scmp.eq.s32.totalorder %s19, 0
      %p214 = por %p212, %p213
      %p215 = scmp.ne.s32.totalorder %s201, %s202
      %p216 = scmp.eq.s32.totalorder %s20, 5
      %p217 = por %p215, %p216
      %p219 = scmp.ne.s32.totalorder %s202, %s218
      %p220 = scmp.eq.s32.totalorder %s20, 0
      %p221 = por %p219, %p220
      %p222 = scmp.le.s32.totalorder 1, %s14
      %p223 = scmp.lt.s32.totalorder %s14, 7
      %p224 = pnand %p222, %p223
      %p225 = pneg %p224
      // Predicated region
      $region9: #{basic_block_to_crop_forward.3} parent=5 // pred_check
        _
      $region10: #{basic_block_to_crop_forward.3} parent=5 // pred_check_branch
        %227 = sbr.rel (%p224) target = $region12
      $region11: #{basic_block_to_crop_forward.3} parent=5 // pred_region
        %s228 = ssub.s32 %s14, 1
        // Predicated region
        $region13: #{basic_block_to_crop_forward.3} parent=11 // pred_check
          %p229 = pneg %p89
        $region14: #{basic_block_to_crop_forward.3} parent=11 // pred_check_branch
          %231 = sbr.rel (%p229) target = $region16
        $region15: #{basic_block_to_crop_forward.3} parent=11 // pred_region
          _
        $region16: #{basic_block_to_crop_forward.3} parent=11 // pred_fallthru
          _
        // Predicated region
        $region17: #{basic_block_to_crop_forward.3} parent=11 // pred_check
          %p232 = pneg %p110
        $region18: #{basic_block_to_crop_forward.3} parent=11 // pred_check_branch
          %234 = sbr.rel (%p232) target = $region20
        $region19: #{basic_block_to_crop_forward.3} parent=11 // pred_region
          _
        $region20: #{basic_block_to_crop_forward.3} parent=11 // pred_fallthru
          _
      $region12: #{basic_block_to_crop_forward.3} parent=5 // pred_fallthru
        _
      %p235 = scmp.lt.s32.totalorder %s14, 6
      // Predicated region
      $region21: #{basic_block_to_crop_forward.3} parent=5 // pred_check
        %p236 = pneg %p235
      $region22: #{basic_block_to_crop_forward.3} parent=5 // pred_check_branch
        %238 = sbr.rel (%p236) target = $region24
      $region23: #{basic_block_to_crop_forward.3} parent=5 // pred_region
        // Predicated region
        $region25: #{basic_block_to_crop_forward.3} parent=23 // pred_check
          %p239 = pneg %p34
        $region26: #{basic_block_to_crop_forward.3} parent=23 // pred_check_branch
          %241 = sbr.rel (%p239) target = $region28
        $region27: #{basic_block_to_crop_forward.3} parent=23 // pred_region
          %p242 = scmp.lt.s32.totalorder %s14, 6
          %s243 = scalar_select %p242, %s14, 6
          %s244 = smul.addr %s243, 2
          %s245 = scalar_lea.vmem %s0, %s244
        $region28: #{basic_block_to_crop_forward.3} parent=23 // pred_fallthru
          _
        // Predicated region
        $region29: #{basic_block_to_crop_forward.3} parent=23 // pred_check
          %p246 = pneg %p62
        $region30: #{basic_block_to_crop_forward.3} parent=23 // pred_check_branch
          %248 = sbr.rel (%p246) target = $region32
        $region31: #{basic_block_to_crop_forward.3} parent=23 // pred_region
          %s249 = sadd.s32 %s14, 1
          %p250 = scmp.lt.s32.totalorder %s249, 6
          %s251 = scalar_select %p250, %s249, 6
          %s252 = smul.addr %s251, 2
          %s253 = scalar_lea.vmem %s1, %s252
          %s254 = sadd.s32 %s14, 1
        $region32: #{basic_block_to_crop_forward.3} parent=23 // pred_fallthru
          _
        // Predicated region
        $region33: #{basic_block_to_crop_forward.3} parent=23 // pred_check
          %p255 = pneg %p130
        $region34: #{basic_block_to_crop_forward.3} parent=23 // pred_check_branch
          %257 = sbr.rel (%p255) target = $region36
        $region35: #{basic_block_to_crop_forward.3} parent=23 // pred_region
          %p258 = scmp.lt.s32.totalorder %s14, 5
          %s259 = scalar_select %p258, %s14, 5
          %s260 = scalar_lea.vmem %s4, %s259
        $region36: #{basic_block_to_crop_forward.3} parent=23 // pred_fallthru
          _
      $region24: #{basic_block_to_crop_forward.3} parent=5 // pred_fallthru
        _
      %p261 = scmp.le.s32.totalorder 1, %s14
      %p262 = scmp.lt.s32.totalorder %s14, 7
      %p263 = pnand %p261, %p262
      %p264 = pneg %p263
      // Predicated region
      $region37: #{basic_block_to_crop_forward.3} parent=5 // pred_check
        _
      $region38: #{basic_block_to_crop_forward.3} parent=5 // pred_check_branch
        %266 = sbr.rel (%p263) target = $region40
      $region39: #{basic_block_to_crop_forward.3} parent=5 // pred_region
        %s267 = ssub.s32 %s14, 1
        %p268 = scmp.lt.s32.totalorder %s19, 6
        %s269 = scalar_select %p268, %s19, 6
        %s270 = smul.addr %s269, 2
        %s271 = scalar_lea.vmem %s0, %s270
        %p272 = pneg %p40
        %p273 = pneg %p37
        %s274 = sadd.s32 %s19, 1
        %p275 = scmp.lt.s32.totalorder %s274, 6
        %s276 = scalar_select %p275, %s274, 6
        %s277 = smul.addr %s276, 2
        %s278 = scalar_lea.vmem %s1, %s277
        %p279 = pneg %p68
        %p280 = pneg %p65
        %p281 = pneg %p89
        %p282 = pneg %p86
        %p283 = pneg %p110
        %p284 = pneg %p107
        %p285 = scmp.lt.s32.totalorder %s19, 5
        %s286 = scalar_select %p285, %s19, 5
        %s287 = scalar_lea.vmem %s4, %s286
        %p288 = pneg %p136
        %p289 = pneg %p133
        %p290 = pneg %p162
        %p291 = pneg %p159
        %s292 = sand.u32 %s149, 1
        %s293 = sand.u32 %s149, 1
        %s294 = smul.addr %s293, 16
        %s295 = scalar_lea.vmem [#allocation2], %s294
        %p296 = pneg %p188
        %p297 = pneg %p185
        %p298 = scmp.lt.s32.totalorder %s19, 5
        %s299 = scalar_select %p298, %s19, 5
        %s300 = smul.addr %s299, 4
        %s301 = smul.addr %s300, 8
        %s302 = scalar_lea.vmem %s6, %s301
        %p303 = pneg %p214
        %p304 = pneg %p211
        %p305 = scmp.lt.s32.totalorder %s19, 5
        %s306 = scalar_select %p305, %s19, 5
        %s307 = smul.addr %s306, 4
        %s308 = smul.addr %s307, 8
        %s309 = scalar_lea.vmem %s7, %s308
        %p310 = scmp.lt.s32.totalorder %s19, 6
        %s311 = scalar_select %p310, %s19, 6
        %s312 = smul.addr %s311, 2
        %s313 = scalar_lea.vmem %s0, %s312
        %s314 = sadd.s32 %s19, 1
        %p315 = scmp.lt.s32.totalorder %s314, 6
        %s316 = scalar_select %p315, %s314, 6
        %s317 = smul.addr %s316, 2
        %s318 = scalar_lea.vmem %s1, %s317
        %s319 = sadd.s32 %s19, 1
        %p320 = scmp.lt.s32.totalorder %s19, 5
        %s321 = scalar_select %p320, %s19, 5
        %s322 = scalar_lea.vmem %s4, %s321
        %p323 = scmp.lt.s32.totalorder %s19, 5
        %s324 = scalar_select %p323, %s19, 5
        %s325 = smul.addr %s324, 4
        %s326 = smul.addr %s325, 8
        %s327 = scalar_lea.vmem %s6, %s326
        %p328 = scmp.lt.s32.totalorder %s19, 5
        %s329 = scalar_select %p328, %s19, 5
        %s330 = smul.addr %s329, 4
        %s331 = smul.addr %s330, 8
        %s332 = scalar_lea.vmem %s7, %s331
        %v334 = vld [vmem:[%s313] sm:$0x3]
        %v335 = vld [vmem:[%s318] sm:$0x3]
        %v336 = vld [vmem:[%s2] sm:$0xf]
        %v337 = vld [vmem:[%s2 + $0x4] sm:$0xf]
        %v338 = vld [vmem:[%s2 + $0x8] sm:$0xf]
        %v339 = vld [vmem:[%s2 + $0xc] sm:$0xf]
        %s340 = scalar_lea.vmem %s2, 16
        %v341 = vld [vmem:[%s340] sm:$0xf]
        %v342 = vld [vmem:[%s340 + $0x4] sm:$0xf]
        %v343 = vld [vmem:[%s340 + $0x8] sm:$0xf]
        %v344 = vld [vmem:[%s340 + $0xc] sm:$0xf]
        %v349 = vunpack.c.l.b16 %v341
        %v350 = vunpack.c.l.b16 %v342
        %v351 = vunpack.c.l.b16 %v343
        %v352 = vunpack.c.l.b16 %v344
        %v353 = vpack.c.b16 %v350, %v349
        %v354 = vpack.c.b16 %v352, %v351
        %357 = vrot.lane.b32.xlu0 %v334, 127
        %v358 = vpop.permute.xlu0 %357
        %359 = vrot.lane.b32.xlu0 %v335, 127
        %v360 = vpop.permute.xlu0 %359
        %vm361 = vcmask 1039360
        %v362 = vsel %vm361, %v358, %v360
        %vm363 = vcmask 31744
        %v365 = vsel %vm363, %v353, 0
        %v368 = vsel %vm363, %v354, 0
        %vm370 = vcmask 1041408
        %v372 = vsel %vm370, %v362, 0
        %374 = vmatprep.subr.bf16.mxu0 0
        %375 = vmatpush1.bf16.msra.mxu0 %v372
        %376 = vmatprep.subr.bf16.mxu0 0
        %377 = vmatpush1.bf16.msra.mxu0 0
        %378 = vmatprep.subr.bf16.mxu0 0
        %379 = vmatpush1.bf16.msra.mxu0 0
        %380 = vmatprep.subr.bf16.mxu0 0
        %381 = vmatpush1.bf16.msra.mxu0 0
        %382 = vmatprep.subr.bf16.mxu0 0
        %383 = vmatpush1.bf16.msra.mxu0 0
        %384 = vmatprep.subr.bf16.mxu0 0
        %385 = vmatpush1.bf16.msra.mxu0 0
        %386 = vmatprep.subr.bf16.mxu0 0
        %387 = vmatpush1.bf16.msra.mxu0 0
        %388 = vmatprep.subr.bf16.mxu0 0
        %389 = vmatpush1.bf16.msra.mxu0 0
        %390 = vmatprep.subr.bf16.mxu0 0
        %391 = vmatpush1.bf16.msra.mxu0 0
        %392 = vmatprep.subr.bf16.mxu0 0
        %393 = vmatpush1.bf16.msra.mxu0 0
        %394 = vmatprep.subr.bf16.mxu0 0
        %395 = vmatpush1.bf16.msra.mxu0 0
        %396 = vmatprep.subr.bf16.mxu0 0
        %397 = vmatpush1.bf16.msra.mxu0 0
        %398 = vmatprep.subr.bf16.mxu0 0
        %399 = vmatpush1.bf16.msra.mxu0 0
        %400 = vmatprep.subr.bf16.mxu0 0
        %401 = vmatpush1.bf16.msra.mxu0 0
        %402 = vmatprep.subr.bf16.mxu0 0
        %403 = vmatpush1.bf16.msra.mxu0 0
        %404 = vmatprep.subr.bf16.mxu0 0
        %405 = vmatpush1.bf16.msra.mxu0 0
        %406 = vmatprep.mubr.bf16.mxu0 0
        %407 = vmatmul.mubr.bf16.gmra.mrb[0].mxu0 %v365
        %v408 = vpop.f32.mrb[0].mxu0
        %v409 = vadd.f32 0.0, %v408
        %v410 = vpop.f32.mrb[0].mxu0
        %v411 = vpop.f32.mrb[0].mxu0
        %v412 = vadd.f32 0.0, %v411
        %v413 = vpop.f32.mrb[0].mxu0
        %414 = vmatprep.mubr.bf16.mxu0 0
        %415 = vmatmul.mubr.bf16.gmra.mrb[0].mxu0 %v368
        %v416 = vpop.f32.mrb[0].mxu0
        %v417 = vadd.f32 0.0, %v416
        %v418 = vpop.f32.mrb[0].mxu0
        %v419 = vpop.f32.mrb[0].mxu0
        %v420 = vadd.f32 0.0, %v419
        %v421 = vpop.f32.mrb[0].mxu0
        %422 = vdwg.mxu0
        %v427 = vunpack.c.l.b16 %v336
        %v428 = vunpack.c.l.b16 %v337
        %v429 = vunpack.c.l.b16 %v338
        %v430 = vunpack.c.l.b16 %v339
        %v431 = vpack.c.b16 %v428, %v427
        %v432 = vpack.c.b16 %v430, %v429
        %v434 = vsel %vm363, %v431, 0
        %v437 = vsel %vm363, %v432, 0
        %v440 = vsel %vm370, %v334, 0
        %442 = vmatprep.subr.bf16.mxu0 0
        %443 = vmatpush1.bf16.msra.mxu0 %v440
        %444 = vmatprep.subr.bf16.mxu0 0
        %445 = vmatpush1.bf16.msra.mxu0 0
        %446 = vmatprep.subr.bf16.mxu0 0
        %447 = vmatpush1.bf16.msra.mxu0 0
        %448 = vmatprep.subr.bf16.mxu0 0
        %449 = vmatpush1.bf16.msra.mxu0 0
        %450 = vmatprep.subr.bf16.mxu0 0
        %451 = vmatpush1.bf16.msra.mxu0 0
        %452 = vmatprep.subr.bf16.mxu0 0
        %453 = vmatpush1.bf16.msra.mxu0 0
        %454 = vmatprep.subr.bf16.mxu0 0
        %455 = vmatpush1.bf16.msra.mxu0 0
        %456 = vmatprep.subr.bf16.mxu0 0
        %457 = vmatpush1.bf16.msra.mxu0 0
        %458 = vmatprep.subr.bf16.mxu0 0
        %459 = vmatpush1.bf16.msra.mxu0 0
        %460 = vmatprep.subr.bf16.mxu0 0
        %461 = vmatpush1.bf16.msra.mxu0 0
        %462 = vmatprep.subr.bf16.mxu0 0
        %463 = vmatpush1.bf16.msra.mxu0 0
        %464 = vmatprep.subr.bf16.mxu0 0
        %465 = vmatpush1.bf16.msra.mxu0 0
        %466 = vmatprep.subr.bf16.mxu0 0
        %467 = vmatpush1.bf16.msra.mxu0 0
        %468 = vmatprep.subr.bf16.mxu0 0
        %469 = vmatpush1.bf16.msra.mxu0 0
        %470 = vmatprep.subr.bf16.mxu0 0
        %471 = vmatpush1.bf16.msra.mxu0 0
        %472 = vmatprep.subr.bf16.mxu0 0
        %473 = vmatpush1.bf16.msra.mxu0 0
        %474 = vmatprep.mubr.bf16.mxu0 0
        %475 = vmatmul.mubr.bf16.gmra.mrb[0].mxu0 %v434
        %v476 = vpop.f32.mrb[0].mxu0
        %v477 = vadd.f32 %v409, %v476
        %v478 = vpop.f32.mrb[0].mxu0
        %v479 = vpop.f32.mrb[0].mxu0
        %v480 = vadd.f32 %v412, %v479
        %v481 = vpop.f32.mrb[0].mxu0
        %482 = vmatprep.mubr.bf16.mxu0 0
        %483 = vmatmul.mubr.bf16.gmra.mrb[0].mxu0 %v437
        %v484 = vpop.f32.mrb[0].mxu0
        %v485 = vadd.f32 %v417, %v484
        %v486 = vpop.f32.mrb[0].mxu0
        %v487 = vpop.f32.mrb[0].mxu0
        %v488 = vadd.f32 %v420, %v487
        %v489 = vpop.f32.mrb[0].mxu0
        %490 = vdwg.mxu0
        %s491 = scalar_lea.vmem %s2, 32
        %v492 = vld [vmem:[%s491] sm:$0xf]
        %v493 = vld [vmem:[%s491 + $0x4] sm:$0xf]
        %v494 = vld [vmem:[%s491 + $0x8] sm:$0xf]
        %v495 = vld [vmem:[%s491 + $0xc] sm:$0xf]
        %v500 = vunpack.c.l.b16 %v492
        %v501 = vunpack.c.l.b16 %v493
        %v502 = vunpack.c.l.b16 %v494
        %v503 = vunpack.c.l.b16 %v495
        %v504 = vpack.c.b16 %v501, %v500
        %v505 = vpack.c.b16 %v503, %v502
        %506 = vrot.lane.b32.xlu0 %v334, 110
        %v507 = vpop.permute.xlu0 %506
        %508 = vrot.lane.b32.xlu0 %v335, 110
        %v509 = vpop.permute.xlu0 %508
        %vm510 = vcmask 900096
        %v511 = vsel %vm510, %v507, %v509
        %v513 = vsel %vm363, %v504, 0
        %v516 = vsel %vm363, %v505, 0
        %v519 = vsel %vm370, %v511, 0
        %521 = vmatprep.subr.bf16.mxu0 0
        %522 = vmatpush1.bf16.msra.mxu0 %v519
        %523 = vmatprep.subr.bf16.mxu0 0
        %524 = vmatpush1.bf16.msra.mxu0 0
        %525 = vmatprep.subr.bf16.mxu0 0
        %526 = vmatpush1.bf16.msra.mxu0 0
        %527 = vmatprep.subr.bf16.mxu0 0
        %528 = vmatpush1.bf16.msra.mxu0 0
        %529 = vmatprep.subr.bf16.mxu0 0
        %530 = vmatpush1.bf16.msra.mxu0 0
        %531 = vmatprep.subr.bf16.mxu0 0
        %532 = vmatpush1.bf16.msra.mxu0 0
        %533 = vmatprep.subr.bf16.mxu0 0
        %534 = vmatpush1.bf16.msra.mxu0 0
        %535 = vmatprep.subr.bf16.mxu0 0
        %536 = vmatpush1.bf16.msra.mxu0 0
        %537 = vmatprep.subr.bf16.mxu0 0
        %538 = vmatpush1.bf16.msra.mxu0 0
        %539 = vmatprep.subr.bf16.mxu0 0
        %540 = vmatpush1.bf16.msra.mxu0 0
        %541 = vmatprep.subr.bf16.mxu0 0
        %542 = vmatpush1.bf16.msra.mxu0 0
        %543 = vmatprep.subr.bf16.mxu0 0
        %544 = vmatpush1.bf16.msra.mxu0 0
        %545 = vmatprep.subr.bf16.mxu0 0
        %546 = vmatpush1.bf16.msra.mxu0 0
        %547 = vmatprep.subr.bf16.mxu0 0
        %548 = vmatpush1.bf16.msra.mxu0 0
        %549 = vmatprep.subr.bf16.mxu0 0
        %550 = vmatpush1.bf16.msra.mxu0 0
        %551 = vmatprep.subr.bf16.mxu0 0
        %552 = vmatpush1.bf16.msra.mxu0 0
        %553 = vmatprep.mubr.bf16.mxu0 0
        %554 = vmatmul.mubr.bf16.gmra.mrb[0].mxu0 %v513
        %v555 = vpop.f32.mrb[0].mxu0
        %v556 = vadd.f32 0.0, %v555
        %v557 = vpop.f32.mrb[0].mxu0
        %v558 = vpop.f32.mrb[0].mxu0
        %v559 = vadd.f32 0.0, %v558
        %v560 = vpop.f32.mrb[0].mxu0
        %561 = vmatprep.mubr.bf16.mxu0 0
        %562 = vmatmul.mubr.bf16.gmra.mrb[0].mxu0 %v516
        %v563 = vpop.f32.mrb[0].mxu0
        %v564 = vadd.f32 0.0, %v563
        %v565 = vpop.f32.mrb[0].mxu0
        %v566 = vpop.f32.mrb[0].mxu0
        %v567 = vadd.f32 0.0, %v566
        %v568 = vpop.f32.mrb[0].mxu0
        %569 = vdwg.mxu0
        %v570 = vadd.f32 %v477, %v556
        %v571 = vadd.f32 %v480, %v559
        %v572 = vadd.f32 %v485, %v564
        %v573 = vadd.f32 %v488, %v567
        %s574 = scalar_lea.vmem %s2, 48
        %v575 = vld [vmem:[%s574] sm:$0xf]
        %v576 = vld [vmem:[%s574 + $0x4] sm:$0xf]
        %v577 = vld [vmem:[%s574 + $0x8] sm:$0xf]
        %v578 = vld [vmem:[%s574 + $0xc] sm:$0xf]
        %v583 = vunpack.c.l.b16 %v575
        %v584 = vunpack.c.l.b16 %v576
        %v585 = vunpack.c.l.b16 %v577
        %v586 = vunpack.c.l.b16 %v578
        %v587 = vpack.c.b16 %v584, %v583
        %v588 = vpack.c.b16 %v586, %v585
        %589 = vrot.lane.b32.xlu0 %v334, 109
        %v590 = vpop.permute.xlu0 %589
        %591 = vrot.lane.b32.xlu0 %v335, 109
        %v592 = vpop.permute.xlu0 %591
        %vm593 = vcmask 891904
        %v594 = vsel %vm593, %v590, %v592
        %v596 = vsel %vm363, %v587, 0
        %v599 = vsel %vm363, %v588, 0
        %v602 = vsel %vm370, %v594, 0
        %604 = vmatprep.subr.bf16.mxu0 0
        %605 = vmatpush1.bf16.msra.mxu0 %v602
        %606 = vmatprep.subr.bf16.mxu0 0
        %607 = vmatpush1.bf16.msra.mxu0 0
        %608 = vmatprep.subr.bf16.mxu0 0
        %609 = vmatpush1.bf16.msra.mxu0 0
        %610 = vmatprep.subr.bf16.mxu0 0
        %611 = vmatpush1.bf16.msra.mxu0 0
        %612 = vmatprep.subr.bf16.mxu0 0
        %613 = vmatpush1.bf16.msra.mxu0 0
        %614 = vmatprep.subr.bf16.mxu0 0
        %615 = vmatpush1.bf16.msra.mxu0 0
        %616 = vmatprep.subr.bf16.mxu0 0
        %617 = vmatpush1.bf16.msra.mxu0 0
        %618 = vmatprep.subr.bf16.mxu0 0
        %619 = vmatpush1.bf16.msra.mxu0 0
        %620 = vmatprep.subr.bf16.mxu0 0
        %621 = vmatpush1.bf16.msra.mxu0 0
        %622 = vmatprep.subr.bf16.mxu0 0
        %623 = vmatpush1.bf16.msra.mxu0 0
        %624 = vmatprep.subr.bf16.mxu0 0
        %625 = vmatpush1.bf16.msra.mxu0 0
        %626 = vmatprep.subr.bf16.mxu0 0
        %627 = vmatpush1.bf16.msra.mxu0 0
        %628 = vmatprep.subr.bf16.mxu0 0
        %629 = vmatpush1.bf16.msra.mxu0 0
        %630 = vmatprep.subr.bf16.mxu0 0
        %631 = vmatpush1.bf16.msra.mxu0 0
        %632 = vmatprep.subr.bf16.mxu0 0
        %633 = vmatpush1.bf16.msra.mxu0 0
        %634 = vmatprep.subr.bf16.mxu0 0
        %635 = vmatpush1.bf16.msra.mxu0 0
        %636 = vmatprep.mubr.bf16.mxu0 0
        %637 = vmatmul.mubr.bf16.gmra.mrb[0].mxu0 %v596
        %v638 = vpop.f32.mrb[0].mxu0
        %v639 = vadd.f32 0.0, %v638
        %v640 = vpop.f32.mrb[0].mxu0
        %v641 = vpop.f32.mrb[0].mxu0
        %v642 = vadd.f32 0.0, %v641
        %v643 = vpop.f32.mrb[0].mxu0
        %644 = vmatprep.mubr.bf16.mxu0 0
        %645 = vmatmul.mubr.bf16.gmra.mrb[0].mxu0 %v599
        %v646 = vpop.f32.mrb[0].mxu0
        %v647 = vadd.f32 0.0, %v646
        %v648 = vpop.f32.mrb[0].mxu0
        %v649 = vpop.f32.mrb[0].mxu0
        %v650 = vadd.f32 0.0, %v649
        %v651 = vpop.f32.mrb[0].mxu0
        %652 = vdwg.mxu0
        %v653 = vadd.f32 %v570, %v639
        %v654 = vadd.f32 %v571, %v642
        %v655 = vadd.f32 %v572, %v647
        %v656 = vadd.f32 %v573, %v650
        %v657 = vld [vmem:[%s3] sm:$0xff]
        %v658 = vld [vmem:[%s3 + $0x8] sm:$0xff]
        %v659 = vld [vmem:[%s3 + $0x10] sm:$0xff]
        %v660 = vld [vmem:[%s3 + $0x18] sm:$0xff]
        %662 = vset.pattern.permute.xlu0 0
        %663 = vperm.xlu0 %662, %v657
        %v664 = vpop.permute.xlu0 %663
        %667 = vset.pattern.permute.xlu0 0
        %668 = vperm.xlu0 %667, %v658
        %v669 = vpop.permute.xlu0 %668
        %672 = vset.pattern.permute.xlu0 0
        %673 = vperm.xlu0 %672, %v659
        %v674 = vpop.permute.xlu0 %673
        %677 = vset.pattern.permute.xlu0 0
        %678 = vperm.xlu0 %677, %v660
        %v679 = vpop.permute.xlu0 %678
        %v681 = vadd.f32 %v653, %v664
        %v682 = vadd.f32 %v654, %v669
        %v683 = vadd.f32 %v655, %v674
        %v684 = vadd.f32 %v656, %v679
        %v685 = vpack.c.bf16 %v682, %v681
        %v686 = vpack.c.bf16 %v684, %v683
        %v689 = vunpack.c.l.b16 %v685
        %v690 = vunpack.c.h.b16 %v685
        %v691 = vunpack.c.l.b16 %v686
        %v692 = vunpack.c.h.b16 %v686
        %v693 = vpack.c.b16 %v689, %v689
        %v694 = vpack.c.b16 %v690, %v690
        %v695 = vpack.c.b16 %v691, %v691
        %v696 = vpack.c.b16 %v692, %v692
        %701 = vst [vmem:[%s295] sm:$0xf] %v693
        %702 = vst [vmem:[%s295 + $0x4] sm:$0xf] %v694
        %703 = vst [vmem:[%s295 + $0x8] sm:$0xf] %v695
        %704 = vst [vmem:[%s295 + $0xc] sm:$0xf] %v696
        %v705 = vld [vmem:[%s322] sm:$0x1]
        %v707 = vlaneseq
        %v708 = vshrl.u32 %v707, 7
        %v709 = vsub.s32 0, %v708
        %v710 = vrot.slane %v705, %v709
        %v712 = vmul.f32 %v681, %v710
        %v713 = vmul.f32 %v682, %v710
        %v714 = vmul.f32 %v683, %v710
        %v715 = vmul.f32 %v684, %v710
        %716 = vadd.xlane.f32.xlu0 %v712
        %v717 = vpop.xlane.xlu0 %716
        %718 = vadd.xlane.f32.xlu0 %v713
        %v719 = vpop.xlane.xlu0 %718
        %720 = vadd.xlane.f32.xlu0 %v714
        %v721 = vpop.xlane.xlu0 %720
        %722 = vadd.xlane.f32.xlu0 %v715
        %v723 = vpop.xlane.xlu0 %722
        %vm724 = vcmask 7168
        %725 = vst.msk [vmem:[%s327] sm:$0xff] %vm724, %v717
        %726 = vst.msk [vmem:[%s327 + $0x8] sm:$0xff] %vm724, %v719
        %727 = vst.msk [vmem:[%s327 + $0x10] sm:$0xff] %vm724, %v721
        %728 = vst.msk [vmem:[%s327 + $0x18] sm:$0xff] %vm724, %v723
        %v729 = vmul.f32 %v712, %v681
        %v730 = vmul.f32 %v713, %v682
        %v731 = vmul.f32 %v714, %v683
        %v732 = vmul.f32 %v715, %v684
        %733 = vadd.xlane.f32.xlu0 %v729
        %v734 = vpop.xlane.xlu0 %733
        %735 = vadd.xlane.f32.xlu0 %v730
        %v736 = vpop.xlane.xlu0 %735
        %737 = vadd.xlane.f32.xlu0 %v731
        %v738 = vpop.xlane.xlu0 %737
        %739 = vadd.xlane.f32.xlu0 %v732
        %v740 = vpop.xlane.xlu0 %739
        %741 = vst.msk [vmem:[%s332] sm:$0xff] %vm724, %v734
        %742 = vst.msk [vmem:[%s332 + $0x8] sm:$0xff] %vm724, %v736
        %743 = vst.msk [vmem:[%s332 + $0x10] sm:$0xff] %vm724, %v738
        %744 = vst.msk [vmem:[%s332 + $0x18] sm:$0xff] %vm724, %v740
        %s745 = sand.u32 %s149, 1
        %s746 = sand.u32 %s149, 1
        %s747 = smul.addr %s746, 16
        %s748 = scalar_lea.vmem [#allocation2], %s747
        %p749 = scmp.lt.s32.totalorder %s19, 5
        %s750 = scalar_select %p749, %s19, 5
        %s751 = smul.addr %s750, 4
        %s752 = smul.addr %s751, 8
        %s753 = scalar_lea.vmem %s6, %s752
        %p754 = scmp.lt.s32.totalorder %s19, 5
        %s755 = scalar_select %p754, %s19, 5
        %s756 = smul.addr %s755, 4
        %s757 = smul.addr %s756, 8
        %s758 = scalar_lea.vmem %s7, %s757
        // Predicated region
        $region41: #{basic_block_to_crop_forward.3} parent=39 // pred_check
          %p759 = pneg %p159
        $region42: #{basic_block_to_crop_forward.3} parent=39 // pred_check_branch
          %761 = sbr.rel (%p759) target = $region44
        $region43: #{basic_block_to_crop_forward.3} parent=39 // pred_region
          %s762 = smul.addr %s19, 4
          %s763 = scalar_lea.vmem %s5, %s762
          // Predicated region
          $region45: #{basic_block_to_crop_forward.3} parent=43 // pred_check
            _
          $region46: #{basic_block_to_crop_forward.3} parent=43 // pred_check_branch
            %765 = sbr.rel (0) target = $region48
          $region47: #{basic_block_to_crop_forward.3} parent=43 // pred_region
            // Predicated region
            $region49: #{basic_block_to_crop_forward.3} parent=47 // pred_check
              _
            $region50: #{basic_block_to_crop_forward.3} parent=47 // pred_check_branch
              %767 = sbr.rel target = $region52
            $region51: #{basic_block_to_crop_forward.3} parent=47 // pred_region
              // Predicated region
              $region64: #{basic_block_to_crop_forward.3} parent=51 // pred_check
                _
              $region65: #{basic_block_to_crop_forward.3} parent=51 // pred_check_branch
                %788 = sbr.rel (0) target = $region67
              $region66: #{basic_block_to_crop_forward.3} parent=51 // pred_region
                loop: start=0, step=1, limit=1
                $region68: #{basic_block_to_crop_forward.3} parent=66 // loop_pre_header
                  _
                $region69: #{basic_block_to_crop_forward.3} parent=66 // loop_header
                  %s790 = sphi 0, %s794
                  %p791 = scmp.ge.s32.totalorder %s790, 1
                  %s795 = sphi %s748, %s748
                  %s796 = sphi %s763, %s763
                $region70: #{basic_block_to_crop_forward.3} parent=66 // loop_header_branch
                  %793 = sbr.rel (%p791) target = $region74
                $region71: #{basic_block_to_crop_forward.3} parent=66 // loop_body
                  _
                $region72: #{basic_block_to_crop_forward.3} parent=66 // loop_footer
                  %s794 = sadd.s32 1, %s790
                $region73: #{basic_block_to_crop_forward.3} parent=66 // loop_footer_branch
                  %789 = sbr.rel target = $region69
                $region74: #{basic_block_to_crop_forward.3} parent=66 // loop_exit
                  _
                loop: start=0, step=1, limit=1
                $region75: #{basic_block_to_crop_forward.3} parent=66 // loop_pre_header
                  _
                $region76: #{basic_block_to_crop_forward.3} parent=66 // loop_header
                  %s799 = sphi 0, %s803
                  %p800 = scmp.ge.s32.totalorder %s799, 1
                  %s804 = sphi %s748, %s748
                  %s805 = sphi %s763, %s763
                $region77: #{basic_block_to_crop_forward.3} parent=66 // loop_header_branch
                  %802 = sbr.rel (%p800) target = $region81
                $region78: #{basic_block_to_crop_forward.3} parent=66 // loop_body
                  %v806 = vld [vmem:[%s804] sm:$0xf]
                  %807 = vst [vmem:[%s805] sm:$0xf] %v806
                  %v808 = vld [vmem:[%s804 + $0x4] sm:$0xf]
                  %809 = vst [vmem:[%s805 + $0x18] sm:$0xf] %v808
                  %v810 = vld [vmem:[%s804 + $0x8] sm:$0xf]
                  %811 = vst [vmem:[%s805 + $0x30] sm:$0xf] %v810
                  %v812 = vld [vmem:[%s804 + $0xc] sm:$0xf]
                  %813 = vst [vmem:[%s805 + $0x48] sm:$0xf] %v812
                $region79: #{basic_block_to_crop_forward.3} parent=66 // loop_footer
                  %s803 = sadd.s32 1, %s799
                $region80: #{basic_block_to_crop_forward.3} parent=66 // loop_footer_branch
                  %798 = sbr.rel target = $region76
                $region81: #{basic_block_to_crop_forward.3} parent=66 // loop_exit
                  _
              $region67: #{basic_block_to_crop_forward.3} parent=51 // pred_fallthru
                _
            $region52: #{basic_block_to_crop_forward.3} parent=47 // pred_fallthru
              _
            // Predicated region
            $region53: #{basic_block_to_crop_forward.3} parent=47 // pred_check
              _
            $region54: #{basic_block_to_crop_forward.3} parent=47 // pred_check_branch
              %769 = sbr.rel (0) target = $region56
            $region55: #{basic_block_to_crop_forward.3} parent=47 // pred_region
              loop: start=0, step=1, limit=1
              $region57: #{basic_block_to_crop_forward.3} parent=55 // loop_pre_header
                _
              $region58: #{basic_block_to_crop_forward.3} parent=55 // loop_header
                %s772 = sphi 0, %s776
                %p773 = scmp.ge.s32.totalorder %s772, 1
                %s777 = sphi %s748, %s748
                %s778 = sphi %s763, %s763
              $region59: #{basic_block_to_crop_forward.3} parent=55 // loop_header_branch
                %775 = sbr.rel (%p773) target = $region63
              $region60: #{basic_block_to_crop_forward.3} parent=55 // loop_body
                %v779 = vld [vmem:[%s777] sm:$0xf]
                %780 = vst [vmem:[%s778] sm:$0xf] %v779
                %v781 = vld [vmem:[%s777 + $0x4] sm:$0xf]
                %782 = vst [vmem:[%s778 + $0x18] sm:$0xf] %v781
                %v783 = vld [vmem:[%s777 + $0x8] sm:$0xf]
                %784 = vst [vmem:[%s778 + $0x30] sm:$0xf] %v783
                %v785 = vld [vmem:[%s777 + $0xc] sm:$0xf]
                %786 = vst [vmem:[%s778 + $0x48] sm:$0xf] %v785
              $region61: #{basic_block_to_crop_forward.3} parent=55 // loop_footer
                %s776 = sadd.s32 1, %s772
              $region62: #{basic_block_to_crop_forward.3} parent=55 // loop_footer_branch
                %771 = sbr.rel target = $region58
              $region63: #{basic_block_to_crop_forward.3} parent=55 // loop_exit
                _
            $region56: #{basic_block_to_crop_forward.3} parent=47 // pred_fallthru
              _
          $region48: #{basic_block_to_crop_forward.3} parent=43 // pred_fallthru
            _
          %814 = vnop
        $region44: #{basic_block_to_crop_forward.3} parent=39 // pred_fallthru
          _
        // Predicated region
        $region82: #{basic_block_to_crop_forward.3} parent=39 // pred_check
          %p815 = pneg %p185
        $region83: #{basic_block_to_crop_forward.3} parent=39 // pred_check_branch
          %817 = sbr.rel (%p815) target = $region85
        $region84: #{basic_block_to_crop_forward.3} parent=39 // pred_region
          _
        $region85: #{basic_block_to_crop_forward.3} parent=39 // pred_fallthru
          _
        // Predicated region
        $region86: #{basic_block_to_crop_forward.3} parent=39 // pred_check
          %p818 = pneg %p211
        $region87: #{basic_block_to_crop_forward.3} parent=39 // pred_check_branch
          %820 = sbr.rel (%p818) target = $region89
        $region88: #{basic_block_to_crop_forward.3} parent=39 // pred_region
          _
        $region89: #{basic_block_to_crop_forward.3} parent=39 // pred_fallthru
          _
      $region40: #{basic_block_to_crop_forward.3} parent=5 // pred_fallthru
        _
      %p821 = scmp.le.s32.totalorder 2, %s14
      // Predicated region
      $region90: #{basic_block_to_crop_forward.3} parent=5 // pred_check
        %p822 = pneg %p821
      $region91: #{basic_block_to_crop_forward.3} parent=5 // pred_check_branch
        %824 = sbr.rel (%p822) target = $region93
      $region92: #{basic_block_to_crop_forward.3} parent=5 // pred_region
        %s825 = ssub.s32 %s14, 2
        // Predicated region
        $region94: #{basic_block_to_crop_forward.3} parent=92 // pred_check
          %p826 = pneg %p165
        $region95: #{basic_block_to_crop_forward.3} parent=92 // pred_check_branch
          %828 = sbr.rel (%p826) target = $region97
        $region96: #{basic_block_to_crop_forward.3} parent=92 // pred_region
          %s829 = sand.u32 %s150, 1
          %s830 = sand.u32 %s150, 1
          %s831 = smul.addr %s830, 16
          %s832 = scalar_lea.vmem [#allocation2], %s831
        $region97: #{basic_block_to_crop_forward.3} parent=92 // pred_fallthru
          _
        // Predicated region
        $region98: #{basic_block_to_crop_forward.3} parent=92 // pred_check
          %p833 = pneg %p191
        $region99: #{basic_block_to_crop_forward.3} parent=92 // pred_check_branch
          %835 = sbr.rel (%p833) target = $region101
        $region100: #{basic_block_to_crop_forward.3} parent=92 // pred_region
          %p836 = scmp.lt.s32.totalorder %s20, 5
          %s837 = scalar_select %p836, %s20, 5
          %s838 = smul.addr %s837, 4
          %s839 = smul.addr %s838, 8
          %s840 = scalar_lea.vmem %s6, %s839
        $region101: #{basic_block_to_crop_forward.3} parent=92 // pred_fallthru
          _
        // Predicated region
        $region102: #{basic_block_to_crop_forward.3} parent=92 // pred_check
          %p841 = pneg %p217
        $region103: #{basic_block_to_crop_forward.3} parent=92 // pred_check_branch
          %843 = sbr.rel (%p841) target = $region105
        $region104: #{basic_block_to_crop_forward.3} parent=92 // pred_region
          %p844 = scmp.lt.s32.totalorder %s20, 5
          %s845 = scalar_select %p844, %s20, 5
          %s846 = smul.addr %s845, 4
          %s847 = smul.addr %s846, 8
          %s848 = scalar_lea.vmem %s7, %s847
        $region105: #{basic_block_to_crop_forward.3} parent=92 // pred_fallthru
          _
      $region93: #{basic_block_to_crop_forward.3} parent=5 // pred_fallthru
        _
    $region6: #{basic_block_to_crop_forward.3} parent=1 // loop_footer
      %s18 = sadd.s32 1, %s14
    $region7: #{basic_block_to_crop_forward.3} parent=1 // loop_footer_branch
      %13 = sbr.rel target = $region3
    $region8: #{basic_block_to_crop_forward.3} parent=1 // loop_exit
      _

// kernel: tile.24
$region0: #{tile.24}
  #allocation0 [shape = 's32[1]{0}', space=sflag, size = 0x4, scoped, tag = 'scoped memory for tile.24']
  %s0 = inlined_call_operand.vmem [shape: f32[36,36], index: 0, kind: input, shape index: {}]
  %s1 = inlined_call_operand.vmem [shape: f32[2,1,1,36,1,36], index: 1, kind: output, shape index: {}]
  // Predicated region
  $region2: #{tile.24} parent=0 // pred_check
    _
  $region3: #{tile.24} parent=0 // pred_check_branch
    %3 = sbr.rel (0) target = $region5
  $region4: #{tile.24} parent=0 // pred_region
    _
  $region5: #{tile.24} parent=0 // pred_fallthru
    _
  %v4 = vld [vmem:[%s0] sm:$0xff]
  %5 = vst [vmem:[%s1] sm:$0xff] %v4
  %s6 = scalar_lea.vmem %s1, 40
  %7 = vst [vmem:[%s6] sm:$0xff] %v4
  %s8 = scalar_lea.vmem %s0, 8
  %v9 = vld [vmem:[%s8] sm:$0xff]
  %s10 = scalar_lea.vmem %s1, 8
  %11 = vst [vmem:[%s10] sm:$0xff] %v9
  %s12 = scalar_lea.vmem %s1, 48
  %13 = vst [vmem:[%s12] sm:$0xff] %v9
  %s14 = scalar_lea.vmem %s0, 16
  %v15 = vld [vmem:[%s14] sm:$0xff]
  %s16 = scalar_lea.vmem %s1, 16
  %17 = vst [vmem:[%s16] sm:$0xff] %v15
  %s18 = scalar_lea.vmem %s1, 56
  %19 = vst [vmem:[%s18] sm:$0xff] %v15
  %s20 = scalar_lea.vmem %s0, 24
  %v21 = vld [vmem:[%s20] sm:$0xff]
  %s22 = scalar_lea.vmem %s1, 24
  %23 = vst [vmem:[%s22] sm:$0xff] %v21
  %s24 = scalar_lea.vmem %s1, 64
  %25 = vst [vmem:[%s24] sm:$0xff] %v21
  %s26 = scalar_lea.vmem %s0, 32
  %v27 = vld [vmem:[%s26] sm:$0xff]
  %s28 = scalar_lea.vmem %s1, 32
  %29 = vst [vmem:[%s28] sm:$0xff] %v27
  %s30 = scalar_lea.vmem %s1, 72
  %31 = vst [vmem:[%s30] sm:$0xff] %v27

// kernel: tile.25
$region0: #{tile.25}
  %s0 = inlined_call_operand.vmem [shape: f32[2,1,1,36,1,36], index: 0, kind: input, shape index: {}]
  %s1 = inlined_call_operand.vmem [shape: f32[1,2592], index: 1, kind: output, shape index: {}]
  $region1: #{tile.25} parent=0
    #allocation0 [shape = 'u8[86016]{0}', space=vmem, size = 0x15000, scoped, tag = 'scoped mem for output reshape']
    %v2 = vld [vmem:[%s0] sm:$0x1]
    %s3 = scalar_lea.vmem %s0, 31
    %v4 = vld [vmem:[%s3] sm:$0x2]
    %vm5 = vcmask 1041409
    %v6 = vsel %vm5, %v4, %v2
    %vm7 = vcmask 293888
    %8 = vst.msk [vmem:[#allocation0] ss:$72 sm:$0x3] %vm7, %v6
    %s9 = scalar_lea.vmem %s0, 68
    %v10 = vld [vmem:[%s9] sm:$0x1]
    %vm11 = vcmask 293888
    %s12 = scalar_lea.vmem [#allocation0], 144
    %13 = vst.msk [vmem:[%s12] sm:$0x1] %vm11, %v10
    %s14 = scalar_lea.vmem %s0, 75
    %s15 = smov 3
    %v16 = vld [vmem:[%s14] ss:$-68 sm:%s15]
    %s17 = scalar_lea.vmem %s0, 41
    %v18 = vld [vmem:[%s17] sm:$0x4]
    %vm19 = vcmask 1042434
    %v20 = vsel %vm19, %v18, %v16
    %s21 = scalar_lea.vmem %s0, 7
    %s22 = smov 3
    %v23 = vld [vmem:[%s21] ss:$36 sm:%s22]
    %s24 = scalar_lea.vmem %s0, 73
    %v25 = vld [vmem:[%s24] sm:$0x4]
    %vm26 = vcmask 1042434
    %v27 = vsel %vm26, %v25, %v23
    %vm28 = vcmask 31744
    %v29 = vsel %vm28, %v27, %v20
    %30 = vrot.lane.b32.xlu0 %v29, 124
    %v31 = vpop.permute.xlu0 %30
    %vm32 = vcmask 261120
    %s33 = scalar_lea.vmem [#allocation0], 160
    %34 = vst.msk [vmem:[%s33] ss:$-144 sm:$0x3] %vm32, %v31
    %s35 = scalar_lea.vmem [#allocation0], 86
    %36 = vst.msk [vmem:[%s35] sm:$0x4] %vm32, %v31
    %vm37 = vcmask 1048544
    %s38 = scalar_lea.vmem [#allocation0], 8
    %39 = vst.msk [vmem:[%s38] ss:$72 sm:$0x7] %vm37, %v31
    %s40 = scalar_lea.vmem %s0, 14
    %s41 = smov 3
    %v42 = vld [vmem:[%s40] ss:$36 sm:%s41]
    %s43 = scalar_lea.vmem %s0, 50
    %s44 = smov 3
    %v45 = vld [vmem:[%s43] ss:$-36 sm:%s44]
    %vm46 = vcmask 64512
    %v47 = vsel %vm46, %v45, %v42
    %48 = vrot.lane.b32.xlu0 %v47, 120
    %v49 = vpop.permute.xlu0 %48
    %vm50 = vcmask 228352
    %s51 = scalar_lea.vmem [#allocation0], 32
    %52 = vst.msk [vmem:[%s51] ss:$72 sm:$0x3] %vm50, %v49
    %vm53 = vcmask 1048512
    %s54 = scalar_lea.vmem [#allocation0], 96
    %55 = vst.msk [vmem:[%s54] ss:$-72 sm:$0x3] %vm53, %v49
    %s56 = scalar_lea.vmem %s0, 21
    %s57 = smov 3
    %v58 = vld [vmem:[%s56] ss:$36 sm:%s57]
    %s59 = scalar_lea.vmem %s0, 21
    %s60 = smov 3
    %v61 = vld [vmem:[%s59] ss:$36 sm:%s60]
    %vm62 = vcmask 97280
    %v63 = vsel %vm62, %v61, %v58
    %64 = vrot.lane.b32.xlu0 %v63, 116
    %v65 = vpop.permute.xlu0 %64
    %vm66 = vcmask 195584
    %s67 = scalar_lea.vmem [#allocation0], 48
    %68 = vst.msk [vmem:[%s67] ss:$72 sm:$0x3] %vm66, %v65
    %vm69 = vcmask 1048480
    %s70 = scalar_lea.vmem [#allocation0], 40
    %71 = vst.msk [vmem:[%s70] ss:$72 sm:$0x3] %vm69, %v65
    %s72 = scalar_lea.vmem %s0, 28
    %s73 = smov 3
    %v74 = vld [vmem:[%s72] ss:$36 sm:%s73]
    %s75 = scalar_lea.vmem %s0, 64
    %s76 = smov 3
    %v77 = vld [vmem:[%s75] ss:$-36 sm:%s76]
    %vm78 = vcmask 130048
    %v79 = vsel %vm78, %v77, %v74
    %80 = vrot.lane.b32.xlu0 %v79, 112
    %v81 = vpop.permute.xlu0 %80
    %vm82 = vcmask 162816
    %s83 = scalar_lea.vmem [#allocation0], 64
    %84 = vst.msk [vmem:[%s83] ss:$72 sm:$0x3] %vm82, %v81
    %vm85 = vcmask 1048448
    %s86 = scalar_lea.vmem [#allocation0], 128
    %87 = vst.msk [vmem:[%s86] ss:$-72 sm:$0x3] %vm85, %v81
    %s88 = scalar_lea.vmem %s0, 3
    %v89 = vld [vmem:[%s88] sm:$0x1]
    %s90 = scalar_lea.vmem %s0, 4294967295
    %s91 = smov 6
    %v92 = vld [vmem:[%s90] ss:$36 sm:%s91]
    %vm93 = vcmask 1042433
    %v94 = vsel %vm93, %v92, %v89
    %s95 = scalar_lea.vmem %s0, 3
    %v96 = vld [vmem:[%s95] sm:$0x1]
    %s97 = scalar_lea.vmem %s0, 4294967295
    %s98 = smov 6
    %v99 = vld [vmem:[%s97] ss:$36 sm:%s98]
    %vm100 = vcmask 1042433
    %v101 = vsel %vm100, %v99, %v96
    %vm102 = vcmask 162816
    %v103 = vsel %vm102, %v101, %v94
    %104 = vrot.lane.b32.xlu0 %v103, 108
    %v105 = vpop.permute.xlu0 %104
    %vm106 = vcmask 130048
    %s107 = scalar_lea.vmem [#allocation0], 8
    %108 = vst.msk [vmem:[%s107] ss:$72 sm:$0x7] %vm106, %v105
    %vm109 = vcmask 1048416
    %110 = vst.msk [vmem:[#allocation0] ss:$72 sm:$0x7] %vm109, %v105
    %s111 = scalar_lea.vmem %s0, 46
    %s112 = smov 3
    %v113 = vld [vmem:[%s111] ss:$-36 sm:%s112]
    %s114 = scalar_lea.vmem %s0, 10
    %s115 = smov 3
    %v116 = vld [vmem:[%s114] ss:$36 sm:%s115]
    %vm117 = vcmask 195584
    %v118 = vsel %vm117, %v116, %v113
    %119 = vrot.lane.b32.xlu0 %v118, 104
    %v120 = vpop.permute.xlu0 %119
    %vm121 = vcmask 97280
    %s122 = scalar_lea.vmem [#allocation0], 96
    %123 = vst.msk [vmem:[%s122] ss:$-72 sm:$0x3] %vm121, %v120
    %vm124 = vcmask 1048384
    %s125 = scalar_lea.vmem [#allocation0], 16
    %126 = vst.msk [vmem:[%s125] ss:$72 sm:$0x3] %vm124, %v120
    %s127 = scalar_lea.vmem %s0, 17
    %s128 = smov 3
    %v129 = vld [vmem:[%s127] ss:$36 sm:%s128]
    %s130 = scalar_lea.vmem %s0, 17
    %s131 = smov 3
    %v132 = vld [vmem:[%s130] ss:$36 sm:%s131]
    %vm133 = vcmask 228352
    %v134 = vsel %vm133, %v132, %v129
    %135 = vrot.lane.b32.xlu0 %v134, 100
    %v136 = vpop.permute.xlu0 %135
    %vm137 = vcmask 64512
    %s138 = scalar_lea.vmem [#allocation0], 40
    %139 = vst.msk [vmem:[%s138] ss:$72 sm:$0x3] %vm137, %v136
    %vm140 = vcmask 1048352
    %s141 = scalar_lea.vmem [#allocation0], 32
    %142 = vst.msk [vmem:[%s141] ss:$72 sm:$0x3] %vm140, %v136
    %s143 = scalar_lea.vmem %s0, 60
    %s144 = smov 3
    %v145 = vld [vmem:[%s143] ss:$-36 sm:%s144]
    %s146 = scalar_lea.vmem %s0, 24
    %s147 = smov 3
    %v148 = vld [vmem:[%s146] ss:$36 sm:%s147]
    %vm149 = vcmask 261120
    %v150 = vsel %vm149, %v148, %v145
    %151 = vrot.lane.b32.xlu0 %v150, 96
    %v152 = vpop.permute.xlu0 %151
    %vm153 = vcmask 31744
    %s154 = scalar_lea.vmem [#allocation0], 128
    %155 = vst.msk [vmem:[%s154] ss:$-72 sm:$0x3] %vm153, %v152
    %vm156 = vcmask 1048320
    %s157 = scalar_lea.vmem [#allocation0], 48
    %158 = vst.msk [vmem:[%s157] ss:$72 sm:$0x3] %vm156, %v152
    %s159 = scalar_lea.vmem %s0, 31
    %s160 = smov 3
    %v161 = vld [vmem:[%s159] ss:$36 sm:%s160]
    %162 = vrot.lane.b32.xlu0 %v161, 92
    %v163 = vpop.permute.xlu0 %162
    %vm164 = vcmask 1048288
    %s165 = scalar_lea.vmem [#allocation0], 64
    %166 = vst.msk [vmem:[%s165] ss:$72 sm:$0x3] %vm164, %v163
    %s167 = scalar_lea.vmem %s0, 6
    %s168 = smov 3
    %v169 = vld [vmem:[%s167] ss:$36 sm:%s168]
    %s170 = scalar_lea.vmem %s0, 72
    %v171 = vld [vmem:[%s170] sm:$0x4]
    %vm172 = vcmask 1042434
    %v173 = vsel %vm172, %v171, %v169
    %174 = vrot.lane.b32.xlu0 %v173, 88
    %v175 = vpop.permute.xlu0 %174
    %vm176 = vcmask 1015488
    %s177 = scalar_lea.vmem [#allocation0], 8
    %178 = vst.msk [vmem:[%s177] ss:$72 sm:$0x7] %vm176, %v175
    %s179 = scalar_lea.vmem %s0, 49
    %s180 = smov 3
    %v181 = vld [vmem:[%s179] ss:$-36 sm:%s180]
    %182 = vrot.lane.b32.xlu0 %v181, 84
    %v183 = vpop.permute.xlu0 %182
    %vm184 = vcmask 982688
    %s185 = scalar_lea.vmem [#allocation0], 96
    %186 = vst.msk [vmem:[%s185] ss:$-72 sm:$0x3] %vm184, %v183
    %s187 = scalar_lea.vmem %s0, 20
    %s188 = smov 3
    %v189 = vld [vmem:[%s187] ss:$36 sm:%s188]
    %190 = vrot.lane.b32.xlu0 %v189, 80
    %v191 = vpop.permute.xlu0 %190
    %vm192 = vcmask 949888
    %s193 = scalar_lea.vmem [#allocation0], 40
    %194 = vst.msk [vmem:[%s193] ss:$72 sm:$0x3] %vm192, %v191
    %s195 = scalar_lea.vmem %s0, 63
    %s196 = smov 3
    %v197 = vld [vmem:[%s195] ss:$-36 sm:%s196]
    %198 = vrot.lane.b32.xlu0 %v197, 76
    %v199 = vpop.permute.xlu0 %198
    %vm200 = vcmask 917088
    %s201 = scalar_lea.vmem [#allocation0], 128
    %202 = vst.msk [vmem:[%s201] ss:$-72 sm:$0x3] %vm200, %v199
    %s203 = scalar_lea.vmem %s0, 2
    %v204 = vld [vmem:[%s203] sm:$0x1]
    %s205 = scalar_lea.vmem %s0, 4294967294
    %s206 = smov 6
    %v207 = vld [vmem:[%s205] ss:$36 sm:%s206]
    %vm208 = vcmask 1042433
    %v209 = vsel %vm208, %v207, %v204
    %210 = vrot.lane.b32.xlu0 %v209, 72
    %v211 = vpop.permute.xlu0 %210
    %vm212 = vcmask 884288
    %213 = vst.msk [vmem:[#allocation0] ss:$72 sm:$0x7] %vm212, %v211
    %s214 = scalar_lea.vmem %s0, 9
    %s215 = smov 3
    %v216 = vld [vmem:[%s214] ss:$36 sm:%s215]
    %217 = vrot.lane.b32.xlu0 %v216, 68
    %v218 = vpop.permute.xlu0 %217
    %vm219 = vcmask 851488
    %s220 = scalar_lea.vmem [#allocation0], 16
    %221 = vst.msk [vmem:[%s220] ss:$72 sm:$0x3] %vm219, %v218
    %s222 = scalar_lea.vmem %s0, 16
    %s223 = smov 3
    %v224 = vld [vmem:[%s222] ss:$36 sm:%s223]
    %225 = vrot.lane.b32.xlu0 %v224, 64
    %v226 = vpop.permute.xlu0 %225
    %vm227 = vcmask 818688
    %s228 = scalar_lea.vmem [#allocation0], 32
    %229 = vst.msk [vmem:[%s228] ss:$72 sm:$0x3] %vm227, %v226
    %s230 = scalar_lea.vmem %s0, 23
    %s231 = smov 3
    %v232 = vld [vmem:[%s230] ss:$36 sm:%s231]
    %233 = vrot.lane.b32.xlu0 %v232, 60
    %v234 = vpop.permute.xlu0 %233
    %vm235 = vcmask 785888
    %s236 = scalar_lea.vmem [#allocation0], 48
    %237 = vst.msk [vmem:[%s236] ss:$72 sm:$0x3] %vm235, %v234
    %s238 = scalar_lea.vmem %s0, 30
    %s239 = smov 3
    %v240 = vld [vmem:[%s238] ss:$36 sm:%s239]
    %241 = vrot.lane.b32.xlu0 %v240, 56
    %v242 = vpop.permute.xlu0 %241
    %vm243 = vcmask 753088
    %s244 = scalar_lea.vmem [#allocation0], 64
    %245 = vst.msk [vmem:[%s244] ss:$72 sm:$0x3] %vm243, %v242
    %s246 = scalar_lea.vmem %s0, 5
    %s247 = smov 3
    %v248 = vld [vmem:[%s246] ss:$36 sm:%s247]
    %s249 = scalar_lea.vmem %s0, 71
    %v250 = vld [vmem:[%s249] sm:$0x4]
    %vm251 = vcmask 1042434
    %v252 = vsel %vm251, %v250, %v248
    %253 = vrot.lane.b32.xlu0 %v252, 52
    %v254 = vpop.permute.xlu0 %253
    %vm255 = vcmask 720288
    %s256 = scalar_lea.vmem [#allocation0], 8
    %257 = vst.msk [vmem:[%s256] ss:$72 sm:$0x7] %vm255, %v254
    %s258 = scalar_lea.vmem %s0, 48
    %s259 = smov 3
    %v260 = vld [vmem:[%s258] ss:$-36 sm:%s259]
    %261 = vrot.lane.b32.xlu0 %v260, 48
    %v262 = vpop.permute.xlu0 %261
    %vm263 = vcmask 687488
    %s264 = scalar_lea.vmem [#allocation0], 96
    %265 = vst.msk [vmem:[%s264] ss:$-72 sm:$0x3] %vm263, %v262
    %s266 = scalar_lea.vmem %s0, 19
    %s267 = smov 3
    %v268 = vld [vmem:[%s266] ss:$36 sm:%s267]
    %269 = vrot.lane.b32.xlu0 %v268, 44
    %v270 = vpop.permute.xlu0 %269
    %vm271 = vcmask 654688
    %s272 = scalar_lea.vmem [#allocation0], 40
    %273 = vst.msk [vmem:[%s272] ss:$72 sm:$0x3] %vm271, %v270
    %s274 = scalar_lea.vmem %s0, 62
    %s275 = smov 3
    %v276 = vld [vmem:[%s274] ss:$-36 sm:%s275]
    %277 = vrot.lane.b32.xlu0 %v276, 40
    %v278 = vpop.permute.xlu0 %277
    %vm279 = vcmask 621888
    %s280 = scalar_lea.vmem [#allocation0], 128
    %281 = vst.msk [vmem:[%s280] ss:$-72 sm:$0x3] %vm279, %v278
    %s282 = scalar_lea.vmem %s0, 1
    %v283 = vld [vmem:[%s282] sm:$0x1]
    %s284 = scalar_lea.vmem %s0, 4294967293
    %s285 = smov 6
    %v286 = vld [vmem:[%s284] ss:$36 sm:%s285]
    %vm287 = vcmask 1042433
    %v288 = vsel %vm287, %v286, %v283
    %289 = vrot.lane.b32.xlu0 %v288, 36
    %v290 = vpop.permute.xlu0 %289
    %vm291 = vcmask 589088
    %292 = vst.msk [vmem:[#allocation0] ss:$72 sm:$0x7] %vm291, %v290
    %s293 = scalar_lea.vmem %s0, 8
    %s294 = smov 3
    %v295 = vld [vmem:[%s293] ss:$36 sm:%s294]
    %296 = vrot.lane.b32.xlu0 %v295, 32
    %v297 = vpop.permute.xlu0 %296
    %vm298 = vcmask 556288
    %s299 = scalar_lea.vmem [#allocation0], 16
    %300 = vst.msk [vmem:[%s299] ss:$72 sm:$0x3] %vm298, %v297
    %s301 = scalar_lea.vmem %s0, 15
    %s302 = smov 3
    %v303 = vld [vmem:[%s301] ss:$36 sm:%s302]
    %304 = vrot.lane.b32.xlu0 %v303, 28
    %v305 = vpop.permute.xlu0 %304
    %vm306 = vcmask 523488
    %s307 = scalar_lea.vmem [#allocation0], 32
    %308 = vst.msk [vmem:[%s307] ss:$72 sm:$0x3] %vm306, %v305
    %s309 = scalar_lea.vmem %s0, 22
    %s310 = smov 3
    %v311 = vld [vmem:[%s309] ss:$36 sm:%s310]
    %312 = vrot.lane.b32.xlu0 %v311, 24
    %v313 = vpop.permute.xlu0 %312
    %vm314 = vcmask 490688
    %s315 = scalar_lea.vmem [#allocation0], 48
    %316 = vst.msk [vmem:[%s315] ss:$72 sm:$0x3] %vm314, %v313
    %s317 = scalar_lea.vmem %s0, 29
    %s318 = smov 3
    %v319 = vld [vmem:[%s317] ss:$36 sm:%s318]
    %320 = vrot.lane.b32.xlu0 %v319, 20
    %v321 = vpop.permute.xlu0 %320
    %vm322 = vcmask 457888
    %s323 = scalar_lea.vmem [#allocation0], 64
    %324 = vst.msk [vmem:[%s323] ss:$72 sm:$0x3] %vm322, %v321
    %s325 = scalar_lea.vmem %s0, 4
    %s326 = smov 3
    %v327 = vld [vmem:[%s325] ss:$36 sm:%s326]
    %s328 = scalar_lea.vmem %s0, 70
    %v329 = vld [vmem:[%s328] sm:$0x4]
    %vm330 = vcmask 1042434
    %v331 = vsel %vm330, %v329, %v327
    %332 = vrot.lane.b32.xlu0 %v331, 16
    %v333 = vpop.permute.xlu0 %332
    %vm334 = vcmask 425088
    %s335 = scalar_lea.vmem [#allocation0], 8
    %336 = vst.msk [vmem:[%s335] ss:$72 sm:$0x7] %vm334, %v333
    %s337 = scalar_lea.vmem %s0, 47
    %s338 = smov 3
    %v339 = vld [vmem:[%s337] ss:$-36 sm:%s338]
    %340 = vrot.lane.b32.xlu0 %v339, 12
    %v341 = vpop.permute.xlu0 %340
    %vm342 = vcmask 392288
    %s343 = scalar_lea.vmem [#allocation0], 96
    %344 = vst.msk [vmem:[%s343] ss:$-72 sm:$0x3] %vm342, %v341
    %s345 = scalar_lea.vmem %s0, 18
    %s346 = smov 3
    %v347 = vld [vmem:[%s345] ss:$36 sm:%s346]
    %348 = vrot.lane.b32.xlu0 %v347, 8
    %v349 = vpop.permute.xlu0 %348
    %vm350 = vcmask 359488
    %s351 = scalar_lea.vmem [#allocation0], 40
    %352 = vst.msk [vmem:[%s351] ss:$72 sm:$0x3] %vm350, %v349
    %s353 = scalar_lea.vmem %s0, 61
    %s354 = smov 3
    %v355 = vld [vmem:[%s353] ss:$-36 sm:%s354]
    %356 = vrot.lane.b32.xlu0 %v355, 4
    %v357 = vpop.permute.xlu0 %356
    %vm358 = vcmask 326688
    %s359 = scalar_lea.vmem [#allocation0], 128
    %360 = vst.msk [vmem:[%s359] ss:$-72 sm:$0x3] %vm358, %v357
    %s362 = sshllo.u32 0, 1
    %v364 = vld [vmem:[#allocation0] sm:%s362]
    %s365 = sshllo.u32 0, 1
    %366 = vst [vmem:[%s1] sm:%s365] %v364
    %s367 = scalar_lea.vmem [#allocation0], 8
    %v368 = vld [vmem:[%s367] sm:%s362]
    %s369 = sshllo.u32 0, 1
    %s370 = scalar_lea.vmem %s1, 1
    %371 = vst [vmem:[%s370] sm:%s369] %v368
    %s372 = scalar_lea.vmem [#allocation0], 16
    %v373 = vld [vmem:[%s372] sm:%s362]
    %s374 = sshllo.u32 0, 1
    %s375 = smul.addr 1, 2
    %s376 = scalar_lea.vmem %s1, %s375
    %377 = vst [vmem:[%s376] sm:%s374] %v373
    %s378 = scalar_lea.vmem [#allocation0], 24
    %v379 = vld [vmem:[%s378] sm:%s362]
    %s380 = sshllo.u32 0, 1
    %s381 = smul.addr 1, 3
    %s382 = scalar_lea.vmem %s1, %s381
    %383 = vst [vmem:[%s382] sm:%s380] %v379
    %s384 = scalar_lea.vmem [#allocation0], 32
    %v385 = vld [vmem:[%s384] sm:%s362]
    %s386 = sshllo.u32 0, 1
    %s387 = smul.addr 1, 4
    %s388 = scalar_lea.vmem %s1, %s387
    %389 = vst [vmem:[%s388] sm:%s386] %v385
    %s390 = scalar_lea.vmem [#allocation0], 40
    %v391 = vld [vmem:[%s390] sm:%s362]
    %s392 = sshllo.u32 0, 1
    %s393 = smul.addr 1, 5
    %s394 = scalar_lea.vmem %s1, %s393
    %395 = vst [vmem:[%s394] sm:%s392] %v391
    %s396 = scalar_lea.vmem [#allocation0], 48
    %v397 = vld [vmem:[%s396] sm:%s362]
    %s398 = sshllo.u32 0, 1
    %s399 = smul.addr 1, 6
    %s400 = scalar_lea.vmem %s1, %s399
    %401 = vst [vmem:[%s400] sm:%s398] %v397
    %s402 = scalar_lea.vmem [#allocation0], 56
    %v403 = vld [vmem:[%s402] sm:%s362]
    %s404 = sshllo.u32 0, 1
    %s405 = smul.addr 1, 7
    %s406 = scalar_lea.vmem %s1, %s405
    %407 = vst [vmem:[%s406] sm:%s404] %v403
    %s408 = scalar_lea.vmem [#allocation0], 64
    %v409 = vld [vmem:[%s408] sm:%s362]
    %s410 = sshllo.u32 0, 1
    %s411 = smul.addr 1, 8
    %s412 = scalar_lea.vmem %s1, %s411
    %413 = vst [vmem:[%s412] sm:%s410] %v409
    %s414 = scalar_lea.vmem [#allocation0], 72
    %v415 = vld [vmem:[%s414] sm:%s362]
    %s416 = sshllo.u32 0, 1
    %s417 = smul.addr 1, 9
    %s418 = scalar_lea.vmem %s1, %s417
    %419 = vst [vmem:[%s418] sm:%s416] %v415
    %s420 = scalar_lea.vmem [#allocation0], 80
    %v421 = vld [vmem:[%s420] sm:%s362]
    %s422 = sshllo.u32 0, 1
    %s423 = smul.addr 1, 10
    %s424 = scalar_lea.vmem %s1, %s423
    %425 = vst [vmem:[%s424] sm:%s422] %v421
    %s426 = scalar_lea.vmem [#allocation0], 88
    %v427 = vld [vmem:[%s426] sm:%s362]
    %s428 = sshllo.u32 0, 1
    %s429 = smul.addr 1, 11
    %s430 = scalar_lea.vmem %s1, %s429
    %431 = vst [vmem:[%s430] sm:%s428] %v427
    %s432 = scalar_lea.vmem [#allocation0], 96
    %v433 = vld [vmem:[%s432] sm:%s362]
    %s434 = sshllo.u32 0, 1
    %s435 = smul.addr 1, 12
    %s436 = scalar_lea.vmem %s1, %s435
    %437 = vst [vmem:[%s436] sm:%s434] %v433
    %s438 = scalar_lea.vmem [#allocation0], 104
    %v439 = vld [vmem:[%s438] sm:%s362]
    %s440 = sshllo.u32 0, 1
    %s441 = smul.addr 1, 13
    %s442 = scalar_lea.vmem %s1, %s441
    %443 = vst [vmem:[%s442] sm:%s440] %v439
    %s444 = scalar_lea.vmem [#allocation0], 112
    %v445 = vld [vmem:[%s444] sm:%s362]
    %s446 = sshllo.u32 0, 1
    %s447 = smul.addr 1, 14
    %s448 = scalar_lea.vmem %s1, %s447
    %449 = vst [vmem:[%s448] sm:%s446] %v445
    %s450 = scalar_lea.vmem [#allocation0], 120
    %v451 = vld [vmem:[%s450] sm:%s362]
    %s452 = sshllo.u32 0, 1
    %s453 = smul.addr 1, 15
    %s454 = scalar_lea.vmem %s1, %s453
    %455 = vst [vmem:[%s454] sm:%s452] %v451
    %s456 = scalar_lea.vmem [#allocation0], 128
    %v457 = vld [vmem:[%s456] sm:%s362]
    %s458 = sshllo.u32 0, 1
    %s459 = smul.addr 1, 16
    %s460 = scalar_lea.vmem %s1, %s459
    %461 = vst [vmem:[%s460] sm:%s458] %v457
    %s462 = scalar_lea.vmem [#allocation0], 136
    %v463 = vld [vmem:[%s462] sm:%s362]
    %s464 = sshllo.u32 0, 1
    %s465 = smul.addr 1, 17
    %s466 = scalar_lea.vmem %s1, %s465
    %467 = vst [vmem:[%s466] sm:%s464] %v463
    %s468 = scalar_lea.vmem [#allocation0], 144
    %v469 = vld [vmem:[%s468] sm:%s362]
    %s470 = sshllo.u32 0, 1
    %s471 = smul.addr 1, 18
    %s472 = scalar_lea.vmem %s1, %s471
    %473 = vst [vmem:[%s472] sm:%s470] %v469
    %s474 = scalar_lea.vmem [#allocation0], 152
    %v475 = vld [vmem:[%s474] sm:%s362]
    %s476 = sshllo.u32 0, 1
    %s477 = smul.addr 1, 19
    %s478 = scalar_lea.vmem %s1, %s477
    %479 = vst [vmem:[%s478] sm:%s476] %v475
    %s480 = scalar_lea.vmem [#allocation0], 160
    %v481 = vld [vmem:[%s480] sm:%s362]
    %s482 = sshllo.u32 0, 1
    %s483 = smul.addr 1, 20
    %s484 = scalar_lea.vmem %s1, %s483
    %485 = vst [vmem:[%s484] sm:%s482] %v481

// kernel: basic_block_to_crop_forward.5
$region0: #{basic_block_to_crop_forward.5}
  #allocation0 [shape = 'u32[]', space=smem, size = 0x4, offset = 0x4, fixed_abs, tag = 'smem constant byte address 0x4 - core index']
  #allocation1 [shape = 'u32[144,128]{1,0:T(1,128)}', space=vmem, size = 0x12000, scoped, tag = 'internal scratch']
  %s0 = inlined_call_operand.vmem [shape: bf16[8,3072], index: 0, kind: input, shape index: {}]
  %s1 = inlined_call_operand.vmem [shape: f32[8,1], index: 1, kind: input, shape index: {}]
  %s2 = inlined_call_operand.vmem [shape: f32[8,1], index: 2, kind: input, shape index: {}]
  %s3 = inlined_call_operand.vmem [shape: f32[8,3072], index: 3, kind: output, shape index: {}]
  %s4 = sld [smem:[#allocation0]]
  $region45: #{basic_block_to_crop_forward.5} parent=0
    _
  %s6 = ssub.s32 1, %s4
  %s7 = scalar_select 0, %s6, %s4
  loop: start=0, step=1, limit=8
  $region2: #{basic_block_to_crop_forward.5} parent=0 // loop_pre_header
    _
  $region3: #{basic_block_to_crop_forward.5} parent=0 // loop_header
    %s9 = sphi 0, %s13
    %p10 = scmp.ge.s32.totalorder %s9, 8
    %s19 = sphi 0, %s21
    %s22 = sphi 0, %s19
    %s23 = sphi 0, %s22
    %s39 = sphi 0, %s23
    %s43 = sphi 0, %s43
    %s45 = sphi 0, %s43
    %s46 = sphi 0, %s45
    %s60 = sphi 0, %s46
    %s64 = sphi 0, %s64
    %s66 = sphi 0, %s64
    %s67 = sphi 0, %s66
    %s81 = sphi 0, %s67
    %s87 = sphi 0, %s89
    %s90 = sphi 0, %s87
    %s91 = sphi 0, %s90
    %s107 = sphi 0, %s91
  $region4: #{basic_block_to_crop_forward.5} parent=0 // loop_header_branch
    %12 = sbr.rel (%p10) target = $region8
  $region5: #{basic_block_to_crop_forward.5} parent=0 // loop_body
    %s14 = ssub.s32 %s9, 1
    %s15 = ssub.s32 %s9, 2
    %s16 = sadd.s32 %s9, 1
    %s17 = ssub.s32 %s9, %s16
    %p18 = scmp.eq.s32.totalorder %s17, 0
    %s20 = sadd.s32 %s19, 1
    %s21 = scalar_select %p18, %s19, %s20
    %p24 = pneg %p18
    %p25 = scmp.eq.s32.totalorder %s9, 5
    %p26 = por %p24, %p25
    %p27 = scmp.ne.s32.totalorder %s19, %s22
    %p28 = scmp.eq.s32.totalorder %s9, 0
    %p29 = por %p27, %p28
    %p30 = scmp.ne.s32.totalorder %s19, %s22
    %p31 = scmp.eq.s32.totalorder %s14, 5
    %p32 = por %p30, %p31
    %p33 = scmp.ne.s32.totalorder %s22, %s23
    %p34 = scmp.eq.s32.totalorder %s14, 0
    %p35 = por %p33, %p34
    %p36 = scmp.ne.s32.totalorder %s22, %s23
    %p37 = scmp.eq.s32.totalorder %s15, 5
    %p38 = por %p36, %p37
    %p40 = scmp.ne.s32.totalorder %s23, %s39
    %p41 = scmp.eq.s32.totalorder %s15, 0
    %p42 = por %p40, %p41
    %s44 = sadd.s32 %s43, 1
    %p47 = scmp.eq.s32.totalorder %s9, 5
    %p48 = scmp.ne.s32.totalorder %s43, %s45
    %p49 = scmp.eq.s32.totalorder %s9, 0
    %p50 = por %p48, %p49
    %p51 = scmp.ne.s32.totalorder %s43, %s45
    %p52 = scmp.eq.s32.totalorder %s14, 5
    %p53 = por %p51, %p52
    %p54 = scmp.ne.s32.totalorder %s45, %s46
    %p55 = scmp.eq.s32.totalorder %s14, 0
    %p56 = por %p54, %p55
    %p57 = scmp.ne.s32.totalorder %s45, %s46
    %p58 = scmp.eq.s32.totalorder %s15, 5
    %p59 = por %p57, %p58
    %p61 = scmp.ne.s32.totalorder %s46, %s60
    %p62 = scmp.eq.s32.totalorder %s15, 0
    %p63 = por %p61, %p62
    %s65 = sadd.s32 %s64, 1
    %p68 = scmp.eq.s32.totalorder %s9, 5
    %p69 = scmp.ne.s32.totalorder %s64, %s66
    %p70 = scmp.eq.s32.totalorder %s9, 0
    %p71 = por %p69, %p70
    %p72 = scmp.ne.s32.totalorder %s64, %s66
    %p73 = scmp.eq.s32.totalorder %s14, 5
    %p74 = por %p72, %p73
    %p75 = scmp.ne.s32.totalorder %s66, %s67
    %p76 = scmp.eq.s32.totalorder %s14, 0
    %p77 = por %p75, %p76
    %p78 = scmp.ne.s32.totalorder %s66, %s67
    %p79 = scmp.eq.s32.totalorder %s15, 5
    %p80 = por %p78, %p79
    %p82 = scmp.ne.s32.totalorder %s67, %s81
    %p83 = scmp.eq.s32.totalorder %s15, 0
    %p84 = por %p82, %p83
    %s85 = ssub.s32 %s9, %s16
    %p86 = scmp.eq.s32.totalorder %s85, 0
    %s88 = sadd.s32 %s87, 1
    %s89 = scalar_select %p86, %s87, %s88
    %p92 = pneg %p86
    %p93 = scmp.eq.s32.totalorder %s9, 5
    %p94 = por %p92, %p93
    %p95 = scmp.ne.s32.totalorder %s87, %s90
    %p96 = scmp.eq.s32.totalorder %s9, 0
    %p97 = por %p95, %p96
    %p98 = scmp.ne.s32.totalorder %s87, %s90
    %p99 = scmp.eq.s32.totalorder %s14, 5
    %p100 = por %p98, %p99
    %p101 = scmp.ne.s32.totalorder %s90, %s91
    %p102 = scmp.eq.s32.totalorder %s14, 0
    %p103 = por %p101, %p102
    %p104 = scmp.ne.s32.totalorder %s90, %s91
    %p105 = scmp.eq.s32.totalorder %s15, 5
    %p106 = por %p104, %p105
    %p108 = scmp.ne.s32.totalorder %s91, %s107
    %p109 = scmp.eq.s32.totalorder %s15, 0
    %p110 = por %p108, %p109
    %p111 = scmp.le.s32.totalorder 1, %s9
    %p112 = scmp.lt.s32.totalorder %s9, 7
    %p113 = pnand %p111, %p112
    %p114 = pneg %p113
    // Predicated region
    $region9: #{basic_block_to_crop_forward.5} parent=5 // pred_check
      _
    $region10: #{basic_block_to_crop_forward.5} parent=5 // pred_check_branch
      %116 = sbr.rel (%p113) target = $region12
    $region11: #{basic_block_to_crop_forward.5} parent=5 // pred_region
      %s117 = ssub.s32 %s9, 1
      // Predicated region
      $region13: #{basic_block_to_crop_forward.5} parent=11 // pred_check
        %p118 = pneg %p56
      $region14: #{basic_block_to_crop_forward.5} parent=11 // pred_check_branch
        %120 = sbr.rel (%p118) target = $region16
      $region15: #{basic_block_to_crop_forward.5} parent=11 // pred_region
        _
      $region16: #{basic_block_to_crop_forward.5} parent=11 // pred_fallthru
        _
      // Predicated region
      $region17: #{basic_block_to_crop_forward.5} parent=11 // pred_check
        %p121 = pneg %p77
      $region18: #{basic_block_to_crop_forward.5} parent=11 // pred_check_branch
        %123 = sbr.rel (%p121) target = $region20
      $region19: #{basic_block_to_crop_forward.5} parent=11 // pred_region
        _
      $region20: #{basic_block_to_crop_forward.5} parent=11 // pred_fallthru
        _
    $region12: #{basic_block_to_crop_forward.5} parent=5 // pred_fallthru
      _
    %p124 = scmp.lt.s32.totalorder %s9, 6
    // Predicated region
    $region21: #{basic_block_to_crop_forward.5} parent=5 // pred_check
      %p125 = pneg %p124
    $region22: #{basic_block_to_crop_forward.5} parent=5 // pred_check_branch
      %127 = sbr.rel (%p125) target = $region24
    $region23: #{basic_block_to_crop_forward.5} parent=5 // pred_region
      // Predicated region
      $region25: #{basic_block_to_crop_forward.5} parent=23 // pred_check
        %p128 = pneg %p29
      $region26: #{basic_block_to_crop_forward.5} parent=23 // pred_check_branch
        %130 = sbr.rel (%p128) target = $region28
      $region27: #{basic_block_to_crop_forward.5} parent=23 // pred_region
        %s131 = smul.u32 4, %s9
        %p132 = scmp.lt.s32.totalorder %s131, 23
        %s133 = scalar_select %p132, %s131, 23
        %s134 = smul.addr %s133, 4
        %s135 = scalar_lea.vmem %s0, %s134
        %s136 = smul.u32 4, %s9
      $region28: #{basic_block_to_crop_forward.5} parent=23 // pred_fallthru
        _
    $region24: #{basic_block_to_crop_forward.5} parent=5 // pred_fallthru
      _
    %p137 = scmp.le.s32.totalorder 1, %s9
    %p138 = scmp.lt.s32.totalorder %s9, 7
    %p139 = pnand %p137, %p138
    %p140 = pneg %p139
    // Predicated region
    $region29: #{basic_block_to_crop_forward.5} parent=5 // pred_check
      _
    $region30: #{basic_block_to_crop_forward.5} parent=5 // pred_check_branch
      %142 = sbr.rel (%p139) target = $region32
    $region31: #{basic_block_to_crop_forward.5} parent=5 // pred_region
      %s143 = ssub.s32 %s9, 1
      %s144 = smul.u32 4, %s14
      %p145 = scmp.lt.s32.totalorder %s144, 23
      %s146 = scalar_select %p145, %s144, 23
      %s147 = smul.addr %s146, 4
      %s148 = scalar_lea.vmem %s0, %s147
      %p149 = pneg %p35
      %p150 = pneg %p32
      %p151 = pneg %p56
      %p152 = pneg %p53
      %p153 = pneg %p77
      %p154 = pneg %p74
      %p155 = pneg %p103
      %p156 = pneg %p100
      %s157 = smul.u32 4, %s14
      %p158 = scmp.lt.s32.totalorder %s157, 23
      %s159 = scalar_select %p158, %s157, 23
      %s160 = smul.addr %s159, 8
      %s161 = scalar_lea.vmem %s3, %s160
      %s162 = smul.u32 4, %s14
      %p163 = scmp.lt.s32.totalorder %s162, 23
      %s164 = scalar_select %p163, %s162, 23
      %s165 = smul.addr %s164, 4
      %s166 = scalar_lea.vmem %s0, %s165
      %s167 = smul.u32 4, %s14
      %s168 = smul.u32 4, %s14
      %p169 = scmp.lt.s32.totalorder %s168, 23
      %s170 = scalar_select %p169, %s168, 23
      %s171 = smul.addr %s170, 8
      %s172 = scalar_lea.vmem %s3, %s171
      %s173 = smul.u32 4, %s14
      %v174 = vld [vmem:[%s166] sm:$0xff]
      %v175 = vld [vmem:[%s166 + $0x8] sm:$0xff]
      %v176 = vunpack.c.l.bf16 %v174
      %v177 = vunpack.c.h.bf16 %v174
      %v178 = vunpack.c.l.bf16 %v175
      %v179 = vunpack.c.h.bf16 %v175
      %v180 = vld [vmem:[%s1] sm:$0xff]
      %182 = vset.pattern.permute.xlu0 0
      %183 = vperm.xlu0 %182, %v180
      %v184 = vpop.permute.xlu0 %183
      %v186 = vmul.f32 %v176, %v184
      %v187 = vmul.f32 %v177, %v184
      %v188 = vmul.f32 %v178, %v184
      %v189 = vmul.f32 %v179, %v184
      %v190 = vld [vmem:[%s2] sm:$0xff]
      %192 = vset.pattern.permute.xlu0 0
      %193 = vperm.xlu0 %192, %v190
      %v194 = vpop.permute.xlu0 %193
      %v196 = vadd.f32 %v186, %v194
      %v197 = vadd.f32 %v187, %v194
      %v198 = vadd.f32 %v188, %v194
      %v199 = vadd.f32 %v189, %v194
      %v200 = vmax.f32 %v196, 0.0
      %v201 = vmax.f32 %v197, 0.0
      %v202 = vmax.f32 %v198, 0.0
      %v203 = vmax.f32 %v199, 0.0
      %204 = vst [vmem:[%s172] sm:$0xff] %v200
      %205 = vst [vmem:[%s172 + $0x8] sm:$0xff] %v201
      %206 = vst [vmem:[%s172 + $0x10] sm:$0xff] %v202
      %207 = vst [vmem:[%s172 + $0x18] sm:$0xff] %v203
      %s208 = smul.u32 4, %s14
      %p209 = scmp.lt.s32.totalorder %s208, 23
      %s210 = scalar_select %p209, %s208, 23
      %s211 = smul.addr %s210, 8
      %s212 = scalar_lea.vmem %s3, %s211
      // Predicated region
      $region33: #{basic_block_to_crop_forward.5} parent=31 // pred_check
        %p213 = pneg %p100
      $region34: #{basic_block_to_crop_forward.5} parent=31 // pred_check_branch
        %215 = sbr.rel (%p213) target = $region36
      $region35: #{basic_block_to_crop_forward.5} parent=31 // pred_region
        %s216 = smul.u32 4, %s14
      $region36: #{basic_block_to_crop_forward.5} parent=31 // pred_fallthru
        _
    $region32: #{basic_block_to_crop_forward.5} parent=5 // pred_fallthru
      _
    %p217 = scmp.le.s32.totalorder 2, %s9
    // Predicated region
    $region37: #{basic_block_to_crop_forward.5} parent=5 // pred_check
      %p218 = pneg %p217
    $region38: #{basic_block_to_crop_forward.5} parent=5 // pred_check_branch
      %220 = sbr.rel (%p218) target = $region40
    $region39: #{basic_block_to_crop_forward.5} parent=5 // pred_region
      %s221 = ssub.s32 %s9, 2
      // Predicated region
      $region41: #{basic_block_to_crop_forward.5} parent=39 // pred_check
        %p222 = pneg %p106
      $region42: #{basic_block_to_crop_forward.5} parent=39 // pred_check_branch
        %224 = sbr.rel (%p222) target = $region44
      $region43: #{basic_block_to_crop_forward.5} parent=39 // pred_region
        %s225 = smul.u32 4, %s15
        %p226 = scmp.lt.s32.totalorder %s225, 23
        %s227 = scalar_select %p226, %s225, 23
        %s228 = smul.addr %s227, 8
        %s229 = scalar_lea.vmem %s3, %s228
      $region44: #{basic_block_to_crop_forward.5} parent=39 // pred_fallthru
        _
    $region40: #{basic_block_to_crop_forward.5} parent=5 // pred_fallthru
      _
  $region6: #{basic_block_to_crop_forward.5} parent=0 // loop_footer
    %s13 = sadd.s32 1, %s9
  $region7: #{basic_block_to_crop_forward.5} parent=0 // loop_footer_branch
    %8 = sbr.rel target = $region3
  $region8: #{basic_block_to_crop_forward.5} parent=0 // loop_exit
    _

// kernel: basic_block_to_crop_forward.4
$region0: #{basic_block_to_crop_forward.4}
  #allocation0 [shape = 'u32[]', space=smem, size = 0x4, offset = 0x4, fixed_abs, tag = 'smem constant byte address 0x4 - core index']
  #allocation1 [shape = 'u32[144,128]{1,0:T(1,128)}', space=vmem, size = 0x12000, scoped, tag = 'internal scratch']
  %s0 = inlined_call_operand.vmem [shape: bf16[8,3584], index: 0, kind: input, shape index: {}, may-alias: {0,1}]
  %s1 = inlined_call_operand.vmem [shape: bf16[8,3584], index: 1, kind: input, shape index: {}, may-alias: {0,1}]
  %s2 = inlined_call_operand.vmem [shape: bf16[9,8,8], index: 2, kind: input, shape index: {}]
  %s3 = inlined_call_operand.vmem [shape: f32[1,3072], index: 3, kind: input, shape index: {}]
  %s4 = inlined_call_operand.vmem [shape: bf16[8,3072], index: 4, kind: output, shape index: {0}]
  %s5 = inlined_call_operand.vmem [shape: f32[6,8,1], index: 5, kind: output, shape index: {1}]
  %s6 = inlined_call_operand.vmem [shape: f32[6,8,1], index: 6, kind: output, shape index: {2}]
  %7 = xla_tuple %s4, %s5, %s6
  %s8 = sld [smem:[#allocation0]]
  $region65: #{basic_block_to_crop_forward.4} parent=0
    _
  %s10 = ssub.s32 1, %s8
  %s11 = scalar_select 0, %s10, %s8
  loop: start=0, step=1, limit=8
  $region2: #{basic_block_to_crop_forward.4} parent=0 // loop_pre_header
    _
  $region3: #{basic_block_to_crop_forward.4} parent=0 // loop_header
    %s13 = sphi 0, %s17
    %p14 = scmp.ge.s32.totalorder %s13, 8
    %s23 = sphi 0, %s25
    %s26 = sphi 0, %s23
    %s27 = sphi 0, %s26
    %s43 = sphi 0, %s27
    %s51 = sphi 0, %s53
    %s54 = sphi 0, %s51
    %s55 = sphi 0, %s54
    %s71 = sphi 0, %s55
    %s75 = sphi 0, %s75
    %s77 = sphi 0, %s75
    %s78 = sphi 0, %s77
    %s92 = sphi 0, %s78
    %s98 = sphi 0, %s100
    %s101 = sphi 0, %s98
    %s102 = sphi 0, %s101
    %s118 = sphi 0, %s102
    %s124 = sphi 0, %s126
    %s127 = sphi 0, %s124
    %s128 = sphi 0, %s127
    %s144 = sphi 0, %s128
    %s150 = sphi 0, %s152
    %s153 = sphi 0, %s150
    %s154 = sphi 0, %s153
    %s170 = sphi 0, %s154
    %s176 = sphi 0, %s178
    %s179 = sphi 0, %s176
    %s180 = sphi 0, %s179
    %s196 = sphi 0, %s180
  $region4: #{basic_block_to_crop_forward.4} parent=0 // loop_header_branch
    %16 = sbr.rel (%p14) target = $region8
  $region5: #{basic_block_to_crop_forward.4} parent=0 // loop_body
    %s18 = ssub.s32 %s13, 1
    %s19 = ssub.s32 %s13, 2
    %s20 = sadd.s32 %s13, 1
    %s21 = ssub.s32 %s13, %s20
    %p22 = scmp.eq.s32.totalorder %s21, 0
    %s24 = sadd.s32 %s23, 1
    %s25 = scalar_select %p22, %s23, %s24
    %p28 = pneg %p22
    %p29 = scmp.eq.s32.totalorder %s13, 5
    %p30 = por %p28, %p29
    %p31 = scmp.ne.s32.totalorder %s23, %s26
    %p32 = scmp.eq.s32.totalorder %s13, 0
    %p33 = por %p31, %p32
    %p34 = scmp.ne.s32.totalorder %s23, %s26
    %p35 = scmp.eq.s32.totalorder %s18, 5
    %p36 = por %p34, %p35
    %p37 = scmp.ne.s32.totalorder %s26, %s27
    %p38 = scmp.eq.s32.totalorder %s18, 0
    %p39 = por %p37, %p38
    %p40 = scmp.ne.s32.totalorder %s26, %s27
    %p41 = scmp.eq.s32.totalorder %s19, 5
    %p42 = por %p40, %p41
    %p44 = scmp.ne.s32.totalorder %s27, %s43
    %p45 = scmp.eq.s32.totalorder %s19, 0
    %p46 = por %p44, %p45
    %s47 = sadd.s32 %s13, 1
    %s48 = sadd.s32 %s20, 1
    %s49 = ssub.s32 %s47, %s48
    %p50 = scmp.eq.s32.totalorder %s49, 0
    %s52 = sadd.s32 %s51, 1
    %s53 = scalar_select %p50, %s51, %s52
    %p56 = pneg %p50
    %p57 = scmp.eq.s32.totalorder %s13, 5
    %p58 = por %p56, %p57
    %p59 = scmp.ne.s32.totalorder %s51, %s54
    %p60 = scmp.eq.s32.totalorder %s13, 0
    %p61 = por %p59, %p60
    %p62 = scmp.ne.s32.totalorder %s51, %s54
    %p63 = scmp.eq.s32.totalorder %s18, 5
    %p64 = por %p62, %p63
    %p65 = scmp.ne.s32.totalorder %s54, %s55
    %p66 = scmp.eq.s32.totalorder %s18, 0
    %p67 = por %p65, %p66
    %p68 = scmp.ne.s32.totalorder %s54, %s55
    %p69 = scmp.eq.s32.totalorder %s19, 5
    %p70 = por %p68, %p69
    %p72 = scmp.ne.s32.totalorder %s55, %s71
    %p73 = scmp.eq.s32.totalorder %s19, 0
    %p74 = por %p72, %p73
    %s76 = sadd.s32 %s75, 1
    %p79 = scmp.eq.s32.totalorder %s13, 5
    %p80 = scmp.ne.s32.totalorder %s75, %s77
    %p81 = scmp.eq.s32.totalorder %s13, 0
    %p82 = por %p80, %p81
    %p83 = scmp.ne.s32.totalorder %s75, %s77
    %p84 = scmp.eq.s32.totalorder %s18, 5
    %p85 = por %p83, %p84
    %p86 = scmp.ne.s32.totalorder %s77, %s78
    %p87 = scmp.eq.s32.totalorder %s18, 0
    %p88 = por %p86, %p87
    %p89 = scmp.ne.s32.totalorder %s77, %s78
    %p90 = scmp.eq.s32.totalorder %s19, 5
    %p91 = por %p89, %p90
    %p93 = scmp.ne.s32.totalorder %s78, %s92
    %p94 = scmp.eq.s32.totalorder %s19, 0
    %p95 = por %p93, %p94
    %s96 = ssub.s32 %s13, %s20
    %p97 = scmp.eq.s32.totalorder %s96, 0
    %s99 = sadd.s32 %s98, 1
    %s100 = scalar_select %p97, %s98, %s99
    %p103 = pneg %p97
    %p104 = scmp.eq.s32.totalorder %s13, 5
    %p105 = por %p103, %p104
    %p106 = scmp.ne.s32.totalorder %s98, %s101
    %p107 = scmp.eq.s32.totalorder %s13, 0
    %p108 = por %p106, %p107
    %p109 = scmp.ne.s32.totalorder %s98, %s101
    %p110 = scmp.eq.s32.totalorder %s18, 5
    %p111 = por %p109, %p110
    %p112 = scmp.ne.s32.totalorder %s101, %s102
    %p113 = scmp.eq.s32.totalorder %s18, 0
    %p114 = por %p112, %p113
    %p115 = scmp.ne.s32.totalorder %s101, %s102
    %p116 = scmp.eq.s32.totalorder %s19, 5
    %p117 = por %p115, %p116
    %p119 = scmp.ne.s32.totalorder %s102, %s118
    %p120 = scmp.eq.s32.totalorder %s19, 0
    %p121 = por %p119, %p120
    %s122 = ssub.s32 %s13, %s20
    %p123 = scmp.eq.s32.totalorder %s122, 0
    %s125 = sadd.s32 %s124, 1
    %s126 = scalar_select %p123, %s124, %s125
    %p129 = pneg %p123
    %p130 = scmp.eq.s32.totalorder %s13, 5
    %p131 = por %p129, %p130
    %p132 = scmp.ne.s32.totalorder %s124, %s127
    %p133 = scmp.eq.s32.totalorder %s13, 0
    %p134 = por %p132, %p133
    %p135 = scmp.ne.s32.totalorder %s124, %s127
    %p136 = scmp.eq.s32.totalorder %s18, 5
    %p137 = por %p135, %p136
    %p138 = scmp.ne.s32.totalorder %s127, %s128
    %p139 = scmp.eq.s32.totalorder %s18, 0
    %p140 = por %p138, %p139
    %p141 = scmp.ne.s32.totalorder %s127, %s128
    %p142 = scmp.eq.s32.totalorder %s19, 5
    %p143 = por %p141, %p142
    %p145 = scmp.ne.s32.totalorder %s128, %s144
    %p146 = scmp.eq.s32.totalorder %s19, 0
    %p147 = por %p145, %p146
    %s148 = ssub.s32 %s13, %s20
    %p149 = scmp.eq.s32.totalorder %s148, 0
    %s151 = sadd.s32 %s150, 1
    %s152 = scalar_select %p149, %s150, %s151
    %p155 = pneg %p149
    %p156 = scmp.eq.s32.totalorder %s13, 5
    %p157 = por %p155, %p156
    %p158 = scmp.ne.s32.totalorder %s150, %s153
    %p159 = scmp.eq.s32.totalorder %s13, 0
    %p160 = por %p158, %p159
    %p161 = scmp.ne.s32.totalorder %s150, %s153
    %p162 = scmp.eq.s32.totalorder %s18, 5
    %p163 = por %p161, %p162
    %p164 = scmp.ne.s32.totalorder %s153, %s154
    %p165 = scmp.eq.s32.totalorder %s18, 0
    %p166 = por %p164, %p165
    %p167 = scmp.ne.s32.totalorder %s153, %s154
    %p168 = scmp.eq.s32.totalorder %s19, 5
    %p169 = por %p167, %p168
    %p171 = scmp.ne.s32.totalorder %s154, %s170
    %p172 = scmp.eq.s32.totalorder %s19, 0
    %p173 = por %p171, %p172
    %s174 = ssub.s32 %s13, %s20
    %p175 = scmp.eq.s32.totalorder %s174, 0
    %s177 = sadd.s32 %s176, 1
    %s178 = scalar_select %p175, %s176, %s177
    %p181 = pneg %p175
    %p182 = scmp.eq.s32.totalorder %s13, 5
    %p183 = por %p181, %p182
    %p184 = scmp.ne.s32.totalorder %s176, %s179
    %p185 = scmp.eq.s32.totalorder %s13, 0
    %p186 = por %p184, %p185
    %p187 = scmp.ne.s32.totalorder %s176, %s179
    %p188 = scmp.eq.s32.totalorder %s18, 5
    %p189 = por %p187, %p188
    %p190 = scmp.ne.s32.totalorder %s179, %s180
    %p191 = scmp.eq.s32.totalorder %s18, 0
    %p192 = por %p190, %p191
    %p193 = scmp.ne.s32.totalorder %s179, %s180
    %p194 = scmp.eq.s32.totalorder %s19, 5
    %p195 = por %p193, %p194
    %p197 = scmp.ne.s32.totalorder %s180, %s196
    %p198 = scmp.eq.s32.totalorder %s19, 0
    %p199 = por %p197, %p198
    %p200 = scmp.le.s32.totalorder 1, %s13
    %p201 = scmp.lt.s32.totalorder %s13, 7
    %p202 = pnand %p200, %p201
    %p203 = pneg %p202
    // Predicated region
    $region9: #{basic_block_to_crop_forward.4} parent=5 // pred_check
      _
    $region10: #{basic_block_to_crop_forward.4} parent=5 // pred_check_branch
      %205 = sbr.rel (%p202) target = $region12
    $region11: #{basic_block_to_crop_forward.4} parent=5 // pred_region
      %s206 = ssub.s32 %s13, 1
      // Predicated region
      $region13: #{basic_block_to_crop_forward.4} parent=11 // pred_check
        %p207 = pneg %p88
      $region14: #{basic_block_to_crop_forward.4} parent=11 // pred_check_branch
        %209 = sbr.rel (%p207) target = $region16
      $region15: #{basic_block_to_crop_forward.4} parent=11 // pred_region
        _
      $region16: #{basic_block_to_crop_forward.4} parent=11 // pred_fallthru
        _
    $region12: #{basic_block_to_crop_forward.4} parent=5 // pred_fallthru
      _
    %p210 = scmp.lt.s32.totalorder %s13, 6
    // Predicated region
    $region17: #{basic_block_to_crop_forward.4} parent=5 // pred_check
      %p211 = pneg %p210
    $region18: #{basic_block_to_crop_forward.4} parent=5 // pred_check_branch
      %213 = sbr.rel (%p211) target = $region20
    $region19: #{basic_block_to_crop_forward.4} parent=5 // pred_region
      // Predicated region
      $region21: #{basic_block_to_crop_forward.4} parent=19 // pred_check
        %p214 = pneg %p33
      $region22: #{basic_block_to_crop_forward.4} parent=19 // pred_check_branch
        %216 = sbr.rel (%p214) target = $region24
      $region23: #{basic_block_to_crop_forward.4} parent=19 // pred_region
        %s217 = smul.u32 4, %s13
        %p218 = scmp.lt.s32.totalorder %s217, 27
        %s219 = scalar_select %p218, %s217, 27
        %s220 = smul.addr %s219, 4
        %s221 = scalar_lea.vmem %s0, %s220
        %s222 = smul.u32 4, %s13
      $region24: #{basic_block_to_crop_forward.4} parent=19 // pred_fallthru
        _
      // Predicated region
      $region25: #{basic_block_to_crop_forward.4} parent=19 // pred_check
        %p223 = pneg %p61
      $region26: #{basic_block_to_crop_forward.4} parent=19 // pred_check_branch
        %225 = sbr.rel (%p223) target = $region28
      $region27: #{basic_block_to_crop_forward.4} parent=19 // pred_region
        %s226 = sadd.s32 %s13, 1
        %s227 = smul.u32 4, %s226
        %p228 = scmp.lt.s32.totalorder %s227, 27
        %s229 = scalar_select %p228, %s227, 27
        %s230 = smul.addr %s229, 4
        %s231 = scalar_lea.vmem %s1, %s230
        %s232 = sadd.s32 %s13, 1
        %s233 = smul.u32 4, %s232
      $region28: #{basic_block_to_crop_forward.4} parent=19 // pred_fallthru
        _
      // Predicated region
      $region29: #{basic_block_to_crop_forward.4} parent=19 // pred_check
        %p234 = pneg %p108
      $region30: #{basic_block_to_crop_forward.4} parent=19 // pred_check_branch
        %236 = sbr.rel (%p234) target = $region32
      $region31: #{basic_block_to_crop_forward.4} parent=19 // pred_region
        %s237 = smul.u32 4, %s13
        %p238 = scmp.lt.s32.totalorder %s237, 23
        %s239 = scalar_select %p238, %s237, 23
        %s240 = scalar_lea.vmem %s3, %s239
        %s241 = smul.u32 4, %s13
      $region32: #{basic_block_to_crop_forward.4} parent=19 // pred_fallthru
        _
    $region20: #{basic_block_to_crop_forward.4} parent=5 // pred_fallthru
      _
    %p242 = scmp.le.s32.totalorder 1, %s13
    %p243 = scmp.lt.s32.totalorder %s13, 7
    %p244 = pnand %p242, %p243
    %p245 = pneg %p244
    // Predicated region
    $region33: #{basic_block_to_crop_forward.4} parent=5 // pred_check
      _
    $region34: #{basic_block_to_crop_forward.4} parent=5 // pred_check_branch
      %247 = sbr.rel (%p244) target = $region36
    $region35: #{basic_block_to_crop_forward.4} parent=5 // pred_region
      %s248 = ssub.s32 %s13, 1
      %s249 = smul.u32 4, %s18
      %p250 = scmp.lt.s32.totalorder %s249, 27
      %s251 = scalar_select %p250, %s249, 27
      %s252 = smul.addr %s251, 4
      %s253 = scalar_lea.vmem %s0, %s252
      %p254 = pneg %p39
      %p255 = pneg %p36
      %s256 = sadd.s32 %s18, 1
      %s257 = smul.u32 4, %s256
      %p258 = scmp.lt.s32.totalorder %s257, 27
      %s259 = scalar_select %p258, %s257, 27
      %s260 = smul.addr %s259, 4
      %s261 = scalar_lea.vmem %s1, %s260
      %p262 = pneg %p67
      %p263 = pneg %p64
      %p264 = pneg %p88
      %p265 = pneg %p85
      %s266 = smul.u32 4, %s18
      %p267 = scmp.lt.s32.totalorder %s266, 23
      %s268 = scalar_select %p267, %s266, 23
      %s269 = scalar_lea.vmem %s3, %s268
      %p270 = pneg %p114
      %p271 = pneg %p111
      %p272 = pneg %p140
      %p273 = pneg %p137
      %s274 = smul.u32 4, %s18
      %p275 = scmp.lt.s32.totalorder %s274, 23
      %s276 = scalar_select %p275, %s274, 23
      %s277 = smul.addr %s276, 4
      %s278 = scalar_lea.vmem %s4, %s277
      %p279 = pneg %p166
      %p280 = pneg %p163
      %p281 = scmp.lt.s32.totalorder %s18, 5
      %s282 = scalar_select %p281, %s18, 5
      %s283 = smul.addr %s282, 8
      %s284 = scalar_lea.vmem %s5, %s283
      %p285 = pneg %p192
      %p286 = pneg %p189
      %p287 = scmp.lt.s32.totalorder %s18, 5
      %s288 = scalar_select %p287, %s18, 5
      %s289 = smul.addr %s288, 8
      %s290 = scalar_lea.vmem %s6, %s289
      %s291 = smul.u32 4, %s18
      %p292 = scmp.lt.s32.totalorder %s291, 27
      %s293 = scalar_select %p292, %s291, 27
      %s294 = smul.addr %s293, 4
      %s295 = scalar_lea.vmem %s0, %s294
      %s296 = smul.u32 4, %s18
      %s297 = sadd.s32 %s18, 1
      %s298 = smul.u32 4, %s297
      %p299 = scmp.lt.s32.totalorder %s298, 27
      %s300 = scalar_select %p299, %s298, 27
      %s301 = smul.addr %s300, 4
      %s302 = scalar_lea.vmem %s1, %s301
      %s303 = sadd.s32 %s18, 1
      %s304 = smul.u32 4, %s303
      %s305 = smul.u32 4, %s18
      %p306 = scmp.lt.s32.totalorder %s305, 23
      %s307 = scalar_select %p306, %s305, 23
      %s308 = scalar_lea.vmem %s3, %s307
      %s309 = smul.u32 4, %s18
      %s310 = smul.u32 4, %s18
      %p311 = scmp.lt.s32.totalorder %s310, 23
      %s312 = scalar_select %p311, %s310, 23
      %s313 = smul.addr %s312, 4
      %s314 = scalar_lea.vmem %s4, %s313
      %s315 = smul.u32 4, %s18
      %p316 = scmp.lt.s32.totalorder %s18, 5
      %s317 = scalar_select %p316, %s18, 5
      %s318 = smul.addr %s317, 8
      %s319 = scalar_lea.vmem %s5, %s318
      %p320 = scmp.lt.s32.totalorder %s18, 5
      %s321 = scalar_select %p320, %s18, 5
      %s322 = smul.addr %s321, 8
      %s323 = scalar_lea.vmem %s6, %s322
      %v325 = vld [vmem:[%s295] sm:$0xff]
      %v326 = vld [vmem:[%s295 + $0x8] sm:$0xff]
      %v327 = vld [vmem:[%s302] sm:$0xff]
      %v330 = vunpack.c.l.b16 %v325
      %v331 = vunpack.c.h.b16 %v325
      %v332 = vunpack.c.l.b16 %v326
      %v333 = vunpack.c.h.b16 %v326
      %v334 = vpack.c.b16 %v330, %v330
      %v335 = vpack.c.b16 %v331, %v331
      %v336 = vpack.c.b16 %v332, %v332
      %v337 = vpack.c.b16 %v333, %v333
      %v339 = vunpack.c.l.b16 %v327
      %v340 = vpack.c.b16 %v339, %v339
      %v341 = vld [vmem:[%s2] sm:$0xf]
      %s342 = scalar_lea.vmem %s2, 4
      %v343 = vld [vmem:[%s342] sm:$0xf]
      %344 = vrot.lane.b32.xlu0 %v334, 127
      %v345 = vpop.permute.xlu0 %344
      %346 = vrot.lane.b32.xlu0 %v335, 127
      %v347 = vpop.permute.xlu0 %346
      %348 = vrot.lane.b32.xlu0 %v336, 127
      %v349 = vpop.permute.xlu0 %348
      %350 = vrot.lane.b32.xlu0 %v337, 127
      %v351 = vpop.permute.xlu0 %350
      %352 = vrot.lane.b32.xlu0 %v340, 127
      %v353 = vpop.permute.xlu0 %352
      %vm354 = vcmask 1039360
      %v355 = vsel %vm354, %v345, %v347
      %v356 = vsel %vm354, %v347, %v349
      %v357 = vsel %vm354, %v349, %v351
      %v358 = vsel %vm354, %v351, %v353
      %vm359 = vcmask 64512
      %v361 = vsel %vm359, %v343, 0
      %vm363 = vcmask 1043456
      %v365 = vsel %vm363, %v355, 0
      %v368 = vsel %vm363, %v356, 0
      %v371 = vsel %vm363, %v357, 0
      %v374 = vsel %vm363, %v358, 0
      %376 = vmatprep.subr.bf16.mxu0 %v368
      %377 = vmatpush1.bf16.msra.mxu0 %v365
      %378 = vmatprep.subr.bf16.mxu0 0
      %379 = vmatpush1.bf16.msra.mxu0 0
      %380 = vmatprep.subr.bf16.mxu0 0
      %381 = vmatpush1.bf16.msra.mxu0 0
      %382 = vmatprep.subr.bf16.mxu0 0
      %383 = vmatpush1.bf16.msra.mxu0 0
      %384 = vmatprep.subr.bf16.mxu0 0
      %385 = vmatpush1.bf16.msra.mxu0 0
      %386 = vmatprep.subr.bf16.mxu0 0
      %387 = vmatpush1.bf16.msra.mxu0 0
      %388 = vmatprep.subr.bf16.mxu0 0
      %389 = vmatpush1.bf16.msra.mxu0 0
      %390 = vmatprep.subr.bf16.mxu0 0
      %391 = vmatpush1.bf16.msra.mxu0 0
      %392 = vmatprep.subr.bf16.mxu0 0
      %393 = vmatpush1.bf16.msra.mxu0 0
      %394 = vmatprep.subr.bf16.mxu0 0
      %395 = vmatpush1.bf16.msra.mxu0 0
      %396 = vmatprep.subr.bf16.mxu0 0
      %397 = vmatpush1.bf16.msra.mxu0 0
      %398 = vmatprep.subr.bf16.mxu0 0
      %399 = vmatpush1.bf16.msra.mxu0 0
      %400 = vmatprep.subr.bf16.mxu0 0
      %401 = vmatpush1.bf16.msra.mxu0 0
      %402 = vmatprep.subr.bf16.mxu0 0
      %403 = vmatpush1.bf16.msra.mxu0 0
      %404 = vmatprep.subr.bf16.mxu0 0
      %405 = vmatpush1.bf16.msra.mxu0 0
      %406 = vmatprep.subr.bf16.mxu0 0
      %407 = vmatpush1.bf16.msra.mxu0 0
      %408 = vmatprep.mubr.bf16.mxu0 0
      %409 = vmatmul.mubr.bf16.gmra.mrb[0].mxu0 %v361
      %v410 = vpop.f32.mrb[0].mxu0
      %v411 = vadd.f32 0.0, %v410
      %v412 = vpop.f32.mrb[0].mxu0
      %v413 = vadd.f32 0.0, %v412
      %v414 = vpop.f32.mrb[0].mxu0
      %v415 = vpop.f32.mrb[0].mxu0
      %416 = vdwg.mxu0
      %417 = vmatprep.subr.bf16.mxu0 %v374
      %418 = vmatpush1.bf16.msra.mxu0 %v371
      %419 = vmatprep.subr.bf16.mxu0 0
      %420 = vmatpush1.bf16.msra.mxu0 0
      %421 = vmatprep.subr.bf16.mxu0 0
      %422 = vmatpush1.bf16.msra.mxu0 0
      %423 = vmatprep.subr.bf16.mxu0 0
      %424 = vmatpush1.bf16.msra.mxu0 0
      %425 = vmatprep.subr.bf16.mxu0 0
      %426 = vmatpush1.bf16.msra.mxu0 0
      %427 = vmatprep.subr.bf16.mxu0 0
      %428 = vmatpush1.bf16.msra.mxu0 0
      %429 = vmatprep.subr.bf16.mxu0 0
      %430 = vmatpush1.bf16.msra.mxu0 0
      %431 = vmatprep.subr.bf16.mxu0 0
      %432 = vmatpush1.bf16.msra.mxu0 0
      %433 = vmatprep.subr.bf16.mxu0 0
      %434 = vmatpush1.bf16.msra.mxu0 0
      %435 = vmatprep.subr.bf16.mxu0 0
      %436 = vmatpush1.bf16.msra.mxu0 0
      %437 = vmatprep.subr.bf16.mxu0 0
      %438 = vmatpush1.bf16.msra.mxu0 0
      %439 = vmatprep.subr.bf16.mxu0 0
      %440 = vmatpush1.bf16.msra.mxu0 0
      %441 = vmatprep.subr.bf16.mxu0 0
      %442 = vmatpush1.bf16.msra.mxu0 0
      %443 = vmatprep.subr.bf16.mxu0 0
      %444 = vmatpush1.bf16.msra.mxu0 0
      %445 = vmatprep.subr.bf16.mxu0 0
      %446 = vmatpush1.bf16.msra.mxu0 0
      %447 = vmatprep.subr.bf16.mxu0 0
      %448 = vmatpush1.bf16.msra.mxu0 0
      %449 = vmatprep.mubr.bf16.mxu0 0
      %450 = vmatmul.mubr.bf16.gmra.mrb[0].mxu0 %v361
      %v451 = vpop.f32.mrb[0].mxu0
      %v452 = vadd.f32 0.0, %v451
      %v453 = vpop.f32.mrb[0].mxu0
      %v454 = vadd.f32 0.0, %v453
      %v455 = vpop.f32.mrb[0].mxu0
      %v456 = vpop.f32.mrb[0].mxu0
      %457 = vdwg.mxu0
      %v459 = vsel %vm359, %v341, 0
      %v462 = vsel %vm363, %v334, 0
      %v465 = vsel %vm363, %v335, 0
      %v468 = vsel %vm363, %v336, 0
      %v471 = vsel %vm363, %v337, 0
      %473 = vmatprep.subr.bf16.mxu0 %v465
      %474 = vmatpush1.bf16.msra.mxu0 %v462
      %475 = vmatprep.subr.bf16.mxu0 0
      %476 = vmatpush1.bf16.msra.mxu0 0
      %477 = vmatprep.subr.bf16.mxu0 0
      %478 = vmatpush1.bf16.msra.mxu0 0
      %479 = vmatprep.subr.bf16.mxu0 0
      %480 = vmatpush1.bf16.msra.mxu0 0
      %481 = vmatprep.subr.bf16.mxu0 0
      %482 = vmatpush1.bf16.msra.mxu0 0
      %483 = vmatprep.subr.bf16.mxu0 0
      %484 = vmatpush1.bf16.msra.mxu0 0
      %485 = vmatprep.subr.bf16.mxu0 0
      %486 = vmatpush1.bf16.msra.mxu0 0
      %487 = vmatprep.subr.bf16.mxu0 0
      %488 = vmatpush1.bf16.msra.mxu0 0
      %489 = vmatprep.subr.bf16.mxu0 0
      %490 = vmatpush1.bf16.msra.mxu0 0
      %491 = vmatprep.subr.bf16.mxu0 0
      %492 = vmatpush1.bf16.msra.mxu0 0
      %493 = vmatprep.subr.bf16.mxu0 0
      %494 = vmatpush1.bf16.msra.mxu0 0
      %495 = vmatprep.subr.bf16.mxu0 0
      %496 = vmatpush1.bf16.msra.mxu0 0
      %497 = vmatprep.subr.bf16.mxu0 0
      %498 = vmatpush1.bf16.msra.mxu0 0
      %499 = vmatprep.subr.bf16.mxu0 0
      %500 = vmatpush1.bf16.msra.mxu0 0
      %501 = vmatprep.subr.bf16.mxu0 0
      %502 = vmatpush1.bf16.msra.mxu0 0
      %503 = vmatprep.subr.bf16.mxu0 0
      %504 = vmatpush1.bf16.msra.mxu0 0
      %505 = vmatprep.mubr.bf16.mxu0 0
      %506 = vmatmul.mubr.bf16.gmra.mrb[0].mxu0 %v459
      %v507 = vpop.f32.mrb[0].mxu0
      %v508 = vadd.f32 %v411, %v507
      %v509 = vpop.f32.mrb[0].mxu0
      %v510 = vadd.f32 %v413, %v509
      %v511 = vpop.f32.mrb[0].mxu0
      %v512 = vpop.f32.mrb[0].mxu0
      %513 = vdwg.mxu0
      %514 = vmatprep.subr.bf16.mxu0 %v471
      %515 = vmatpush1.bf16.msra.mxu0 %v468
      %516 = vmatprep.subr.bf16.mxu0 0
      %517 = vmatpush1.bf16.msra.mxu0 0
      %518 = vmatprep.subr.bf16.mxu0 0
      %519 = vmatpush1.bf16.msra.mxu0 0
      %520 = vmatprep.subr.bf16.mxu0 0
      %521 = vmatpush1.bf16.msra.mxu0 0
      %522 = vmatprep.subr.bf16.mxu0 0
      %523 = vmatpush1.bf16.msra.mxu0 0
      %524 = vmatprep.subr.bf16.mxu0 0
      %525 = vmatpush1.bf16.msra.mxu0 0
      %526 = vmatprep.subr.bf16.mxu0 0
      %527 = vmatpush1.bf16.msra.mxu0 0
      %528 = vmatprep.subr.bf16.mxu0 0
      %529 = vmatpush1.bf16.msra.mxu0 0
      %530 = vmatprep.subr.bf16.mxu0 0
      %531 = vmatpush1.bf16.msra.mxu0 0
      %532 = vmatprep.subr.bf16.mxu0 0
      %533 = vmatpush1.bf16.msra.mxu0 0
      %534 = vmatprep.subr.bf16.mxu0 0
      %535 = vmatpush1.bf16.msra.mxu0 0
      %536 = vmatprep.subr.bf16.mxu0 0
      %537 = vmatpush1.bf16.msra.mxu0 0
      %538 = vmatprep.subr.bf16.mxu0 0
      %539 = vmatpush1.bf16.msra.mxu0 0
      %540 = vmatprep.subr.bf16.mxu0 0
      %541 = vmatpush1.bf16.msra.mxu0 0
      %542 = vmatprep.subr.bf16.mxu0 0
      %543 = vmatpush1.bf16.msra.mxu0 0
      %544 = vmatprep.subr.bf16.mxu0 0
      %545 = vmatpush1.bf16.msra.mxu0 0
      %546 = vmatprep.mubr.bf16.mxu0 0
      %547 = vmatmul.mubr.bf16.gmra.mrb[0].mxu0 %v459
      %v548 = vpop.f32.mrb[0].mxu0
      %v549 = vadd.f32 %v452, %v548
      %v550 = vpop.f32.mrb[0].mxu0
      %v551 = vadd.f32 %v454, %v550
      %v552 = vpop.f32.mrb[0].mxu0
      %v553 = vpop.f32.mrb[0].mxu0
      %554 = vdwg.mxu0
      %s555 = scalar_lea.vmem %s2, 8
      %v556 = vld [vmem:[%s555] sm:$0xf]
      %557 = vrot.lane.b32.xlu0 %v334, 126
      %v558 = vpop.permute.xlu0 %557
      %559 = vrot.lane.b32.xlu0 %v335, 126
      %v560 = vpop.permute.xlu0 %559
      %561 = vrot.lane.b32.xlu0 %v336, 126
      %v562 = vpop.permute.xlu0 %561
      %563 = vrot.lane.b32.xlu0 %v337, 126
      %v564 = vpop.permute.xlu0 %563
      %565 = vrot.lane.b32.xlu0 %v340, 126
      %v566 = vpop.permute.xlu0 %565
      %vm567 = vcmask 1031168
      %v568 = vsel %vm567, %v558, %v560
      %v569 = vsel %vm567, %v560, %v562
      %v570 = vsel %vm567, %v562, %v564
      %v571 = vsel %vm567, %v564, %v566
      %v573 = vsel %vm359, %v556, 0
      %v576 = vsel %vm363, %v568, 0
      %v579 = vsel %vm363, %v569, 0
      %v582 = vsel %vm363, %v570, 0
      %v585 = vsel %vm363, %v571, 0
      %587 = vmatprep.subr.bf16.mxu0 %v579
      %588 = vmatpush1.bf16.msra.mxu0 %v576
      %589 = vmatprep.subr.bf16.mxu0 0
      %590 = vmatpush1.bf16.msra.mxu0 0
      %591 = vmatprep.subr.bf16.mxu0 0
      %592 = vmatpush1.bf16.msra.mxu0 0
      %593 = vmatprep.subr.bf16.mxu0 0
      %594 = vmatpush1.bf16.msra.mxu0 0
      %595 = vmatprep.subr.bf16.mxu0 0
      %596 = vmatpush1.bf16.msra.mxu0 0
      %597 = vmatprep.subr.bf16.mxu0 0
      %598 = vmatpush1.bf16.msra.mxu0 0
      %599 = vmatprep.subr.bf16.mxu0 0
      %600 = vmatpush1.bf16.msra.mxu0 0
      %601 = vmatprep.subr.bf16.mxu0 0
      %602 = vmatpush1.bf16.msra.mxu0 0
      %603 = vmatprep.subr.bf16.mxu0 0
      %604 = vmatpush1.bf16.msra.mxu0 0
      %605 = vmatprep.subr.bf16.mxu0 0
      %606 = vmatpush1.bf16.msra.mxu0 0
      %607 = vmatprep.subr.bf16.mxu0 0
      %608 = vmatpush1.bf16.msra.mxu0 0
      %609 = vmatprep.subr.bf16.mxu0 0
      %610 = vmatpush1.bf16.msra.mxu0 0
      %611 = vmatprep.subr.bf16.mxu0 0
      %612 = vmatpush1.bf16.msra.mxu0 0
      %613 = vmatprep.subr.bf16.mxu0 0
      %614 = vmatpush1.bf16.msra.mxu0 0
      %615 = vmatprep.subr.bf16.mxu0 0
      %616 = vmatpush1.bf16.msra.mxu0 0
      %617 = vmatprep.subr.bf16.mxu0 0
      %618 = vmatpush1.bf16.msra.mxu0 0
      %619 = vmatprep.mubr.bf16.mxu0 0
      %620 = vmatmul.mubr.bf16.gmra.mrb[0].mxu0 %v573
      %v621 = vpop.f32.mrb[0].mxu0
      %v622 = vadd.f32 0.0, %v621
      %v623 = vpop.f32.mrb[0].mxu0
      %v624 = vadd.f32 0.0, %v623
      %v625 = vpop.f32.mrb[0].mxu0
      %v626 = vpop.f32.mrb[0].mxu0
      %627 = vdwg.mxu0
      %628 = vmatprep.subr.bf16.mxu0 %v585
      %629 = vmatpush1.bf16.msra.mxu0 %v582
      %630 = vmatprep.subr.bf16.mxu0 0
      %631 = vmatpush1.bf16.msra.mxu0 0
      %632 = vmatprep.subr.bf16.mxu0 0
      %633 = vmatpush1.bf16.msra.mxu0 0
      %634 = vmatprep.subr.bf16.mxu0 0
      %635 = vmatpush1.bf16.msra.mxu0 0
      %636 = vmatprep.subr.bf16.mxu0 0
      %637 = vmatpush1.bf16.msra.mxu0 0
      %638 = vmatprep.subr.bf16.mxu0 0
      %639 = vmatpush1.bf16.msra.mxu0 0
      %640 = vmatprep.subr.bf16.mxu0 0
      %641 = vmatpush1.bf16.msra.mxu0 0
      %642 = vmatprep.subr.bf16.mxu0 0
      %643 = vmatpush1.bf16.msra.mxu0 0
      %644 = vmatprep.subr.bf16.mxu0 0
      %645 = vmatpush1.bf16.msra.mxu0 0
      %646 = vmatprep.subr.bf16.mxu0 0
      %647 = vmatpush1.bf16.msra.mxu0 0
      %648 = vmatprep.subr.bf16.mxu0 0
      %649 = vmatpush1.bf16.msra.mxu0 0
      %650 = vmatprep.subr.bf16.mxu0 0
      %651 = vmatpush1.bf16.msra.mxu0 0
      %652 = vmatprep.subr.bf16.mxu0 0
      %653 = vmatpush1.bf16.msra.mxu0 0
      %654 = vmatprep.subr.bf16.mxu0 0
      %655 = vmatpush1.bf16.msra.mxu0 0
      %656 = vmatprep.subr.bf16.mxu0 0
      %657 = vmatpush1.bf16.msra.mxu0 0
      %658 = vmatprep.subr.bf16.mxu0 0
      %659 = vmatpush1.bf16.msra.mxu0 0
      %660 = vmatprep.mubr.bf16.mxu0 0
      %661 = vmatmul.mubr.bf16.gmra.mrb[0].mxu0 %v573
      %v662 = vpop.f32.mrb[0].mxu0
      %v663 = vadd.f32 0.0, %v662
      %v664 = vpop.f32.mrb[0].mxu0
      %v665 = vadd.f32 0.0, %v664
      %v666 = vpop.f32.mrb[0].mxu0
      %v667 = vpop.f32.mrb[0].mxu0
      %668 = vdwg.mxu0
      %v669 = vadd.f32 %v508, %v622
      %v670 = vadd.f32 %v510, %v624
      %v671 = vadd.f32 %v549, %v663
      %v672 = vadd.f32 %v551, %v665
      %s673 = scalar_lea.vmem %s2, 12
      %v674 = vld [vmem:[%s673] sm:$0xf]
      %675 = vrot.lane.b32.xlu0 %v334, 92
      %v676 = vpop.permute.xlu0 %675
      %677 = vrot.lane.b32.xlu0 %v335, 92
      %v678 = vpop.permute.xlu0 %677
      %679 = vrot.lane.b32.xlu0 %v336, 92
      %v680 = vpop.permute.xlu0 %679
      %681 = vrot.lane.b32.xlu0 %v337, 92
      %v682 = vpop.permute.xlu0 %681
      %683 = vrot.lane.b32.xlu0 %v340, 92
      %v684 = vpop.permute.xlu0 %683
      %vm685 = vcmask 752640
      %v686 = vsel %vm685, %v676, %v678
      %v687 = vsel %vm685, %v678, %v680
      %v688 = vsel %vm685, %v680, %v682
      %v689 = vsel %vm685, %v682, %v684
      %v691 = vsel %vm359, %v674, 0
      %v694 = vsel %vm363, %v686, 0
      %v697 = vsel %vm363, %v687, 0
      %v700 = vsel %vm363, %v688, 0
      %v703 = vsel %vm363, %v689, 0
      %705 = vmatprep.subr.bf16.mxu0 %v697
      %706 = vmatpush1.bf16.msra.mxu0 %v694
      %707 = vmatprep.subr.bf16.mxu0 0
      %708 = vmatpush1.bf16.msra.mxu0 0
      %709 = vmatprep.subr.bf16.mxu0 0
      %710 = vmatpush1.bf16.msra.mxu0 0
      %711 = vmatprep.subr.bf16.mxu0 0
      %712 = vmatpush1.bf16.msra.mxu0 0
      %713 = vmatprep.subr.bf16.mxu0 0
      %714 = vmatpush1.bf16.msra.mxu0 0
      %715 = vmatprep.subr.bf16.mxu0 0
      %716 = vmatpush1.bf16.msra.mxu0 0
      %717 = vmatprep.subr.bf16.mxu0 0
      %718 = vmatpush1.bf16.msra.mxu0 0
      %719 = vmatprep.subr.bf16.mxu0 0
      %720 = vmatpush1.bf16.msra.mxu0 0
      %721 = vmatprep.subr.bf16.mxu0 0
      %722 = vmatpush1.bf16.msra.mxu0 0
      %723 = vmatprep.subr.bf16.mxu0 0
      %724 = vmatpush1.bf16.msra.mxu0 0
      %725 = vmatprep.subr.bf16.mxu0 0
      %726 = vmatpush1.bf16.msra.mxu0 0
      %727 = vmatprep.subr.bf16.mxu0 0
      %728 = vmatpush1.bf16.msra.mxu0 0
      %729 = vmatprep.subr.bf16.mxu0 0
      %730 = vmatpush1.bf16.msra.mxu0 0
      %731 = vmatprep.subr.bf16.mxu0 0
      %732 = vmatpush1.bf16.msra.mxu0 0
      %733 = vmatprep.subr.bf16.mxu0 0
      %734 = vmatpush1.bf16.msra.mxu0 0
      %735 = vmatprep.subr.bf16.mxu0 0
      %736 = vmatpush1.bf16.msra.mxu0 0
      %737 = vmatprep.mubr.bf16.mxu0 0
      %738 = vmatmul.mubr.bf16.gmra.mrb[0].mxu0 %v691
      %v739 = vpop.f32.mrb[0].mxu0
      %v740 = vadd.f32 0.0, %v739
      %v741 = vpop.f32.mrb[0].mxu0
      %v742 = vadd.f32 0.0, %v741
      %v743 = vpop.f32.mrb[0].mxu0
      %v744 = vpop.f32.mrb[0].mxu0
      %745 = vdwg.mxu0
      %746 = vmatprep.subr.bf16.mxu0 %v703
      %747 = vmatpush1.bf16.msra.mxu0 %v700
      %748 = vmatprep.subr.bf16.mxu0 0
      %749 = vmatpush1.bf16.msra.mxu0 0
      %750 = vmatprep.subr.bf16.mxu0 0
      %751 = vmatpush1.bf16.msra.mxu0 0
      %752 = vmatprep.subr.bf16.mxu0 0
      %753 = vmatpush1.bf16.msra.mxu0 0
      %754 = vmatprep.subr.bf16.mxu0 0
      %755 = vmatpush1.bf16.msra.mxu0 0
      %756 = vmatprep.subr.bf16.mxu0 0
      %757 = vmatpush1.bf16.msra.mxu0 0
      %758 = vmatprep.subr.bf16.mxu0 0
      %759 = vmatpush1.bf16.msra.mxu0 0
      %760 = vmatprep.subr.bf16.mxu0 0
      %761 = vmatpush1.bf16.msra.mxu0 0
      %762 = vmatprep.subr.bf16.mxu0 0
      %763 = vmatpush1.bf16.msra.mxu0 0
      %764 = vmatprep.subr.bf16.mxu0 0
      %765 = vmatpush1.bf16.msra.mxu0 0
      %766 = vmatprep.subr.bf16.mxu0 0
      %767 = vmatpush1.bf16.msra.mxu0 0
      %768 = vmatprep.subr.bf16.mxu0 0
      %769 = vmatpush1.bf16.msra.mxu0 0
      %770 = vmatprep.subr.bf16.mxu0 0
      %771 = vmatpush1.bf16.msra.mxu0 0
      %772 = vmatprep.subr.bf16.mxu0 0
      %773 = vmatpush1.bf16.msra.mxu0 0
      %774 = vmatprep.subr.bf16.mxu0 0
      %775 = vmatpush1.bf16.msra.mxu0 0
      %776 = vmatprep.subr.bf16.mxu0 0
      %777 = vmatpush1.bf16.msra.mxu0 0
      %778 = vmatprep.mubr.bf16.mxu0 0
      %779 = vmatmul.mubr.bf16.gmra.mrb[0].mxu0 %v691
      %v780 = vpop.f32.mrb[0].mxu0
      %v781 = vadd.f32 0.0, %v780
      %v782 = vpop.f32.mrb[0].mxu0
      %v783 = vadd.f32 0.0, %v782
      %v784 = vpop.f32.mrb[0].mxu0
      %v785 = vpop.f32.mrb[0].mxu0
      %786 = vdwg.mxu0
      %v787 = vadd.f32 %v669, %v740
      %v788 = vadd.f32 %v670, %v742
      %v789 = vadd.f32 %v671, %v781
      %v790 = vadd.f32 %v672, %v783
      %s791 = scalar_lea.vmem %s2, 16
      %v792 = vld [vmem:[%s791] sm:$0xf]
      %793 = vrot.lane.b32.xlu0 %v334, 91
      %v794 = vpop.permute.xlu0 %793
      %795 = vrot.lane.b32.xlu0 %v335, 91
      %v796 = vpop.permute.xlu0 %795
      %797 = vrot.lane.b32.xlu0 %v336, 91
      %v798 = vpop.permute.xlu0 %797
      %799 = vrot.lane.b32.xlu0 %v337, 91
      %v800 = vpop.permute.xlu0 %799
      %801 = vrot.lane.b32.xlu0 %v340, 91
      %v802 = vpop.permute.xlu0 %801
      %vm803 = vcmask 744448
      %v804 = vsel %vm803, %v794, %v796
      %v805 = vsel %vm803, %v796, %v798
      %v806 = vsel %vm803, %v798, %v800
      %v807 = vsel %vm803, %v800, %v802
      %v809 = vsel %vm359, %v792, 0
      %v812 = vsel %vm363, %v804, 0
      %v815 = vsel %vm363, %v805, 0
      %v818 = vsel %vm363, %v806, 0
      %v821 = vsel %vm363, %v807, 0
      %823 = vmatprep.subr.bf16.mxu0 %v815
      %824 = vmatpush1.bf16.msra.mxu0 %v812
      %825 = vmatprep.subr.bf16.mxu0 0
      %826 = vmatpush1.bf16.msra.mxu0 0
      %827 = vmatprep.subr.bf16.mxu0 0
      %828 = vmatpush1.bf16.msra.mxu0 0
      %829 = vmatprep.subr.bf16.mxu0 0
      %830 = vmatpush1.bf16.msra.mxu0 0
      %831 = vmatprep.subr.bf16.mxu0 0
      %832 = vmatpush1.bf16.msra.mxu0 0
      %833 = vmatprep.subr.bf16.mxu0 0
      %834 = vmatpush1.bf16.msra.mxu0 0
      %835 = vmatprep.subr.bf16.mxu0 0
      %836 = vmatpush1.bf16.msra.mxu0 0
      %837 = vmatprep.subr.bf16.mxu0 0
      %838 = vmatpush1.bf16.msra.mxu0 0
      %839 = vmatprep.subr.bf16.mxu0 0
      %840 = vmatpush1.bf16.msra.mxu0 0
      %841 = vmatprep.subr.bf16.mxu0 0
      %842 = vmatpush1.bf16.msra.mxu0 0
      %843 = vmatprep.subr.bf16.mxu0 0
      %844 = vmatpush1.bf16.msra.mxu0 0
      %845 = vmatprep.subr.bf16.mxu0 0
      %846 = vmatpush1.bf16.msra.mxu0 0
      %847 = vmatprep.subr.bf16.mxu0 0
      %848 = vmatpush1.bf16.msra.mxu0 0
      %849 = vmatprep.subr.bf16.mxu0 0
      %850 = vmatpush1.bf16.msra.mxu0 0
      %851 = vmatprep.subr.bf16.mxu0 0
      %852 = vmatpush1.bf16.msra.mxu0 0
      %853 = vmatprep.subr.bf16.mxu0 0
      %854 = vmatpush1.bf16.msra.mxu0 0
      %855 = vmatprep.mubr.bf16.mxu0 0
      %856 = vmatmul.mubr.bf16.gmra.mrb[0].mxu0 %v809
      %v857 = vpop.f32.mrb[0].mxu0
      %v858 = vadd.f32 0.0, %v857
      %v859 = vpop.f32.mrb[0].mxu0
      %v860 = vadd.f32 0.0, %v859
      %v861 = vpop.f32.mrb[0].mxu0
      %v862 = vpop.f32.mrb[0].mxu0
      %863 = vdwg.mxu0
      %864 = vmatprep.subr.bf16.mxu0 %v821
      %865 = vmatpush1.bf16.msra.mxu0 %v818
      %866 = vmatprep.subr.bf16.mxu0 0
      %867 = vmatpush1.bf16.msra.mxu0 0
      %868 = vmatprep.subr.bf16.mxu0 0
      %869 = vmatpush1.bf16.msra.mxu0 0
      %870 = vmatprep.subr.bf16.mxu0 0
      %871 = vmatpush1.bf16.msra.mxu0 0
      %872 = vmatprep.subr.bf16.mxu0 0
      %873 = vmatpush1.bf16.msra.mxu0 0
      %874 = vmatprep.subr.bf16.mxu0 0
      %875 = vmatpush1.bf16.msra.mxu0 0
      %876 = vmatprep.subr.bf16.mxu0 0
      %877 = vmatpush1.bf16.msra.mxu0 0
      %878 = vmatprep.subr.bf16.mxu0 0
      %879 = vmatpush1.bf16.msra.mxu0 0
      %880 = vmatprep.subr.bf16.mxu0 0
      %881 = vmatpush1.bf16.msra.mxu0 0
      %882 = vmatprep.subr.bf16.mxu0 0
      %883 = vmatpush1.bf16.msra.mxu0 0
      %884 = vmatprep.subr.bf16.mxu0 0
      %885 = vmatpush1.bf16.msra.mxu0 0
      %886 = vmatprep.subr.bf16.mxu0 0
      %887 = vmatpush1.bf16.msra.mxu0 0
      %888 = vmatprep.subr.bf16.mxu0 0
      %889 = vmatpush1.bf16.msra.mxu0 0
      %890 = vmatprep.subr.bf16.mxu0 0
      %891 = vmatpush1.bf16.msra.mxu0 0
      %892 = vmatprep.subr.bf16.mxu0 0
      %893 = vmatpush1.bf16.msra.mxu0 0
      %894 = vmatprep.subr.bf16.mxu0 0
      %895 = vmatpush1.bf16.msra.mxu0 0
      %896 = vmatprep.mubr.bf16.mxu0 0
      %897 = vmatmul.mubr.bf16.gmra.mrb[0].mxu0 %v809
      %v898 = vpop.f32.mrb[0].mxu0
      %v899 = vadd.f32 0.0, %v898
      %v900 = vpop.f32.mrb[0].mxu0
      %v901 = vadd.f32 0.0, %v900
      %v902 = vpop.f32.mrb[0].mxu0
      %v903 = vpop.f32.mrb[0].mxu0
      %904 = vdwg.mxu0
      %v905 = vadd.f32 %v787, %v858
      %v906 = vadd.f32 %v788, %v860
      %v907 = vadd.f32 %v789, %v899
      %v908 = vadd.f32 %v790, %v901
      %s909 = scalar_lea.vmem %s2, 20
      %v910 = vld [vmem:[%s909] sm:$0xf]
      %911 = vrot.lane.b32.xlu0 %v334, 90
      %v912 = vpop.permute.xlu0 %911
      %913 = vrot.lane.b32.xlu0 %v335, 90
      %v914 = vpop.permute.xlu0 %913
      %915 = vrot.lane.b32.xlu0 %v336, 90
      %v916 = vpop.permute.xlu0 %915
      %917 = vrot.lane.b32.xlu0 %v337, 90
      %v918 = vpop.permute.xlu0 %917
      %919 = vrot.lane.b32.xlu0 %v340, 90
      %v920 = vpop.permute.xlu0 %919
      %vm921 = vcmask 736256
      %v922 = vsel %vm921, %v912, %v914
      %v923 = vsel %vm921, %v914, %v916
      %v924 = vsel %vm921, %v916, %v918
      %v925 = vsel %vm921, %v918, %v920
      %v927 = vsel %vm359, %v910, 0
      %v930 = vsel %vm363, %v922, 0
      %v933 = vsel %vm363, %v923, 0
      %v936 = vsel %vm363, %v924, 0
      %v939 = vsel %vm363, %v925, 0
      %941 = vmatprep.subr.bf16.mxu0 %v933
      %942 = vmatpush1.bf16.msra.mxu0 %v930
      %943 = vmatprep.subr.bf16.mxu0 0
      %944 = vmatpush1.bf16.msra.mxu0 0
      %945 = vmatprep.subr.bf16.mxu0 0
      %946 = vmatpush1.bf16.msra.mxu0 0
      %947 = vmatprep.subr.bf16.mxu0 0
      %948 = vmatpush1.bf16.msra.mxu0 0
      %949 = vmatprep.subr.bf16.mxu0 0
      %950 = vmatpush1.bf16.msra.mxu0 0
      %951 = vmatprep.subr.bf16.mxu0 0
      %952 = vmatpush1.bf16.msra.mxu0 0
      %953 = vmatprep.subr.bf16.mxu0 0
      %954 = vmatpush1.bf16.msra.mxu0 0
      %955 = vmatprep.subr.bf16.mxu0 0
      %956 = vmatpush1.bf16.msra.mxu0 0
      %957 = vmatprep.subr.bf16.mxu0 0
      %958 = vmatpush1.bf16.msra.mxu0 0
      %959 = vmatprep.subr.bf16.mxu0 0
      %960 = vmatpush1.bf16.msra.mxu0 0
      %961 = vmatprep.subr.bf16.mxu0 0
      %962 = vmatpush1.bf16.msra.mxu0 0
      %963 = vmatprep.subr.bf16.mxu0 0
      %964 = vmatpush1.bf16.msra.mxu0 0
      %965 = vmatprep.subr.bf16.mxu0 0
      %966 = vmatpush1.bf16.msra.mxu0 0
      %967 = vmatprep.subr.bf16.mxu0 0
      %968 = vmatpush1.bf16.msra.mxu0 0
      %969 = vmatprep.subr.bf16.mxu0 0
      %970 = vmatpush1.bf16.msra.mxu0 0
      %971 = vmatprep.subr.bf16.mxu0 0
      %972 = vmatpush1.bf16.msra.mxu0 0
      %973 = vmatprep.mubr.bf16.mxu0 0
      %974 = vmatmul.mubr.bf16.gmra.mrb[0].mxu0 %v927
      %v975 = vpop.f32.mrb[0].mxu0
      %v976 = vadd.f32 0.0, %v975
      %v977 = vpop.f32.mrb[0].mxu0
      %v978 = vadd.f32 0.0, %v977
      %v979 = vpop.f32.mrb[0].mxu0
      %v980 = vpop.f32.mrb[0].mxu0
      %981 = vdwg.mxu0
      %982 = vmatprep.subr.bf16.mxu0 %v939
      %983 = vmatpush1.bf16.msra.mxu0 %v936
      %984 = vmatprep.subr.bf16.mxu0 0
      %985 = vmatpush1.bf16.msra.mxu0 0
      %986 = vmatprep.subr.bf16.mxu0 0
      %987 = vmatpush1.bf16.msra.mxu0 0
      %988 = vmatprep.subr.bf16.mxu0 0
      %989 = vmatpush1.bf16.msra.mxu0 0
      %990 = vmatprep.subr.bf16.mxu0 0
      %991 = vmatpush1.bf16.msra.mxu0 0
      %992 = vmatprep.subr.bf16.mxu0 0
      %993 = vmatpush1.bf16.msra.mxu0 0
      %994 = vmatprep.subr.bf16.mxu0 0
      %995 = vmatpush1.bf16.msra.mxu0 0
      %996 = vmatprep.subr.bf16.mxu0 0
      %997 = vmatpush1.bf16.msra.mxu0 0
      %998 = vmatprep.subr.bf16.mxu0 0
      %999 = vmatpush1.bf16.msra.mxu0 0
      %1000 = vmatprep.subr.bf16.mxu0 0
      %1001 = vmatpush1.bf16.msra.mxu0 0
      %1002 = vmatprep.subr.bf16.mxu0 0
      %1003 = vmatpush1.bf16.msra.mxu0 0
      %1004 = vmatprep.subr.bf16.mxu0 0
      %1005 = vmatpush1.bf16.msra.mxu0 0
      %1006 = vmatprep.subr.bf16.mxu0 0
      %1007 = vmatpush1.bf16.msra.mxu0 0
      %1008 = vmatprep.subr.bf16.mxu0 0
      %1009 = vmatpush1.bf16.msra.mxu0 0
      %1010 = vmatprep.subr.bf16.mxu0 0
      %1011 = vmatpush1.bf16.msra.mxu0 0
      %1012 = vmatprep.subr.bf16.mxu0 0
      %1013 = vmatpush1.bf16.msra.mxu0 0
      %1014 = vmatprep.mubr.bf16.mxu0 0
      %1015 = vmatmul.mubr.bf16.gmra.mrb[0].mxu0 %v927
      %v1016 = vpop.f32.mrb[0].mxu0
      %v1017 = vadd.f32 0.0, %v1016
      %v1018 = vpop.f32.mrb[0].mxu0
      %v1019 = vadd.f32 0.0, %v1018
      %v1020 = vpop.f32.mrb[0].mxu0
      %v1021 = vpop.f32.mrb[0].mxu0
      %1022 = vdwg.mxu0
      %v1023 = vadd.f32 %v905, %v976
      %v1024 = vadd.f32 %v906, %v978
      %v1025 = vadd.f32 %v907, %v1017
      %v1026 = vadd.f32 %v908, %v1019
      %s1027 = scalar_lea.vmem %s2, 24
      %v1028 = vld [vmem:[%s1027] sm:$0xf]
      %1029 = vrot.lane.b32.xlu0 %v334, 56
      %v1030 = vpop.permute.xlu0 %1029
      %1031 = vrot.lane.b32.xlu0 %v335, 56
      %v1032 = vpop.permute.xlu0 %1031
      %1033 = vrot.lane.b32.xlu0 %v336, 56
      %v1034 = vpop.permute.xlu0 %1033
      %1035 = vrot.lane.b32.xlu0 %v337, 56
      %v1036 = vpop.permute.xlu0 %1035
      %1037 = vrot.lane.b32.xlu0 %v340, 56
      %v1038 = vpop.permute.xlu0 %1037
      %vm1039 = vcmask 457728
      %v1040 = vsel %vm1039, %v1030, %v1032
      %v1041 = vsel %vm1039, %v1032, %v1034
      %v1042 = vsel %vm1039, %v1034, %v1036
      %v1043 = vsel %vm1039, %v1036, %v1038
      %v1045 = vsel %vm359, %v1028, 0
      %v1048 = vsel %vm363, %v1040, 0
      %v1051 = vsel %vm363, %v1041, 0
      %v1054 = vsel %vm363, %v1042, 0
      %v1057 = vsel %vm363, %v1043, 0
      %1059 = vmatprep.subr.bf16.mxu0 %v1051
      %1060 = vmatpush1.bf16.msra.mxu0 %v1048
      %1061 = vmatprep.subr.bf16.mxu0 0
      %1062 = vmatpush1.bf16.msra.mxu0 0
      %1063 = vmatprep.subr.bf16.mxu0 0
      %1064 = vmatpush1.bf16.msra.mxu0 0
      %1065 = vmatprep.subr.bf16.mxu0 0
      %1066 = vmatpush1.bf16.msra.mxu0 0
      %1067 = vmatprep.subr.bf16.mxu0 0
      %1068 = vmatpush1.bf16.msra.mxu0 0
      %1069 = vmatprep.subr.bf16.mxu0 0
      %1070 = vmatpush1.bf16.msra.mxu0 0
      %1071 = vmatprep.subr.bf16.mxu0 0
      %1072 = vmatpush1.bf16.msra.mxu0 0
      %1073 = vmatprep.subr.bf16.mxu0 0
      %1074 = vmatpush1.bf16.msra.mxu0 0
      %1075 = vmatprep.subr.bf16.mxu0 0
      %1076 = vmatpush1.bf16.msra.mxu0 0
      %1077 = vmatprep.subr.bf16.mxu0 0
      %1078 = vmatpush1.bf16.msra.mxu0 0
      %1079 = vmatprep.subr.bf16.mxu0 0
      %1080 = vmatpush1.bf16.msra.mxu0 0
      %1081 = vmatprep.subr.bf16.mxu0 0
      %1082 = vmatpush1.bf16.msra.mxu0 0
      %1083 = vmatprep.subr.bf16.mxu0 0
      %1084 = vmatpush1.bf16.msra.mxu0 0
      %1085 = vmatprep.subr.bf16.mxu0 0
      %1086 = vmatpush1.bf16.msra.mxu0 0
      %1087 = vmatprep.subr.bf16.mxu0 0
      %1088 = vmatpush1.bf16.msra.mxu0 0
      %1089 = vmatprep.subr.bf16.mxu0 0
      %1090 = vmatpush1.bf16.msra.mxu0 0
      %1091 = vmatprep.mubr.bf16.mxu0 0
      %1092 = vmatmul.mubr.bf16.gmra.mrb[0].mxu0 %v1045
      %v1093 = vpop.f32.mrb[0].mxu0
      %v1094 = vadd.f32 0.0, %v1093
      %v1095 = vpop.f32.mrb[0].mxu0
      %v1096 = vadd.f32 0.0, %v1095
      %v1097 = vpop.f32.mrb[0].mxu0
      %v1098 = vpop.f32.mrb[0].mxu0
      %1099 = vdwg.mxu0
      %1100 = vmatprep.subr.bf16.mxu0 %v1057
      %1101 = vmatpush1.bf16.msra.mxu0 %v1054
      %1102 = vmatprep.subr.bf16.mxu0 0
      %1103 = vmatpush1.bf16.msra.mxu0 0
      %1104 = vmatprep.subr.bf16.mxu0 0
      %1105 = vmatpush1.bf16.msra.mxu0 0
      %1106 = vmatprep.subr.bf16.mxu0 0
      %1107 = vmatpush1.bf16.msra.mxu0 0
      %1108 = vmatprep.subr.bf16.mxu0 0
      %1109 = vmatpush1.bf16.msra.mxu0 0
      %1110 = vmatprep.subr.bf16.mxu0 0
      %1111 = vmatpush1.bf16.msra.mxu0 0
      %1112 = vmatprep.subr.bf16.mxu0 0
      %1113 = vmatpush1.bf16.msra.mxu0 0
      %1114 = vmatprep.subr.bf16.mxu0 0
      %1115 = vmatpush1.bf16.msra.mxu0 0
      %1116 = vmatprep.subr.bf16.mxu0 0
      %1117 = vmatpush1.bf16.msra.mxu0 0
      %1118 = vmatprep.subr.bf16.mxu0 0
      %1119 = vmatpush1.bf16.msra.mxu0 0
      %1120 = vmatprep.subr.bf16.mxu0 0
      %1121 = vmatpush1.bf16.msra.mxu0 0
      %1122 = vmatprep.subr.bf16.mxu0 0
      %1123 = vmatpush1.bf16.msra.mxu0 0
      %1124 = vmatprep.subr.bf16.mxu0 0
      %1125 = vmatpush1.bf16.msra.mxu0 0
      %1126 = vmatprep.subr.bf16.mxu0 0
      %1127 = vmatpush1.bf16.msra.mxu0 0
      %1128 = vmatprep.subr.bf16.mxu0 0
      %1129 = vmatpush1.bf16.msra.mxu0 0
      %1130 = vmatprep.subr.bf16.mxu0 0
      %1131 = vmatpush1.bf16.msra.mxu0 0
      %1132 = vmatprep.mubr.bf16.mxu0 0
      %1133 = vmatmul.mubr.bf16.gmra.mrb[0].mxu0 %v1045
      %v1134 = vpop.f32.mrb[0].mxu0
      %v1135 = vadd.f32 0.0, %v1134
      %v1136 = vpop.f32.mrb[0].mxu0
      %v1137 = vadd.f32 0.0, %v1136
      %v1138 = vpop.f32.mrb[0].mxu0
      %v1139 = vpop.f32.mrb[0].mxu0
      %1140 = vdwg.mxu0
      %v1141 = vadd.f32 %v1023, %v1094
      %v1142 = vadd.f32 %v1024, %v1096
      %v1143 = vadd.f32 %v1025, %v1135
      %v1144 = vadd.f32 %v1026, %v1137
      %s1145 = scalar_lea.vmem %s2, 28
      %v1146 = vld [vmem:[%s1145] sm:$0xf]
      %1147 = vrot.lane.b32.xlu0 %v334, 55
      %v1148 = vpop.permute.xlu0 %1147
      %1149 = vrot.lane.b32.xlu0 %v335, 55
      %v1150 = vpop.permute.xlu0 %1149
      %1151 = vrot.lane.b32.xlu0 %v336, 55
      %v1152 = vpop.permute.xlu0 %1151
      %1153 = vrot.lane.b32.xlu0 %v337, 55
      %v1154 = vpop.permute.xlu0 %1153
      %1155 = vrot.lane.b32.xlu0 %v340, 55
      %v1156 = vpop.permute.xlu0 %1155
      %vm1157 = vcmask 449536
      %v1158 = vsel %vm1157, %v1148, %v1150
      %v1159 = vsel %vm1157, %v1150, %v1152
      %v1160 = vsel %vm1157, %v1152, %v1154
      %v1161 = vsel %vm1157, %v1154, %v1156
      %v1163 = vsel %vm359, %v1146, 0
      %v1166 = vsel %vm363, %v1158, 0
      %v1169 = vsel %vm363, %v1159, 0
      %v1172 = vsel %vm363, %v1160, 0
      %v1175 = vsel %vm363, %v1161, 0
      %1177 = vmatprep.subr.bf16.mxu0 %v1169
      %1178 = vmatpush1.bf16.msra.mxu0 %v1166
      %1179 = vmatprep.subr.bf16.mxu0 0
      %1180 = vmatpush1.bf16.msra.mxu0 0
      %1181 = vmatprep.subr.bf16.mxu0 0
      %1182 = vmatpush1.bf16.msra.mxu0 0
      %1183 = vmatprep.subr.bf16.mxu0 0
      %1184 = vmatpush1.bf16.msra.mxu0 0
      %1185 = vmatprep.subr.bf16.mxu0 0
      %1186 = vmatpush1.bf16.msra.mxu0 0
      %1187 = vmatprep.subr.bf16.mxu0 0
      %1188 = vmatpush1.bf16.msra.mxu0 0
      %1189 = vmatprep.subr.bf16.mxu0 0
      %1190 = vmatpush1.bf16.msra.mxu0 0
      %1191 = vmatprep.subr.bf16.mxu0 0
      %1192 = vmatpush1.bf16.msra.mxu0 0
      %1193 = vmatprep.subr.bf16.mxu0 0
      %1194 = vmatpush1.bf16.msra.mxu0 0
      %1195 = vmatprep.subr.bf16.mxu0 0
      %1196 = vmatpush1.bf16.msra.mxu0 0
      %1197 = vmatprep.subr.bf16.mxu0 0
      %1198 = vmatpush1.bf16.msra.mxu0 0
      %1199 = vmatprep.subr.bf16.mxu0 0
      %1200 = vmatpush1.bf16.msra.mxu0 0
      %1201 = vmatprep.subr.bf16.mxu0 0
      %1202 = vmatpush1.bf16.msra.mxu0 0
      %1203 = vmatprep.subr.bf16.mxu0 0
      %1204 = vmatpush1.bf16.msra.mxu0 0
      %1205 = vmatprep.subr.bf16.mxu0 0
      %1206 = vmatpush1.bf16.msra.mxu0 0
      %1207 = vmatprep.subr.bf16.mxu0 0
      %1208 = vmatpush1.bf16.msra.mxu0 0
      %1209 = vmatprep.mubr.bf16.mxu0 0
      %1210 = vmatmul.mubr.bf16.gmra.mrb[0].mxu0 %v1163
      %v1211 = vpop.f32.mrb[0].mxu0
      %v1212 = vadd.f32 0.0, %v1211
      %v1213 = vpop.f32.mrb[0].mxu0
      %v1214 = vadd.f32 0.0, %v1213
      %v1215 = vpop.f32.mrb[0].mxu0
      %v1216 = vpop.f32.mrb[0].mxu0
      %1217 = vdwg.mxu0
      %1218 = vmatprep.subr.bf16.mxu0 %v1175
      %1219 = vmatpush1.bf16.msra.mxu0 %v1172
      %1220 = vmatprep.subr.bf16.mxu0 0
      %1221 = vmatpush1.bf16.msra.mxu0 0
      %1222 = vmatprep.subr.bf16.mxu0 0
      %1223 = vmatpush1.bf16.msra.mxu0 0
      %1224 = vmatprep.subr.bf16.mxu0 0
      %1225 = vmatpush1.bf16.msra.mxu0 0
      %1226 = vmatprep.subr.bf16.mxu0 0
      %1227 = vmatpush1.bf16.msra.mxu0 0
      %1228 = vmatprep.subr.bf16.mxu0 0
      %1229 = vmatpush1.bf16.msra.mxu0 0
      %1230 = vmatprep.subr.bf16.mxu0 0
      %1231 = vmatpush1.bf16.msra.mxu0 0
      %1232 = vmatprep.subr.bf16.mxu0 0
      %1233 = vmatpush1.bf16.msra.mxu0 0
      %1234 = vmatprep.subr.bf16.mxu0 0
      %1235 = vmatpush1.bf16.msra.mxu0 0
      %1236 = vmatprep.subr.bf16.mxu0 0
      %1237 = vmatpush1.bf16.msra.mxu0 0
      %1238 = vmatprep.subr.bf16.mxu0 0
      %1239 = vmatpush1.bf16.msra.mxu0 0
      %1240 = vmatprep.subr.bf16.mxu0 0
      %1241 = vmatpush1.bf16.msra.mxu0 0
      %1242 = vmatprep.subr.bf16.mxu0 0
      %1243 = vmatpush1.bf16.msra.mxu0 0
      %1244 = vmatprep.subr.bf16.mxu0 0
      %1245 = vmatpush1.bf16.msra.mxu0 0
      %1246 = vmatprep.subr.bf16.mxu0 0
      %1247 = vmatpush1.bf16.msra.mxu0 0
      %1248 = vmatprep.subr.bf16.mxu0 0
      %1249 = vmatpush1.bf16.msra.mxu0 0
      %1250 = vmatprep.mubr.bf16.mxu0 0
      %1251 = vmatmul.mubr.bf16.gmra.mrb[0].mxu0 %v1163
      %v1252 = vpop.f32.mrb[0].mxu0
      %v1253 = vadd.f32 0.0, %v1252
      %v1254 = vpop.f32.mrb[0].mxu0
      %v1255 = vadd.f32 0.0, %v1254
      %v1256 = vpop.f32.mrb[0].mxu0
      %v1257 = vpop.f32.mrb[0].mxu0
      %1258 = vdwg.mxu0
      %v1259 = vadd.f32 %v1141, %v1212
      %v1260 = vadd.f32 %v1142, %v1214
      %v1261 = vadd.f32 %v1143, %v1253
      %v1262 = vadd.f32 %v1144, %v1255
      %s1263 = scalar_lea.vmem %s2, 32
      %v1264 = vld [vmem:[%s1263] sm:$0xf]
      %1265 = vrot.lane.b32.xlu0 %v334, 54
      %v1266 = vpop.permute.xlu0 %1265
      %1267 = vrot.lane.b32.xlu0 %v335, 54
      %v1268 = vpop.permute.xlu0 %1267
      %1269 = vrot.lane.b32.xlu0 %v336, 54
      %v1270 = vpop.permute.xlu0 %1269
      %1271 = vrot.lane.b32.xlu0 %v337, 54
      %v1272 = vpop.permute.xlu0 %1271
      %1273 = vrot.lane.b32.xlu0 %v340, 54
      %v1274 = vpop.permute.xlu0 %1273
      %vm1275 = vcmask 441344
      %v1276 = vsel %vm1275, %v1266, %v1268
      %v1277 = vsel %vm1275, %v1268, %v1270
      %v1278 = vsel %vm1275, %v1270, %v1272
      %v1279 = vsel %vm1275, %v1272, %v1274
      %v1281 = vsel %vm359, %v1264, 0
      %v1284 = vsel %vm363, %v1276, 0
      %v1287 = vsel %vm363, %v1277, 0
      %v1290 = vsel %vm363, %v1278, 0
      %v1293 = vsel %vm363, %v1279, 0
      %1295 = vmatprep.subr.bf16.mxu0 %v1287
      %1296 = vmatpush1.bf16.msra.mxu0 %v1284
      %1297 = vmatprep.subr.bf16.mxu0 0
      %1298 = vmatpush1.bf16.msra.mxu0 0
      %1299 = vmatprep.subr.bf16.mxu0 0
      %1300 = vmatpush1.bf16.msra.mxu0 0
      %1301 = vmatprep.subr.bf16.mxu0 0
      %1302 = vmatpush1.bf16.msra.mxu0 0
      %1303 = vmatprep.subr.bf16.mxu0 0
      %1304 = vmatpush1.bf16.msra.mxu0 0
      %1305 = vmatprep.subr.bf16.mxu0 0
      %1306 = vmatpush1.bf16.msra.mxu0 0
      %1307 = vmatprep.subr.bf16.mxu0 0
      %1308 = vmatpush1.bf16.msra.mxu0 0
      %1309 = vmatprep.subr.bf16.mxu0 0
      %1310 = vmatpush1.bf16.msra.mxu0 0
      %1311 = vmatprep.subr.bf16.mxu0 0
      %1312 = vmatpush1.bf16.msra.mxu0 0
      %1313 = vmatprep.subr.bf16.mxu0 0
      %1314 = vmatpush1.bf16.msra.mxu0 0
      %1315 = vmatprep.subr.bf16.mxu0 0
      %1316 = vmatpush1.bf16.msra.mxu0 0
      %1317 = vmatprep.subr.bf16.mxu0 0
      %1318 = vmatpush1.bf16.msra.mxu0 0
      %1319 = vmatprep.subr.bf16.mxu0 0
      %1320 = vmatpush1.bf16.msra.mxu0 0
      %1321 = vmatprep.subr.bf16.mxu0 0
      %1322 = vmatpush1.bf16.msra.mxu0 0
      %1323 = vmatprep.subr.bf16.mxu0 0
      %1324 = vmatpush1.bf16.msra.mxu0 0
      %1325 = vmatprep.subr.bf16.mxu0 0
      %1326 = vmatpush1.bf16.msra.mxu0 0
      %1327 = vmatprep.mubr.bf16.mxu0 0
      %1328 = vmatmul.mubr.bf16.gmra.mrb[0].mxu0 %v1281
      %v1329 = vpop.f32.mrb[0].mxu0
      %v1330 = vadd.f32 0.0, %v1329
      %v1331 = vpop.f32.mrb[0].mxu0
      %v1332 = vadd.f32 0.0, %v1331
      %v1333 = vpop.f32.mrb[0].mxu0
      %v1334 = vpop.f32.mrb[0].mxu0
      %1335 = vdwg.mxu0
      %1336 = vmatprep.subr.bf16.mxu0 %v1293
      %1337 = vmatpush1.bf16.msra.mxu0 %v1290
      %1338 = vmatprep.subr.bf16.mxu0 0
      %1339 = vmatpush1.bf16.msra.mxu0 0
      %1340 = vmatprep.subr.bf16.mxu0 0
      %1341 = vmatpush1.bf16.msra.mxu0 0
      %1342 = vmatprep.subr.bf16.mxu0 0
      %1343 = vmatpush1.bf16.msra.mxu0 0
      %1344 = vmatprep.subr.bf16.mxu0 0
      %1345 = vmatpush1.bf16.msra.mxu0 0
      %1346 = vmatprep.subr.bf16.mxu0 0
      %1347 = vmatpush1.bf16.msra.mxu0 0
      %1348 = vmatprep.subr.bf16.mxu0 0
      %1349 = vmatpush1.bf16.msra.mxu0 0
      %1350 = vmatprep.subr.bf16.mxu0 0
      %1351 = vmatpush1.bf16.msra.mxu0 0
      %1352 = vmatprep.subr.bf16.mxu0 0
      %1353 = vmatpush1.bf16.msra.mxu0 0
      %1354 = vmatprep.subr.bf16.mxu0 0
      %1355 = vmatpush1.bf16.msra.mxu0 0
      %1356 = vmatprep.subr.bf16.mxu0 0
      %1357 = vmatpush1.bf16.msra.mxu0 0
      %1358 = vmatprep.subr.bf16.mxu0 0
      %1359 = vmatpush1.bf16.msra.mxu0 0
      %1360 = vmatprep.subr.bf16.mxu0 0
      %1361 = vmatpush1.bf16.msra.mxu0 0
      %1362 = vmatprep.subr.bf16.mxu0 0
      %1363 = vmatpush1.bf16.msra.mxu0 0
      %1364 = vmatprep.subr.bf16.mxu0 0
      %1365 = vmatpush1.bf16.msra.mxu0 0
      %1366 = vmatprep.subr.bf16.mxu0 0
      %1367 = vmatpush1.bf16.msra.mxu0 0
      %1368 = vmatprep.mubr.bf16.mxu0 0
      %1369 = vmatmul.mubr.bf16.gmra.mrb[0].mxu0 %v1281
      %v1370 = vpop.f32.mrb[0].mxu0
      %v1371 = vadd.f32 0.0, %v1370
      %v1372 = vpop.f32.mrb[0].mxu0
      %v1373 = vadd.f32 0.0, %v1372
      %v1374 = vpop.f32.mrb[0].mxu0
      %v1375 = vpop.f32.mrb[0].mxu0
      %1376 = vdwg.mxu0
      %v1377 = vadd.f32 %v1259, %v1330
      %v1378 = vadd.f32 %v1260, %v1332
      %v1379 = vadd.f32 %v1261, %v1371
      %v1380 = vadd.f32 %v1262, %v1373
      %v1381 = vpack.c.bf16 %v1377, %v1377
      %v1382 = vpack.c.bf16 %v1378, %v1378
      %v1383 = vpack.c.bf16 %v1379, %v1379
      %v1384 = vpack.c.bf16 %v1380, %v1380
      %v1389 = vunpack.c.l.b16 %v1381
      %v1390 = vunpack.c.l.b16 %v1382
      %v1391 = vunpack.c.l.b16 %v1383
      %v1392 = vunpack.c.l.b16 %v1384
      %v1393 = vpack.c.b16 %v1390, %v1389
      %v1394 = vpack.c.b16 %v1392, %v1391
      %1397 = vst [vmem:[%s314] sm:$0xff] %v1393
      %1398 = vst [vmem:[%s314 + $0x8] sm:$0xff] %v1394
      %v1399 = vld [vmem:[%s308] sm:$0xf]
      %v1401 = vlaneseq
      %v1402 = vshrl.u32 %v1401, 7
      %v1403 = vsub.s32 0, %v1402
      %v1404 = vrot.slane %v1399, %v1403
      %v1405 = vlaneseq
      %v1406 = vshrl.u32 %v1405, 7
      %v1407 = vsub.s32 1, %v1406
      %v1408 = vrot.slane %v1399, %v1407
      %v1409 = vlaneseq
      %v1410 = vshrl.u32 %v1409, 7
      %v1411 = vsub.s32 2, %v1410
      %v1412 = vrot.slane %v1399, %v1411
      %v1413 = vlaneseq
      %v1414 = vshrl.u32 %v1413, 7
      %v1415 = vsub.s32 3, %v1414
      %v1416 = vrot.slane %v1399, %v1415
      %v1421 = vmul.f32 %v1377, %v1404
      %v1422 = vmul.f32 %v1378, %v1408
      %v1423 = vmul.f32 %v1379, %v1412
      %v1424 = vmul.f32 %v1380, %v1416
      %v1425 = vadd.f32 %v1421, %v1422
      %v1426 = vadd.f32 %v1425, %v1423
      %v1427 = vadd.f32 %v1426, %v1424
      %1428 = vadd.xlane.f32.xlu0 %v1427
      %v1429 = vpop.xlane.xlu0 %1428
      %vm1430 = vcmask 7168
      %1431 = vst.msk [vmem:[%s319] sm:$0xff] %vm1430, %v1429
      %v1432 = vmul.f32 %v1421, %v1377
      %v1433 = vmul.f32 %v1422, %v1378
      %v1434 = vmul.f32 %v1423, %v1379
      %v1435 = vmul.f32 %v1424, %v1380
      %v1436 = vadd.f32 %v1432, %v1433
      %v1437 = vadd.f32 %v1436, %v1434
      %v1438 = vadd.f32 %v1437, %v1435
      %1439 = vadd.xlane.f32.xlu0 %v1438
      %v1440 = vpop.xlane.xlu0 %1439
      %1441 = vst.msk [vmem:[%s323] sm:$0xff] %vm1430, %v1440
      %s1442 = smul.u32 4, %s18
      %p1443 = scmp.lt.s32.totalorder %s1442, 23
      %s1444 = scalar_select %p1443, %s1442, 23
      %s1445 = smul.addr %s1444, 4
      %s1446 = scalar_lea.vmem %s4, %s1445
      %p1447 = scmp.lt.s32.totalorder %s18, 5
      %s1448 = scalar_select %p1447, %s18, 5
      %s1449 = smul.addr %s1448, 8
      %s1450 = scalar_lea.vmem %s5, %s1449
      %p1451 = scmp.lt.s32.totalorder %s18, 5
      %s1452 = scalar_select %p1451, %s18, 5
      %s1453 = smul.addr %s1452, 8
      %s1454 = scalar_lea.vmem %s6, %s1453
      // Predicated region
      $region37: #{basic_block_to_crop_forward.4} parent=35 // pred_check
        %p1455 = pneg %p137
      $region38: #{basic_block_to_crop_forward.4} parent=35 // pred_check_branch
        %1457 = sbr.rel (%p1455) target = $region40
      $region39: #{basic_block_to_crop_forward.4} parent=35 // pred_region
        %s1458 = smul.u32 4, %s18
      $region40: #{basic_block_to_crop_forward.4} parent=35 // pred_fallthru
        _
      // Predicated region
      $region41: #{basic_block_to_crop_forward.4} parent=35 // pred_check
        %p1459 = pneg %p163
      $region42: #{basic_block_to_crop_forward.4} parent=35 // pred_check_branch
        %1461 = sbr.rel (%p1459) target = $region44
      $region43: #{basic_block_to_crop_forward.4} parent=35 // pred_region
        _
      $region44: #{basic_block_to_crop_forward.4} parent=35 // pred_fallthru
        _
      // Predicated region
      $region45: #{basic_block_to_crop_forward.4} parent=35 // pred_check
        %p1462 = pneg %p189
      $region46: #{basic_block_to_crop_forward.4} parent=35 // pred_check_branch
        %1464 = sbr.rel (%p1462) target = $region48
      $region47: #{basic_block_to_crop_forward.4} parent=35 // pred_region
        _
      $region48: #{basic_block_to_crop_forward.4} parent=35 // pred_fallthru
        _
    $region36: #{basic_block_to_crop_forward.4} parent=5 // pred_fallthru
      _
    %p1465 = scmp.le.s32.totalorder 2, %s13
    // Predicated region
    $region49: #{basic_block_to_crop_forward.4} parent=5 // pred_check
      %p1466 = pneg %p1465
    $region50: #{basic_block_to_crop_forward.4} parent=5 // pred_check_branch
      %1468 = sbr.rel (%p1466) target = $region52
    $region51: #{basic_block_to_crop_forward.4} parent=5 // pred_region
      %s1469 = ssub.s32 %s13, 2
      // Predicated region
      $region53: #{basic_block_to_crop_forward.4} parent=51 // pred_check
        %p1470 = pneg %p143
      $region54: #{basic_block_to_crop_forward.4} parent=51 // pred_check_branch
        %1472 = sbr.rel (%p1470) target = $region56
      $region55: #{basic_block_to_crop_forward.4} parent=51 // pred_region
        %s1473 = smul.u32 4, %s19
        %p1474 = scmp.lt.s32.totalorder %s1473, 23
        %s1475 = scalar_select %p1474, %s1473, 23
        %s1476 = smul.addr %s1475, 4
        %s1477 = scalar_lea.vmem %s4, %s1476
      $region56: #{basic_block_to_crop_forward.4} parent=51 // pred_fallthru
        _
      // Predicated region
      $region57: #{basic_block_to_crop_forward.4} parent=51 // pred_check
        %p1478 = pneg %p169
      $region58: #{basic_block_to_crop_forward.4} parent=51 // pred_check_branch
        %1480 = sbr.rel (%p1478) target = $region60
      $region59: #{basic_block_to_crop_forward.4} parent=51 // pred_region
        %p1481 = scmp.lt.s32.totalorder %s19, 5
        %s1482 = scalar_select %p1481, %s19, 5
        %s1483 = smul.addr %s1482, 8
        %s1484 = scalar_lea.vmem %s5, %s1483
      $region60: #{basic_block_to_crop_forward.4} parent=51 // pred_fallthru
        _
      // Predicated region
      $region61: #{basic_block_to_crop_forward.4} parent=51 // pred_check
        %p1485 = pneg %p195
      $region62: #{basic_block_to_crop_forward.4} parent=51 // pred_check_branch
        %1487 = sbr.rel (%p1485) target = $region64
      $region63: #{basic_block_to_crop_forward.4} parent=51 // pred_region
        %p1488 = scmp.lt.s32.totalorder %s19, 5
        %s1489 = scalar_select %p1488, %s19, 5
        %s1490 = smul.addr %s1489, 8
        %s1491 = scalar_lea.vmem %s6, %s1490
      $region64: #{basic_block_to_crop_forward.4} parent=51 // pred_fallthru
        _
    $region52: #{basic_block_to_crop_forward.4} parent=5 // pred_fallthru
      _
  $region6: #{basic_block_to_crop_forward.4} parent=0 // loop_footer
    %s17 = sadd.s32 1, %s13
  $region7: #{basic_block_to_crop_forward.4} parent=0 // loop_footer_branch
    %12 = sbr.rel target = $region3
  $region8: #{basic_block_to_crop_forward.4} parent=0 // loop_exit
    _

</llo_original>
